<compile_context>
chip_gen: v5e
topology: v5e:2x2
jax: 0.10.0
libtpu: 0.0.40
codegen_flags: <defaults>
</compile_context>

<pallas_src>
import functools

import jax
import jax.numpy as jnp
from jax.experimental import pallas as pl
from jax.experimental.pallas import tpu as pltpu

# ----------------------------- configuration --------------------------------
DIM_IN = 8
DIM_OUT = 2
NHIDDEN = 16
DEPTH = 3
LIN_DEPTH = 2
K_NEIGHBORS = 8          # SA neighborhood size (max_neighbors capped for toy)
KNN_NUM = 3              # FP interpolation k
N_POINTS = 64
BN_EPS = 1e-5


# ----------------------------- pallas_call helper ----------------------------
def _vmem_spec():
    # whole array resident in VMEM, no grid (single kernel invocation)
    return pl.BlockSpec(memory_space=pltpu.MemorySpace.VMEM)


def _call(kernel, out_shape, *args):
    return pl.pallas_call(
        kernel,
        out_shape=out_shape,
        in_specs=[_vmem_spec() for _ in args],
        out_specs=_vmem_spec(),
    )(*args)


# ----------------------------- Pallas kernels -------------------------------
def _mlp2_kernel(x_ref, w1_ref, s1_ref, t1_ref, w2_ref, s2_ref, t2_ref, o_ref,
                 *, relu1, relu2):
    """Fused 2-layer MLP: (x@W1)*s1+t1 [relu] -> (h@W2)*s2+t2 [relu].

    scale/shift fold eval-mode BatchNorm and the Linear bias; intermediates
    stay in vregs/VMEM (never written back to HBM)."""
    h = jnp.dot(x_ref[...], w1_ref[...], preferred_element_type=jnp.float32)
    h = h * s1_ref[...] + t1_ref[...]
    if relu1:
        h = jnp.maximum(h, 0.0)
    h = jnp.dot(h, w2_ref[...], preferred_element_type=jnp.float32)
    h = h * s2_ref[...] + t2_ref[...]
    if relu2:
        h = jnp.maximum(h, 0.0)
    o_ref[...] = h


def mlp2(x, layer1, layer2, relu1=True, relu2=True):
    (w1, s1, t1), (w2, s2, t2) = layer1, layer2
    kernel = functools.partial(_mlp2_kernel, relu1=relu1, relu2=relu2)
    out_shape = jax.ShapeDtypeStruct((x.shape[0], w2.shape[1]), jnp.float32)
    return _call(kernel, out_shape, x, w1, s1, t1, w2, s2, t2)


def _sa_conv_kernel(nbr_ref, pf_ref, x_ref,
                    w1a_ref, w1b_ref, b1_ref, w2_ref, b2_ref, w3_ref, b3_ref,
                    wg_ref, bg_ref, o_ref):
    """PPFConv: in-kernel x[nbr] gather (one-hot matmul) -> per-edge 3-layer
    local MLP (2-D matmuls) -> max over K neighbors (static slices; edges are
    neighbor-major) -> global Linear+ReLU."""
    m = nbr_ref.shape[0]                 # K * n_sample edges (neighbor-major)
    n_src = x_ref.shape[0]
    n_sample = o_ref.shape[0]
    k_nbr = m // n_sample

    # gather neighbor features via one-hot matmul (avoids HBM round trip of ef)
    lane_ids = jax.lax.broadcasted_iota(jnp.int32, (m, n_src), 1)
    onehot = (lane_ids == nbr_ref[...]).astype(jnp.float32)          # (m, n_src)
    x_j = jnp.dot(onehot, x_ref[...], preferred_element_type=jnp.float32)

    # local MLP layer 1: concat([x_j, ppf]) @ W1  ==  x_j@W1a + ppf@W1b
    h = (jnp.dot(x_j, w1a_ref[...], preferred_element_type=jnp.float32)
         + jnp.dot(pf_ref[...], w1b_ref[...], preferred_element_type=jnp.float32)
         + b1_ref[...])
    h = jnp.maximum(h, 0.0)
    h = jnp.maximum(
        jnp.dot(h, w2_ref[...], preferred_element_type=jnp.float32) + b2_ref[...], 0.0)
    h = jnp.maximum(
        jnp.dot(h, w3_ref[...], preferred_element_type=jnp.float32) + b3_ref[...], 0.0)

    # aggr='max' over K neighbors: rows are neighbor-major so each neighbor's
    # slab [k*n_sample : (k+1)*n_sample] is a contiguous, tile-aligned slice.
    agg = h[0:n_sample]
    for k in range(1, k_nbr):
        agg = jnp.maximum(agg, h[k * n_sample:(k + 1) * n_sample])

    # global MLP [16,16]: single Linear + ReLU
    o_ref[...] = jnp.maximum(
        jnp.dot(agg, wg_ref[...], preferred_element_type=jnp.float32) + bg_ref[...],
        0.0)


def sa_conv_call(nbr_flat, pf_flat, x, p):
    n_sample = nbr_flat.shape[0] // K_NEIGHBORS
    nh = x.shape[1]
    hout = p["wg"].shape[1]
    out_shape = jax.ShapeDtypeStruct((n_sample, hout), jnp.float32)
    return _call(
        _sa_conv_kernel, out_shape,
        nbr_flat, pf_flat, x,
        p["w1"][:nh], p["w1"][nh:], p["b1"],
        p["w2"], p["b2"], p["w3"], p["b3"], p["wg"], p["bg"])


def _fp_kernel(idx_ref, wgt_ref, xc_ref, xs_ref,
               w1a_ref, w1b_ref, s1_ref, t1_ref, w2_ref, s2_ref, t2_ref, o_ref):
    """Feature propagation: knn_interpolate(k=3) as a soft-gather matmul,
    then the fused 2-layer (concat-skip) MLP with folded BN + ReLU."""
    ns = xs_ref.shape[0]
    nc = xc_ref.shape[0]
    knn = idx_ref.shape[1]

    lane_ids = jax.lax.broadcasted_iota(jnp.int32, (ns, nc), 1)
    idx = idx_ref[...]
    wgt = wgt_ref[...]
    a = jnp.zeros((ns, nc), jnp.float32)
    for k in range(knn):                                   # static k=3 unroll
        a = a + jnp.where(lane_ids == idx[:, k:k + 1], wgt[:, k:k + 1], 0.0)
    interp = jnp.dot(a, xc_ref[...], preferred_element_type=jnp.float32)

    # layer 1: concat([interp, x_skip]) @ W1 == interp@W1a + x_skip@W1b
    h = (jnp.dot(interp, w1a_ref[...], preferred_element_type=jnp.float32)
         + jnp.dot(xs_ref[...], w1b_ref[...], preferred_element_type=jnp.float32))
    h = jnp.maximum(h * s1_ref[...] + t1_ref[...], 0.0)
    h = jnp.maximum(
        jnp.dot(h, w2_ref[...], preferred_element_type=jnp.float32)
        * s2_ref[...] + t2_ref[...], 0.0)
    o_ref[...] = h


# ----------------------------- JAX glue (graph ops) --------------------------
def fps(pos, n_sample):
    """Deterministic farthest point sampling (start at index 0), rolled loop."""
    d0 = jnp.sum((pos - pos[0]) ** 2, axis=-1)
    idx0 = jnp.zeros((n_sample,), jnp.int32)

    def body(i, carry):
        d, idxs = carry
        nxt = jnp.argmax(d).astype(jnp.int32)
        idxs = idxs.at[i].set(nxt)
        d = jnp.minimum(d, jnp.sum((pos - pos[nxt]) ** 2, axis=-1))
        return d, idxs

    _, idxs = jax.lax.fori_loop(1, n_sample, body, (d0, idx0))
    return idxs


def knn_indices(query, source, k):
    d2 = jnp.sum((query[:, None, :] - source[None, :, :]) ** 2, axis=-1)
    _, idx = jax.lax.top_k(-d2, k)
    return idx.astype(jnp.int32)


def _angle(v1, v2):
    cr = jnp.cross(v1, v2)
    return jnp.arctan2(jnp.linalg.norm(cr, axis=-1), jnp.sum(v1 * v2, axis=-1))


def point_pair_features(pos_i, pos_j, n_i, n_j):
    # TODO(synk): kept in JAX glue — atan2 lowering inside Mosaic is not guaranteed.
    pseudo = pos_j - pos_i
    return jnp.stack(
        [jnp.linalg.norm(pseudo, axis=-1),
         _angle(n_i, pseudo), _angle(n_j, pseudo), _angle(n_i, n_j)], axis=-1)


def sa_module(x, pos, norm, p):
    """Set-abstraction: fps(ratio=0.5) + knn neighborhoods + PPFConv (Pallas)."""
    n_sample = pos.shape[0] // 2
    idx = fps(pos, n_sample)
    pos_c, norm_c = pos[idx], norm[idx]
    nbr = knn_indices(pos_c, pos, K_NEIGHBORS)             # (n_sample, K)

    # neighbor-major flat edge ordering: row k*n_sample + i <-> (center i, nbr k)
    nbr_flat = nbr.T.reshape(-1, 1)                        # (K*n_sample, 1) i32

    pos_j, norm_j = pos[nbr], norm[nbr]                    # tiny (n_sample,K,3)
    pf = point_pair_features(pos_c[:, None, :], pos_j, norm_c[:, None, :], norm_j)
    pf_flat = jnp.transpose(pf, (1, 0, 2)).reshape(-1, 4)  # (K*n_sample, 4)

    x_new = sa_conv_call(nbr_flat, pf_flat, x, p)          # x[nbr] gathered in-kernel
    return x_new, pos_c, idx


def fp_module(x, pos, x_skip, pos_skip, layers):
    """Feature propagation: knn_interpolate(k=3) + concat skip + 2-layer MLP,
    all fused into one Pallas kernel."""
    (w1, s1, t1), (w2, s2, t2) = layers
    nh = x.shape[1]
    idx = knn_indices(pos_skip, pos, KNN_NUM)              # (Ns, 3)
    d2 = jnp.sum((pos_skip[:, None, :] - pos[idx]) ** 2, axis=-1)
    w = 1.0 / jnp.maximum(d2, 1e-16)
    w = (w / jnp.sum(w, axis=1, keepdims=True)).astype(jnp.float32)

    out_shape = jax.ShapeDtypeStruct((x_skip.shape[0], w2.shape[1]), jnp.float32)
    h = _call(_fp_kernel, out_shape,
              idx, w, x, x_skip, w1[:nh], w1[nh:], s1, t1, w2, s2, t2)
    return h, pos_skip


# ----------------------------- parameters ------------------------------------
def init_params(key):
    keys = iter(jax.random.split(key, 64))

    def dense(din, dout):
        kw, kb = jax.random.split(next(keys))
        w = jax.random.normal(kw, (din, dout), jnp.float32) / jnp.sqrt(din)
        b = 0.01 * jax.random.normal(kb, (dout,), jnp.float32)
        return w, b

    def lin_layer(din, dout, use_bn):
        w, b = dense(din, dout)
        if use_bn:
            # fresh BatchNorm (gamma=1, beta=0, mean=0, var=1), eval mode, folded
            s = 1.0 / jnp.sqrt(1.0 + BN_EPS)
            scale = jnp.full((1, dout), s, jnp.float32)
            shift = (b * s).reshape(1, -1)
        else:
            scale = jnp.ones((1, dout), jnp.float32)
            shift = b.reshape(1, -1)
        return (w, scale, shift)

    params = {}
    # lin_in: MLP([dim_in]*lin_depth + [nhidden], batch_norm=True, act=relu)
    dims = [DIM_IN] * LIN_DEPTH + [NHIDDEN]
    params["lin_in"] = [lin_layer(dims[i], dims[i + 1], True)
                        for i in range(len(dims) - 1)]

    # SA modules: PPFConv local MLP [nhidden+4,16,16,16] (no BN), global [16,16]
    params["sa"] = []
    for _ in range(DEPTH):
        d_edge = NHIDDEN + 4
        w1, b1 = dense(d_edge, NHIDDEN)
        w2, b2 = dense(NHIDDEN, NHIDDEN)
        w3, b3 = dense(NHIDDEN, NHIDDEN)
        wg, bg = dense(NHIDDEN, NHIDDEN)
        params["sa"].append(dict(
            w1=w1, b1=b1.reshape(1, -1), w2=w2, b2=b2.reshape(1, -1),
            w3=w3, b3=b3.reshape(1, -1), wg=wg, bg=bg.reshape(1, -1)))

    # FP modules: makeFPMLP -> MLP([2*nhidden, 2*nhidden, nhidden], BN, relu)
    params["fp"] = [[lin_layer(2 * NHIDDEN, 2 * NHIDDEN, True),
                     lin_layer(2 * NHIDDEN, NHIDDEN, True)] for _ in range(DEPTH)]

    # lin_out: MLP([nhidden, nhidden, dim_out], bn=[True, False], act=[relu, None])
    params["lin_out"] = [lin_layer(NHIDDEN, NHIDDEN, True),
                         lin_layer(NHIDDEN, DIM_OUT, False)]
    return params


# ----------------------------- forward ---------------------------------------
def model_forward(params, x_in, pos, norm):
    # lin_in: one fused 2-layer kernel
    x = mlp2(x_in, params["lin_in"][0], params["lin_in"][1],
             relu1=True, relu2=True)

    # set-abstraction stack
    sa_outs = [(x, pos)]
    cur_norm = norm
    for i in range(DEPTH):
        xi, pi = sa_outs[i]
        xn, pc, idx = sa_module(xi, pi, cur_norm, params["sa"][i])
        sa_outs.append((xn, pc))
        cur_norm = cur_norm[idx]

    # feature-propagation stack (mirrors the Model.forward index arithmetic)
    fp_x, fp_pos = fp_module(*sa_outs[-1], *sa_outs[-2], params["fp"][-1])
    for i in range(1, DEPTH):
        j = -i
        fp_x, fp_pos = fp_module(fp_x, fp_pos, *sa_outs[j - 2], params["fp"][j - 1])

    # lin_out: one fused 2-layer kernel (final masked (N,2) store is accepted)
    x = mlp2(fp_x, params["lin_out"][0], params["lin_out"][1],
             relu1=True, relu2=False)
    return x


# ----------------------------- main -------------------------------------------
if __name__ == "__main__":
    key = jax.random.PRNGKey(0)
    kp, kx, kpos, kn = jax.random.split(key, 4)
    params = init_params(kp)

    x = jax.random.normal(kx, (N_POINTS, DIM_IN), jnp.float32)
    pos = jax.random.normal(kpos, (N_POINTS, 3), jnp.float32)
    nrm = jax.random.normal(kn, (N_POINTS, 3), jnp.float32)
    nrm = nrm / jnp.linalg.norm(nrm, axis=-1, keepdims=True)

    out = jax.jit(model_forward)(params, x, pos, nrm)
    out = jax.block_until_ready(out)
    assert out.shape == (N_POINTS, DIM_OUT)
    assert bool(jnp.all(jnp.isfinite(out)))
    print("KERNEL_OK")
</pallas_src>

<mosaic_0001>
module attributes {stable_mosaic.version = 11 : i64} {
  func.func @_mlp2_kernel(%arg0: memref<64x8xf32, #tpu.memory_space<vmem>>, %arg1: memref<8x8xf32, #tpu.memory_space<vmem>>, %arg2: memref<1x8xf32, #tpu.memory_space<vmem>>, %arg3: memref<1x8xf32, #tpu.memory_space<vmem>>, %arg4: memref<8x16xf32, #tpu.memory_space<vmem>>, %arg5: memref<1x16xf32, #tpu.memory_space<vmem>>, %arg6: memref<1x16xf32, #tpu.memory_space<vmem>>, %arg7: memref<64x16xf32, #tpu.memory_space<vmem>>) attributes {dimension_semantics = [], scalar_prefetch = 0 : i64, scratch_operands = 0 : i64, tpu.core_type = #tpu.core_type<tc>} {
    %c0 = arith.constant 0 : index
    %c0_0 = arith.constant 0 : index
    %0 = vector.load %arg0[%c0, %c0_0] : memref<64x8xf32, #tpu.memory_space<vmem>>, vector<64x8xf32>
    %c0_1 = arith.constant 0 : index
    %c0_2 = arith.constant 0 : index
    %1 = vector.load %arg1[%c0_1, %c0_2] : memref<8x8xf32, #tpu.memory_space<vmem>>, vector<8x8xf32>
    %cst = arith.constant dense<0.000000e+00> : vector<64x8xf32>
    %2 = tpu.matmul %0, %1, %cst {dimension_numbers = #tpu.dot_dimension_numbers<[1], [0], [0], [1], [0, 0, 1, 1], [], []>} : vector<64x8xf32>, vector<8x8xf32>, vector<64x8xf32> -> vector<64x8xf32>
    %c0_3 = arith.constant 0 : index
    %c0_4 = arith.constant 0 : index
    %3 = vector.load %arg2[%c0_3, %c0_4] : memref<1x8xf32, #tpu.memory_space<vmem>>, vector<1x8xf32>
    %4 = vector.broadcast %3 : vector<1x8xf32> to vector<64x8xf32>
    %5 = arith.mulf %2, %4 : vector<64x8xf32>
    %c0_5 = arith.constant 0 : index
    %c0_6 = arith.constant 0 : index
    %6 = vector.load %arg3[%c0_5, %c0_6] : memref<1x8xf32, #tpu.memory_space<vmem>>, vector<1x8xf32>
    %7 = vector.broadcast %6 : vector<1x8xf32> to vector<64x8xf32>
    %8 = arith.addf %5, %7 : vector<64x8xf32>
    %cst_7 = arith.constant 0.000000e+00 : f32
    %9 = vector.broadcast %cst_7 : f32 to vector<64x8xf32>
    %10 = arith.maximumf %8, %9 : vector<64x8xf32>
    %c0_8 = arith.constant 0 : index
    %c0_9 = arith.constant 0 : index
    %11 = vector.load %arg4[%c0_8, %c0_9] : memref<8x16xf32, #tpu.memory_space<vmem>>, vector<8x16xf32>
    %cst_10 = arith.constant dense<0.000000e+00> : vector<64x16xf32>
    %12 = tpu.matmul %10, %11, %cst_10 {dimension_numbers = #tpu.dot_dimension_numbers<[1], [0], [0], [1], [0, 0, 1, 1], [], []>} : vector<64x8xf32>, vector<8x16xf32>, vector<64x16xf32> -> vector<64x16xf32>
    %c0_11 = arith.constant 0 : index
    %c0_12 = arith.constant 0 : index
    %13 = vector.load %arg5[%c0_11, %c0_12] : memref<1x16xf32, #tpu.memory_space<vmem>>, vector<1x16xf32>
    %14 = vector.broadcast %13 : vector<1x16xf32> to vector<64x16xf32>
    %15 = arith.mulf %12, %14 : vector<64x16xf32>
    %c0_13 = arith.constant 0 : index
    %c0_14 = arith.constant 0 : index
    %16 = vector.load %arg6[%c0_13, %c0_14] : memref<1x16xf32, #tpu.memory_space<vmem>>, vector<1x16xf32>
    %17 = vector.broadcast %16 : vector<1x16xf32> to vector<64x16xf32>
    %18 = arith.addf %15, %17 : vector<64x16xf32>
    %cst_15 = arith.constant 0.000000e+00 : f32
    %19 = vector.broadcast %cst_15 : f32 to vector<64x16xf32>
    %20 = arith.maximumf %18, %19 : vector<64x16xf32>
    %c0_16 = arith.constant 0 : index
    %c0_17 = arith.constant 0 : index
    %21 = vector.load %arg7[%c0_16, %c0_17] : memref<64x16xf32, #tpu.memory_space<vmem>>, vector<64x16xf32>
    tpu.vector_store %arg7[%c0_16, %c0_17], %20 {strides = array<i32>} : memref<64x16xf32, #tpu.memory_space<vmem>>, vector<64x16xf32>,
    return
  }
}

module attributes {stable_mosaic.version = 11 : i64} {
  func.func @_sa_conv_kernel(%arg0: memref<256x1xi32, #tpu.memory_space<vmem>>, %arg1: memref<256x4xf32, #tpu.memory_space<vmem>>, %arg2: memref<64x16xf32, #tpu.memory_space<vmem>>, %arg3: memref<16x16xf32, #tpu.memory_space<vmem>>, %arg4: memref<4x16xf32, #tpu.memory_space<vmem>>, %arg5: memref<1x16xf32, #tpu.memory_space<vmem>>, %arg6: memref<16x16xf32, #tpu.memory_space<vmem>>, %arg7: memref<1x16xf32, #tpu.memory_space<vmem>>, %arg8: memref<16x16xf32, #tpu.memory_space<vmem>>, %arg9: memref<1x16xf32, #tpu.memory_space<vmem>>, %arg10: memref<16x16xf32, #tpu.memory_space<vmem>>, %arg11: memref<1x16xf32, #tpu.memory_space<vmem>>, %arg12: memref<32x16xf32, #tpu.memory_space<vmem>>) attributes {dimension_semantics = [], scalar_prefetch = 0 : i64, scratch_operands = 0 : i64, tpu.core_type = #tpu.core_type<tc>} {
    %0 = tpu.iota {dimensions = array<i32: 1>} : vector<256x64xi32>
    %c0 = arith.constant 0 : index
    %c0_0 = arith.constant 0 : index
    %1 = vector.load %arg0[%c0, %c0_0] : memref<256x1xi32, #tpu.memory_space<vmem>>, vector<256x1xi32>
    %2 = vector.broadcast %1 : vector<256x1xi32> to vector<256x64xi32>
    %3 = arith.cmpi eq, %0, %2 : vector<256x64xi32>
    %4 = arith.extui %3 : vector<256x64xi1> to vector<256x64xi32>
    %5 = arith.sitofp %4 : vector<256x64xi32> to vector<256x64xf32>
    %c0_1 = arith.constant 0 : index
    %c0_2 = arith.constant 0 : index
    %6 = vector.load %arg2[%c0_1, %c0_2] : memref<64x16xf32, #tpu.memory_space<vmem>>, vector<64x16xf32>
    %cst = arith.constant dense<0.000000e+00> : vector<256x16xf32>
    %7 = tpu.matmul %5, %6, %cst {dimension_numbers = #tpu.dot_dimension_numbers<[1], [0], [0], [1], [0, 0, 1, 1], [], []>} : vector<256x64xf32>, vector<64x16xf32>, vector<256x16xf32> -> vector<256x16xf32>
    %c0_3 = arith.constant 0 : index
    %c0_4 = arith.constant 0 : index
    %8 = vector.load %arg3[%c0_3, %c0_4] : memref<16x16xf32, #tpu.memory_space<vmem>>, vector<16x16xf32>
    %cst_5 = arith.constant dense<0.000000e+00> : vector<256x16xf32>
    %9 = tpu.matmul %7, %8, %cst_5 {dimension_numbers = #tpu.dot_dimension_numbers<[1], [0], [0], [1], [0, 0, 1, 1], [], []>} : vector<256x16xf32>, vector<16x16xf32>, vector<256x16xf32> -> vector<256x16xf32>
    %c0_6 = arith.constant 0 : index
    %c0_7 = arith.constant 0 : index
    %10 = vector.load %arg1[%c0_6, %c0_7] : memref<256x4xf32, #tpu.memory_space<vmem>>, vector<256x4xf32>
    %c0_8 = arith.constant 0 : index
    %c0_9 = arith.constant 0 : index
    %11 = vector.load %arg4[%c0_8, %c0_9] : memref<4x16xf32, #tpu.memory_space<vmem>>, vector<4x16xf32>
    %cst_10 = arith.constant dense<0.000000e+00> : vector<256x16xf32>
    %12 = tpu.matmul %10, %11, %cst_10 {dimension_numbers = #tpu.dot_dimension_numbers<[1], [0], [0], [1], [0, 0, 1, 1], [], []>} : vector<256x4xf32>, vector<4x16xf32>, vector<256x16xf32> -> vector<256x16xf32>
    %13 = arith.addf %9, %12 : vector<256x16xf32>
    %c0_11 = arith.constant 0 : index
    %c0_12 = arith.constant 0 : index
    %14 = vector.load %arg5[%c0_11, %c0_12] : memref<1x16xf32, #tpu.memory_space<vmem>>, vector<1x16xf32>
    %15 = vector.broadcast %14 : vector<1x16xf32> to vector<256x16xf32>
    %16 = arith.addf %13, %15 : vector<256x16xf32>
    %cst_13 = arith.constant 0.000000e+00 : f32
    %17 = vector.broadcast %cst_13 : f32 to vector<256x16xf32>
    %18 = arith.maximumf %16, %17 : vector<256x16xf32>
    %c0_14 = arith.constant 0 : index
    %c0_15 = arith.constant 0 : index
    %19 = vector.load %arg6[%c0_14, %c0_15] : memref<16x16xf32, #tpu.memory_space<vmem>>, vector<16x16xf32>
    %cst_16 = arith.constant dense<0.000000e+00> : vector<256x16xf32>
    %20 = tpu.matmul %18, %19, %cst_16 {dimension_numbers = #tpu.dot_dimension_numbers<[1], [0], [0], [1], [0, 0, 1, 1], [], []>} : vector<256x16xf32>, vector<16x16xf32>, vector<256x16xf32> -> vector<256x16xf32>
    %c0_17 = arith.constant 0 : index
    %c0_18 = arith.constant 0 : index
    %21 = vector.load %arg7[%c0_17, %c0_18] : memref<1x16xf32, #tpu.memory_space<vmem>>, vector<1x16xf32>
    %22 = vector.broadcast %21 : vector<1x16xf32> to vector<256x16xf32>
    %23 = arith.addf %20, %22 : vector<256x16xf32>
    %cst_19 = arith.constant 0.000000e+00 : f32
    %24 = vector.broadcast %cst_19 : f32 to vector<256x16xf32>
    %25 = arith.maximumf %23, %24 : vector<256x16xf32>
    %c0_20 = arith.constant 0 : index
    %c0_21 = arith.constant 0 : index
    %26 = vector.load %arg8[%c0_20, %c0_21] : memref<16x16xf32, #tpu.memory_space<vmem>>, vector<16x16xf32>
    %cst_22 = arith.constant dense<0.000000e+00> : vector<256x16xf32>
    %27 = tpu.matmul %25, %26, %cst_22 {dimension_numbers = #tpu.dot_dimension_numbers<[1], [0], [0], [1], [0, 0, 1, 1], [], []>} : vector<256x16xf32>, vector<16x16xf32>, vector<256x16xf32> -> vector<256x16xf32>
    %c0_23 = arith.constant 0 : index
    %c0_24 = arith.constant 0 : index
    %28 = vector.load %arg9[%c0_23, %c0_24] : memref<1x16xf32, #tpu.memory_space<vmem>>, vector<1x16xf32>
    %29 = vector.broadcast %28 : vector<1x16xf32> to vector<256x16xf32>
    %30 = arith.addf %27, %29 : vector<256x16xf32>
    %cst_25 = arith.constant 0.000000e+00 : f32
    %31 = vector.broadcast %cst_25 : f32 to vector<256x16xf32>
    %32 = arith.maximumf %30, %31 : vector<256x16xf32>
    %33 = vector.extract_strided_slice %32 {offsets = [0, 0], sizes = [32, 16], strides = [1, 1]} : vector<256x16xf32> to vector<32x16xf32>
    %34 = vector.extract_strided_slice %32 {offsets = [32, 0], sizes = [32, 16], strides = [1, 1]} : vector<256x16xf32> to vector<32x16xf32>
    %35 = arith.maximumf %33, %34 : vector<32x16xf32>
    %36 = vector.extract_strided_slice %32 {offsets = [64, 0], sizes = [32, 16], strides = [1, 1]} : vector<256x16xf32> to vector<32x16xf32>
    %37 = arith.maximumf %35, %36 : vector<32x16xf32>
    %38 = vector.extract_strided_slice %32 {offsets = [96, 0], sizes = [32, 16], strides = [1, 1]} : vector<256x16xf32> to vector<32x16xf32>
    %39 = arith.maximumf %37, %38 : vector<32x16xf32>
    %40 = vector.extract_strided_slice %32 {offsets = [128, 0], sizes = [32, 16], strides = [1, 1]} : vector<256x16xf32> to vector<32x16xf32>
    %41 = arith.maximumf %39, %40 : vector<32x16xf32>
    %42 = vector.extract_strided_slice %32 {offsets = [160, 0], sizes = [32, 16], strides = [1, 1]} : vector<256x16xf32> to vector<32x16xf32>
    %43 = arith.maximumf %41, %42 : vector<32x16xf32>
    %44 = vector.extract_strided_slice %32 {offsets = [192, 0], sizes = [32, 16], strides = [1, 1]} : vector<256x16xf32> to vector<32x16xf32>
    %45 = arith.maximumf %43, %44 : vector<32x16xf32>
    %46 = vector.extract_strided_slice %32 {offsets = [224, 0], sizes = [32, 16], strides = [1, 1]} : vector<256x16xf32> to vector<32x16xf32>
    %47 = arith.maximumf %45, %46 : vector<32x16xf32>
    %c0_26 = arith.constant 0 : index
    %c0_27 = arith.constant 0 : index
    %48 = vector.load %arg10[%c0_26, %c0_27] : memref<16x16xf32, #tpu.memory_space<vmem>>, vector<16x16xf32>
    %cst_28 = arith.constant dense<0.000000e+00> : vector<32x16xf32>
    %49 = tpu.matmul %47, %48, %cst_28 {dimension_numbers = #tpu.dot_dimension_numbers<[1], [0], [0], [1], [0, 0, 1, 1], [], []>} : vector<32x16xf32>, vector<16x16xf32>, vector<32x16xf32> -> vector<32x16xf32>
    %c0_29 = arith.constant 0 : index
    %c0_30 = arith.constant 0 : index
    %50 = vector.load %arg11[%c0_29, %c0_30] : memref<1x16xf32, #tpu.memory_space<vmem>>, vector<1x16xf32>
    %51 = vector.broadcast %50 : vector<1x16xf32> to vector<32x16xf32>
    %52 = arith.addf %49, %51 : vector<32x16xf32>
    %cst_31 = arith.constant 0.000000e+00 : f32
    %53 = vector.broadcast %cst_31 : f32 to vector<32x16xf32>
    %54 = arith.maximumf %52, %53 : vector<32x16xf32>
    %c0_32 = arith.constant 0 : index
    %c0_33 = arith.constant 0 : index
    %55 = vector.load %arg12[%c0_32, %c0_33] : memref<32x16xf32, #tpu.memory_space<vmem>>, vector<32x16xf32>
    tpu.vector_store %arg12[%c0_32, %c0_33], %54 {strides = array<i32>} : memref<32x16xf32, #tpu.memory_space<vmem>>, vector<32x16xf32>,
    return
  }
}

module attributes {stable_mosaic.version = 11 : i64} {
  func.func @_sa_conv_kernel(%arg0: memref<128x1xi32, #tpu.memory_space<vmem>>, %arg1: memref<128x4xf32, #tpu.memory_space<vmem>>, %arg2: memref<32x16xf32, #tpu.memory_space<vmem>>, %arg3: memref<16x16xf32, #tpu.memory_space<vmem>>, %arg4: memref<4x16xf32, #tpu.memory_space<vmem>>, %arg5: memref<1x16xf32, #tpu.memory_space<vmem>>, %arg6: memref<16x16xf32, #tpu.memory_space<vmem>>, %arg7: memref<1x16xf32, #tpu.memory_space<vmem>>, %arg8: memref<16x16xf32, #tpu.memory_space<vmem>>, %arg9: memref<1x16xf32, #tpu.memory_space<vmem>>, %arg10: memref<16x16xf32, #tpu.memory_space<vmem>>, %arg11: memref<1x16xf32, #tpu.memory_space<vmem>>, %arg12: memref<16x16xf32, #tpu.memory_space<vmem>>) attributes {dimension_semantics = [], scalar_prefetch = 0 : i64, scratch_operands = 0 : i64, tpu.core_type = #tpu.core_type<tc>} {
    %0 = tpu.iota {dimensions = array<i32: 1>} : vector<128x32xi32>
    %c0 = arith.constant 0 : index
    %c0_0 = arith.constant 0 : index
    %1 = vector.load %arg0[%c0, %c0_0] : memref<128x1xi32, #tpu.memory_space<vmem>>, vector<128x1xi32>
    %2 = vector.broadcast %1 : vector<128x1xi32> to vector<128x32xi32>
    %3 = arith.cmpi eq, %0, %2 : vector<128x32xi32>
    %4 = arith.extui %3 : vector<128x32xi1> to vector<128x32xi32>
    %5 = arith.sitofp %4 : vector<128x32xi32> to vector<128x32xf32>
    %c0_1 = arith.constant 0 : index
    %c0_2 = arith.constant 0 : index
    %6 = vector.load %arg2[%c0_1, %c0_2] : memref<32x16xf32, #tpu.memory_space<vmem>>, vector<32x16xf32>
    %cst = arith.constant dense<0.000000e+00> : vector<128x16xf32>
    %7 = tpu.matmul %5, %6, %cst {dimension_numbers = #tpu.dot_dimension_numbers<[1], [0], [0], [1], [0, 0, 1, 1], [], []>} : vector<128x32xf32>, vector<32x16xf32>, vector<128x16xf32> -> vector<128x16xf32>
    %c0_3 = arith.constant 0 : index
    %c0_4 = arith.constant 0 : index
    %8 = vector.load %arg3[%c0_3, %c0_4] : memref<16x16xf32, #tpu.memory_space<vmem>>, vector<16x16xf32>
    %cst_5 = arith.constant dense<0.000000e+00> : vector<128x16xf32>
    %9 = tpu.matmul %7, %8, %cst_5 {dimension_numbers = #tpu.dot_dimension_numbers<[1], [0], [0], [1], [0, 0, 1, 1], [], []>} : vector<128x16xf32>, vector<16x16xf32>, vector<128x16xf32> -> vector<128x16xf32>
    %c0_6 = arith.constant 0 : index
    %c0_7 = arith.constant 0 : index
    %10 = vector.load %arg1[%c0_6, %c0_7] : memref<128x4xf32, #tpu.memory_space<vmem>>, vector<128x4xf32>
    %c0_8 = arith.constant 0 : index
    %c0_9 = arith.constant 0 : index
    %11 = vector.load %arg4[%c0_8, %c0_9] : memref<4x16xf32, #tpu.memory_space<vmem>>, vector<4x16xf32>
    %cst_10 = arith.constant dense<0.000000e+00> : vector<128x16xf32>
    %12 = tpu.matmul %10, %11, %cst_10 {dimension_numbers = #tpu.dot_dimension_numbers<[1], [0], [0], [1], [0, 0, 1, 1], [], []>} : vector<128x4xf32>, vector<4x16xf32>, vector<128x16xf32> -> vector<128x16xf32>
    %13 = arith.addf %9, %12 : vector<128x16xf32>
    %c0_11 = arith.constant 0 : index
    %c0_12 = arith.constant 0 : index
    %14 = vector.load %arg5[%c0_11, %c0_12] : memref<1x16xf32, #tpu.memory_space<vmem>>, vector<1x16xf32>
    %15 = vector.broadcast %14 : vector<1x16xf32> to vector<128x16xf32>
    %16 = arith.addf %13, %15 : vector<128x16xf32>
    %cst_13 = arith.constant 0.000000e+00 : f32
    %17 = vector.broadcast %cst_13 : f32 to vector<128x16xf32>
    %18 = arith.maximumf %16, %17 : vector<128x16xf32>
    %c0_14 = arith.constant 0 : index
    %c0_15 = arith.constant 0 : index
    %19 = vector.load %arg6[%c0_14, %c0_15] : memref<16x16xf32, #tpu.memory_space<vmem>>, vector<16x16xf32>
    %cst_16 = arith.constant dense<0.000000e+00> : vector<128x16xf32>
    %20 = tpu.matmul %18, %19, %cst_16 {dimension_numbers = #tpu.dot_dimension_numbers<[1], [0], [0], [1], [0, 0, 1, 1], [], []>} : vector<128x16xf32>, vector<16x16xf32>, vector<128x16xf32> -> vector<128x16xf32>
    %c0_17 = arith.constant 0 : index
    %c0_18 = arith.constant 0 : index
    %21 = vector.load %arg7[%c0_17, %c0_18] : memref<1x16xf32, #tpu.memory_space<vmem>>, vector<1x16xf32>
    %22 = vector.broadcast %21 : vector<1x16xf32> to vector<128x16xf32>
    %23 = arith.addf %20, %22 : vector<128x16xf32>
    %cst_19 = arith.constant 0.000000e+00 : f32
    %24 = vector.broadcast %cst_19 : f32 to vector<128x16xf32>
    %25 = arith.maximumf %23, %24 : vector<128x16xf32>
    %c0_20 = arith.constant 0 : index
    %c0_21 = arith.constant 0 : index
    %26 = vector.load %arg8[%c0_20, %c0_21] : memref<16x16xf32, #tpu.memory_space<vmem>>, vector<16x16xf32>
    %cst_22 = arith.constant dense<0.000000e+00> : vector<128x16xf32>
    %27 = tpu.matmul %25, %26, %cst_22 {dimension_numbers = #tpu.dot_dimension_numbers<[1], [0], [0], [1], [0, 0, 1, 1], [], []>} : vector<128x16xf32>, vector<16x16xf32>, vector<128x16xf32> -> vector<128x16xf32>
    %c0_23 = arith.constant 0 : index
    %c0_24 = arith.constant 0 : index
    %28 = vector.load %arg9[%c0_23, %c0_24] : memref<1x16xf32, #tpu.memory_space<vmem>>, vector<1x16xf32>
    %29 = vector.broadcast %28 : vector<1x16xf32> to vector<128x16xf32>
    %30 = arith.addf %27, %29 : vector<128x16xf32>
    %cst_25 = arith.constant 0.000000e+00 : f32
    %31 = vector.broadcast %cst_25 : f32 to vector<128x16xf32>
    %32 = arith.maximumf %30, %31 : vector<128x16xf32>
    %33 = vector.extract_strided_slice %32 {offsets = [0, 0], sizes = [16, 16], strides = [1, 1]} : vector<128x16xf32> to vector<16x16xf32>
    %34 = vector.extract_strided_slice %32 {offsets = [16, 0], sizes = [16, 16], strides = [1, 1]} : vector<128x16xf32> to vector<16x16xf32>
    %35 = arith.maximumf %33, %34 : vector<16x16xf32>
    %36 = vector.extract_strided_slice %32 {offsets = [32, 0], sizes = [16, 16], strides = [1, 1]} : vector<128x16xf32> to vector<16x16xf32>
    %37 = arith.maximumf %35, %36 : vector<16x16xf32>
    %38 = vector.extract_strided_slice %32 {offsets = [48, 0], sizes = [16, 16], strides = [1, 1]} : vector<128x16xf32> to vector<16x16xf32>
    %39 = arith.maximumf %37, %38 : vector<16x16xf32>
    %40 = vector.extract_strided_slice %32 {offsets = [64, 0], sizes = [16, 16], strides = [1, 1]} : vector<128x16xf32> to vector<16x16xf32>
    %41 = arith.maximumf %39, %40 : vector<16x16xf32>
    %42 = vector.extract_strided_slice %32 {offsets = [80, 0], sizes = [16, 16], strides = [1, 1]} : vector<128x16xf32> to vector<16x16xf32>
    %43 = arith.maximumf %41, %42 : vector<16x16xf32>
    %44 = vector.extract_strided_slice %32 {offsets = [96, 0], sizes = [16, 16], strides = [1, 1]} : vector<128x16xf32> to vector<16x16xf32>
    %45 = arith.maximumf %43, %44 : vector<16x16xf32>
    %46 = vector.extract_strided_slice %32 {offsets = [112, 0], sizes = [16, 16], strides = [1, 1]} : vector<128x16xf32> to vector<16x16xf32>
    %47 = arith.maximumf %45, %46 : vector<16x16xf32>
    %c0_26 = arith.constant 0 : index
    %c0_27 = arith.constant 0 : index
    %48 = vector.load %arg10[%c0_26, %c0_27] : memref<16x16xf32, #tpu.memory_space<vmem>>, vector<16x16xf32>
    %cst_28 = arith.constant dense<0.000000e+00> : vector<16x16xf32>
    %49 = tpu.matmul %47, %48, %cst_28 {dimension_numbers = #tpu.dot_dimension_numbers<[1], [0], [0], [1], [0, 0, 1, 1], [], []>} : vector<16x16xf32>, vector<16x16xf32>, vector<16x16xf32> -> vector<16x16xf32>
    %c0_29 = arith.constant 0 : index
    %c0_30 = arith.constant 0 : index
    %50 = vector.load %arg11[%c0_29, %c0_30] : memref<1x16xf32, #tpu.memory_space<vmem>>, vector<1x16xf32>
    %51 = vector.broadcast %50 : vector<1x16xf32> to vector<16x16xf32>
    %52 = arith.addf %49, %51 : vector<16x16xf32>
    %cst_31 = arith.constant 0.000000e+00 : f32
    %53 = vector.broadcast %cst_31 : f32 to vector<16x16xf32>
    %54 = arith.maximumf %52, %53 : vector<16x16xf32>
    %c0_32 = arith.constant 0 : index
    %c0_33 = arith.constant 0 : index
    %55 = vector.load %arg12[%c0_32, %c0_33] : memref<16x16xf32, #tpu.memory_space<vmem>>, vector<16x16xf32>
    tpu.vector_store %arg12[%c0_32, %c0_33], %54 {strides = array<i32>} : memref<16x16xf32, #tpu.memory_space<vmem>>, vector<16x16xf32>,
    return
  }
}

module attributes {stable_mosaic.version = 11 : i64} {
  func.func @_sa_conv_kernel(%arg0: memref<64x1xi32, #tpu.memory_space<vmem>>, %arg1: memref<64x4xf32, #tpu.memory_space<vmem>>, %arg2: memref<16x16xf32, #tpu.memory_space<vmem>>, %arg3: memref<16x16xf32, #tpu.memory_space<vmem>>, %arg4: memref<4x16xf32, #tpu.memory_space<vmem>>, %arg5: memref<1x16xf32, #tpu.memory_space<vmem>>, %arg6: memref<16x16xf32, #tpu.memory_space<vmem>>, %arg7: memref<1x16xf32, #tpu.memory_space<vmem>>, %arg8: memref<16x16xf32, #tpu.memory_space<vmem>>, %arg9: memref<1x16xf32, #tpu.memory_space<vmem>>, %arg10: memref<16x16xf32, #tpu.memory_space<vmem>>, %arg11: memref<1x16xf32, #tpu.memory_space<vmem>>, %arg12: memref<8x16xf32, #tpu.memory_space<vmem>>) attributes {dimension_semantics = [], scalar_prefetch = 0 : i64, scratch_operands = 0 : i64, tpu.core_type = #tpu.core_type<tc>} {
    %0 = tpu.iota {dimensions = array<i32: 1>} : vector<64x16xi32>
    %c0 = arith.constant 0 : index
    %c0_0 = arith.constant 0 : index
    %1 = vector.load %arg0[%c0, %c0_0] : memref<64x1xi32, #tpu.memory_space<vmem>>, vector<64x1xi32>
    %2 = vector.broadcast %1 : vector<64x1xi32> to vector<64x16xi32>
    %3 = arith.cmpi eq, %0, %2 : vector<64x16xi32>
    %4 = arith.extui %3 : vector<64x16xi1> to vector<64x16xi32>
    %5 = arith.sitofp %4 : vector<64x16xi32> to vector<64x16xf32>
    %c0_1 = arith.constant 0 : index
    %c0_2 = arith.constant 0 : index
    %6 = vector.load %arg2[%c0_1, %c0_2] : memref<16x16xf32, #tpu.memory_space<vmem>>, vector<16x16xf32>
    %cst = arith.constant dense<0.000000e+00> : vector<64x16xf32>
    %7 = tpu.matmul %5, %6, %cst {dimension_numbers = #tpu.dot_dimension_numbers<[1], [0], [0], [1], [0, 0, 1, 1], [], []>} : vector<64x16xf32>, vector<16x16xf32>, vector<64x16xf32> -> vector<64x16xf32>
    %c0_3 = arith.constant 0 : index
    %c0_4 = arith.constant 0 : index
    %8 = vector.load %arg3[%c0_3, %c0_4] : memref<16x16xf32, #tpu.memory_space<vmem>>, vector<16x16xf32>
    %cst_5 = arith.constant dense<0.000000e+00> : vector<64x16xf32>
    %9 = tpu.matmul %7, %8, %cst_5 {dimension_numbers = #tpu.dot_dimension_numbers<[1], [0], [0], [1], [0, 0, 1, 1], [], []>} : vector<64x16xf32>, vector<16x16xf32>, vector<64x16xf32> -> vector<64x16xf32>
    %c0_6 = arith.constant 0 : index
    %c0_7 = arith.constant 0 : index
    %10 = vector.load %arg1[%c0_6, %c0_7] : memref<64x4xf32, #tpu.memory_space<vmem>>, vector<64x4xf32>
    %c0_8 = arith.constant 0 : index
    %c0_9 = arith.constant 0 : index
    %11 = vector.load %arg4[%c0_8, %c0_9] : memref<4x16xf32, #tpu.memory_space<vmem>>, vector<4x16xf32>
    %cst_10 = arith.constant dense<0.000000e+00> : vector<64x16xf32>
    %12 = tpu.matmul %10, %11, %cst_10 {dimension_numbers = #tpu.dot_dimension_numbers<[1], [0], [0], [1], [0, 0, 1, 1], [], []>} : vector<64x4xf32>, vector<4x16xf32>, vector<64x16xf32> -> vector<64x16xf32>
    %13 = arith.addf %9, %12 : vector<64x16xf32>
    %c0_11 = arith.constant 0 : index
    %c0_12 = arith.constant 0 : index
    %14 = vector.load %arg5[%c0_11, %c0_12] : memref<1x16xf32, #tpu.memory_space<vmem>>, vector<1x16xf32>
    %15 = vector.broadcast %14 : vector<1x16xf32> to vector<64x16xf32>
    %16 = arith.addf %13, %15 : vector<64x16xf32>
    %cst_13 = arith.constant 0.000000e+00 : f32
    %17 = vector.broadcast %cst_13 : f32 to vector<64x16xf32>
    %18 = arith.maximumf %16, %17 : vector<64x16xf32>
    %c0_14 = arith.constant 0 : index
    %c0_15 = arith.constant 0 : index
    %19 = vector.load %arg6[%c0_14, %c0_15] : memref<16x16xf32, #tpu.memory_space<vmem>>, vector<16x16xf32>
    %cst_16 = arith.constant dense<0.000000e+00> : vector<64x16xf32>
    %20 = tpu.matmul %18, %19, %cst_16 {dimension_numbers = #tpu.dot_dimension_numbers<[1], [0], [0], [1], [0, 0, 1, 1], [], []>} : vector<64x16xf32>, vector<16x16xf32>, vector<64x16xf32> -> vector<64x16xf32>
    %c0_17 = arith.constant 0 : index
    %c0_18 = arith.constant 0 : index
    %21 = vector.load %arg7[%c0_17, %c0_18] : memref<1x16xf32, #tpu.memory_space<vmem>>, vector<1x16xf32>
    %22 = vector.broadcast %21 : vector<1x16xf32> to vector<64x16xf32>
    %23 = arith.addf %20, %22 : vector<64x16xf32>
    %cst_19 = arith.constant 0.000000e+00 : f32
    %24 = vector.broadcast %cst_19 : f32 to vector<64x16xf32>
    %25 = arith.maximumf %23, %24 : vector<64x16xf32>
    %c0_20 = arith.constant 0 : index
    %c0_21 = arith.constant 0 : index
    %26 = vector.load %arg8[%c0_20, %c0_21] : memref<16x16xf32, #tpu.memory_space<vmem>>, vector<16x16xf32>
    %cst_22 = arith.constant dense<0.000000e+00> : vector<64x16xf32>
    %27 = tpu.matmul %25, %26, %cst_22 {dimension_numbers = #tpu.dot_dimension_numbers<[1], [0], [0], [1], [0, 0, 1, 1], [], []>} : vector<64x16xf32>, vector<16x16xf32>, vector<64x16xf32> -> vector<64x16xf32>
    %c0_23 = arith.constant 0 : index
    %c0_24 = arith.constant 0 : index
    %28 = vector.load %arg9[%c0_23, %c0_24] : memref<1x16xf32, #tpu.memory_space<vmem>>, vector<1x16xf32>
    %29 = vector.broadcast %28 : vector<1x16xf32> to vector<64x16xf32>
    %30 = arith.addf %27, %29 : vector<64x16xf32>
    %cst_25 = arith.constant 0.000000e+00 : f32
    %31 = vector.broadcast %cst_25 : f32 to vector<64x16xf32>
    %32 = arith.maximumf %30, %31 : vector<64x16xf32>
    %33 = vector.extract_strided_slice %32 {offsets = [0, 0], sizes = [8, 16], strides = [1, 1]} : vector<64x16xf32> to vector<8x16xf32>
    %34 = vector.extract_strided_slice %32 {offsets = [8, 0], sizes = [8, 16], strides = [1, 1]} : vector<64x16xf32> to vector<8x16xf32>
    %35 = arith.maximumf %33, %34 : vector<8x16xf32>
    %36 = vector.extract_strided_slice %32 {offsets = [16, 0], sizes = [8, 16], strides = [1, 1]} : vector<64x16xf32> to vector<8x16xf32>
    %37 = arith.maximumf %35, %36 : vector<8x16xf32>
    %38 = vector.extract_strided_slice %32 {offsets = [24, 0], sizes = [8, 16], strides = [1, 1]} : vector<64x16xf32> to vector<8x16xf32>
    %39 = arith.maximumf %37, %38 : vector<8x16xf32>
    %40 = vector.extract_strided_slice %32 {offsets = [32, 0], sizes = [8, 16], strides = [1, 1]} : vector<64x16xf32> to vector<8x16xf32>
    %41 = arith.maximumf %39, %40 : vector<8x16xf32>
    %42 = vector.extract_strided_slice %32 {offsets = [40, 0], sizes = [8, 16], strides = [1, 1]} : vector<64x16xf32> to vector<8x16xf32>
    %43 = arith.maximumf %41, %42 : vector<8x16xf32>
    %44 = vector.extract_strided_slice %32 {offsets = [48, 0], sizes = [8, 16], strides = [1, 1]} : vector<64x16xf32> to vector<8x16xf32>
    %45 = arith.maximumf %43, %44 : vector<8x16xf32>
    %46 = vector.extract_strided_slice %32 {offsets = [56, 0], sizes = [8, 16], strides = [1, 1]} : vector<64x16xf32> to vector<8x16xf32>
    %47 = arith.maximumf %45, %46 : vector<8x16xf32>
    %c0_26 = arith.constant 0 : index
    %c0_27 = arith.constant 0 : index
    %48 = vector.load %arg10[%c0_26, %c0_27] : memref<16x16xf32, #tpu.memory_space<vmem>>, vector<16x16xf32>
    %cst_28 = arith.constant dense<0.000000e+00> : vector<8x16xf32>
    %49 = tpu.matmul %47, %48, %cst_28 {dimension_numbers = #tpu.dot_dimension_numbers<[1], [0], [0], [1], [0, 0, 1, 1], [], []>} : vector<8x16xf32>, vector<16x16xf32>, vector<8x16xf32> -> vector<8x16xf32>
    %c0_29 = arith.constant 0 : index
    %c0_30 = arith.constant 0 : index
    %50 = vector.load %arg11[%c0_29, %c0_30] : memref<1x16xf32, #tpu.memory_space<vmem>>, vector<1x16xf32>
    %51 = vector.broadcast %50 : vector<1x16xf32> to vector<8x16xf32>
    %52 = arith.addf %49, %51 : vector<8x16xf32>
    %cst_31 = arith.constant 0.000000e+00 : f32
    %53 = vector.broadcast %cst_31 : f32 to vector<8x16xf32>
    %54 = arith.maximumf %52, %53 : vector<8x16xf32>
    %c0_32 = arith.constant 0 : index
    %c0_33 = arith.constant 0 : index
    %55 = vector.load %arg12[%c0_32, %c0_33] : memref<8x16xf32, #tpu.memory_space<vmem>>, vector<8x16xf32>
    tpu.vector_store %arg12[%c0_32, %c0_33], %54 {strides = array<i32>} : memref<8x16xf32, #tpu.memory_space<vmem>>, vector<8x16xf32>,
    return
  }
}

module attributes {stable_mosaic.version = 11 : i64} {
  func.func @_fp_kernel(%arg0: memref<16x3xi32, #tpu.memory_space<vmem>>, %arg1: memref<16x3xf32, #tpu.memory_space<vmem>>, %arg2: memref<8x16xf32, #tpu.memory_space<vmem>>, %arg3: memref<16x16xf32, #tpu.memory_space<vmem>>, %arg4: memref<16x32xf32, #tpu.memory_space<vmem>>, %arg5: memref<16x32xf32, #tpu.memory_space<vmem>>, %arg6: memref<1x32xf32, #tpu.memory_space<vmem>>, %arg7: memref<1x32xf32, #tpu.memory_space<vmem>>, %arg8: memref<32x16xf32, #tpu.memory_space<vmem>>, %arg9: memref<1x16xf32, #tpu.memory_space<vmem>>, %arg10: memref<1x16xf32, #tpu.memory_space<vmem>>, %arg11: memref<16x16xf32, #tpu.memory_space<vmem>>) attributes {dimension_semantics = [], scalar_prefetch = 0 : i64, scratch_operands = 0 : i64, tpu.core_type = #tpu.core_type<tc>} {
    %0 = tpu.iota {dimensions = array<i32: 1>} : vector<16x8xi32>
    %c0 = arith.constant 0 : index
    %c0_0 = arith.constant 0 : index
    %1 = vector.load %arg0[%c0, %c0_0] : memref<16x3xi32, #tpu.memory_space<vmem>>, vector<16x3xi32>
    %c0_1 = arith.constant 0 : index
    %c0_2 = arith.constant 0 : index
    %2 = vector.load %arg1[%c0_1, %c0_2] : memref<16x3xf32, #tpu.memory_space<vmem>>, vector<16x3xf32>
    %cst = arith.constant 0.000000e+00 : f32
    %3 = vector.broadcast %cst : f32 to vector<16x8xf32>
    %4 = vector.extract_strided_slice %1 {offsets = [0, 0], sizes = [16, 1], strides = [1, 1]} : vector<16x3xi32> to vector<16x1xi32>
    %5 = vector.broadcast %4 : vector<16x1xi32> to vector<16x8xi32>
    %6 = arith.cmpi eq, %0, %5 : vector<16x8xi32>
    %7 = vector.extract_strided_slice %2 {offsets = [0, 0], sizes = [16, 1], strides = [1, 1]} : vector<16x3xf32> to vector<16x1xf32>
    %cst_3 = arith.constant 0.000000e+00 : f32
    %8 = vector.shape_cast %7 : vector<16x1xf32> to vector<16x1xf32>
    %9 = vector.broadcast %8 : vector<16x1xf32> to vector<16x8xf32>
    %10 = vector.broadcast %cst_3 : f32 to vector<16x8xf32>
    %11 = arith.select %6, %9, %10 : vector<16x8xi1>, vector<16x8xf32>
    %12 = arith.addf %3, %11 : vector<16x8xf32>
    %13 = vector.extract_strided_slice %1 {offsets = [0, 1], sizes = [16, 1], strides = [1, 1]} : vector<16x3xi32> to vector<16x1xi32>
    %14 = vector.broadcast %13 : vector<16x1xi32> to vector<16x8xi32>
    %15 = arith.cmpi eq, %0, %14 : vector<16x8xi32>
    %16 = vector.extract_strided_slice %2 {offsets = [0, 1], sizes = [16, 1], strides = [1, 1]} : vector<16x3xf32> to vector<16x1xf32>
    %cst_4 = arith.constant 0.000000e+00 : f32
    %17 = vector.shape_cast %16 : vector<16x1xf32> to vector<16x1xf32>
    %18 = vector.broadcast %17 : vector<16x1xf32> to vector<16x8xf32>
    %19 = vector.broadcast %cst_4 : f32 to vector<16x8xf32>
    %20 = arith.select %15, %18, %19 : vector<16x8xi1>, vector<16x8xf32>
    %21 = arith.addf %12, %20 : vector<16x8xf32>
    %22 = vector.extract_strided_slice %1 {offsets = [0, 2], sizes = [16, 1], strides = [1, 1]} : vector<16x3xi32> to vector<16x1xi32>
    %23 = vector.broadcast %22 : vector<16x1xi32> to vector<16x8xi32>
    %24 = arith.cmpi eq, %0, %23 : vector<16x8xi32>
    %25 = vector.extract_strided_slice %2 {offsets = [0, 2], sizes = [16, 1], strides = [1, 1]} : vector<16x3xf32> to vector<16x1xf32>
    %cst_5 = arith.constant 0.000000e+00 : f32
    %26 = vector.shape_cast %25 : vector<16x1xf32> to vector<16x1xf32>
    %27 = vector.broadcast %26 : vector<16x1xf32> to vector<16x8xf32>
    %28 = vector.broadcast %cst_5 : f32 to vector<16x8xf32>
    %29 = arith.select %24, %27, %28 : vector<16x8xi1>, vector<16x8xf32>
    %30 = arith.addf %21, %29 : vector<16x8xf32>
    %c0_6 = arith.constant 0 : index
    %c0_7 = arith.constant 0 : index
    %31 = vector.load %arg2[%c0_6, %c0_7] : memref<8x16xf32, #tpu.memory_space<vmem>>, vector<8x16xf32>
    %cst_8 = arith.constant dense<0.000000e+00> : vector<16x16xf32>
    %32 = tpu.matmul %30, %31, %cst_8 {dimension_numbers = #tpu.dot_dimension_numbers<[1], [0], [0], [1], [0, 0, 1, 1], [], []>} : vector<16x8xf32>, vector<8x16xf32>, vector<16x16xf32> -> vector<16x16xf32>
    %c0_9 = arith.constant 0 : index
    %c0_10 = arith.constant 0 : index
    %33 = vector.load %arg4[%c0_9, %c0_10] : memref<16x32xf32, #tpu.memory_space<vmem>>, vector<16x32xf32>
    %cst_11 = arith.constant dense<0.000000e+00> : vector<16x32xf32>
    %34 = tpu.matmul %32, %33, %cst_11 {dimension_numbers = #tpu.dot_dimension_numbers<[1], [0], [0], [1], [0, 0, 1, 1], [], []>} : vector<16x16xf32>, vector<16x32xf32>, vector<16x32xf32> -> vector<16x32xf32>
    %c0_12 = arith.constant 0 : index
    %c0_13 = arith.constant 0 : index
    %35 = vector.load %arg3[%c0_12, %c0_13] : memref<16x16xf32, #tpu.memory_space<vmem>>, vector<16x16xf32>
    %c0_14 = arith.constant 0 : index
    %c0_15 = arith.constant 0 : index
    %36 = vector.load %arg5[%c0_14, %c0_15] : memref<16x32xf32, #tpu.memory_space<vmem>>, vector<16x32xf32>
    %cst_16 = arith.constant dense<0.000000e+00> : vector<16x32xf32>
    %37 = tpu.matmul %35, %36, %cst_16 {dimension_numbers = #tpu.dot_dimension_numbers<[1], [0], [0], [1], [0, 0, 1, 1], [], []>} : vector<16x16xf32>, vector<16x32xf32>, vector<16x32xf32> -> vector<16x32xf32>
    %38 = arith.addf %34, %37 : vector<16x32xf32>
    %c0_17 = arith.constant 0 : index
    %c0_18 = arith.constant 0 : index
    %39 = vector.load %arg6[%c0_17, %c0_18] : memref<1x32xf32, #tpu.memory_space<vmem>>, vector<1x32xf32>
    %40 = vector.broadcast %39 : vector<1x32xf32> to vector<16x32xf32>
    %41 = arith.mulf %38, %40 : vector<16x32xf32>
    %c0_19 = arith.constant 0 : index
    %c0_20 = arith.constant 0 : index
    %42 = vector.load %arg7[%c0_19, %c0_20] : memref<1x32xf32, #tpu.memory_space<vmem>>, vector<1x32xf32>
    %43 = vector.broadcast %42 : vector<1x32xf32> to vector<16x32xf32>
    %44 = arith.addf %41, %43 : vector<16x32xf32>
    %cst_21 = arith.constant 0.000000e+00 : f32
    %45 = vector.broadcast %cst_21 : f32 to vector<16x32xf32>
    %46 = arith.maximumf %44, %45 : vector<16x32xf32>
    %c0_22 = arith.constant 0 : index
    %c0_23 = arith.constant 0 : index
    %47 = vector.load %arg8[%c0_22, %c0_23] : memref<32x16xf32, #tpu.memory_space<vmem>>, vector<32x16xf32>
    %cst_24 = arith.constant dense<0.000000e+00> : vector<16x16xf32>
    %48 = tpu.matmul %46, %47, %cst_24 {dimension_numbers = #tpu.dot_dimension_numbers<[1], [0], [0], [1], [0, 0, 1, 1], [], []>} : vector<16x32xf32>, vector<32x16xf32>, vector<16x16xf32> -> vector<16x16xf32>
    %c0_25 = arith.constant 0 : index
    %c0_26 = arith.constant 0 : index
    %49 = vector.load %arg9[%c0_25, %c0_26] : memref<1x16xf32, #tpu.memory_space<vmem>>, vector<1x16xf32>
    %50 = vector.broadcast %49 : vector<1x16xf32> to vector<16x16xf32>
    %51 = arith.mulf %48, %50 : vector<16x16xf32>
    %c0_27 = arith.constant 0 : index
    %c0_28 = arith.constant 0 : index
    %52 = vector.load %arg10[%c0_27, %c0_28] : memref<1x16xf32, #tpu.memory_space<vmem>>, vector<1x16xf32>
    %53 = vector.broadcast %52 : vector<1x16xf32> to vector<16x16xf32>
    %54 = arith.addf %51, %53 : vector<16x16xf32>
    %cst_29 = arith.constant 0.000000e+00 : f32
    %55 = vector.broadcast %cst_29 : f32 to vector<16x16xf32>
    %56 = arith.maximumf %54, %55 : vector<16x16xf32>
    %c0_30 = arith.constant 0 : index
    %c0_31 = arith.constant 0 : index
    %57 = vector.load %arg11[%c0_30, %c0_31] : memref<16x16xf32, #tpu.memory_space<vmem>>, vector<16x16xf32>
    tpu.vector_store %arg11[%c0_30, %c0_31], %56 {strides = array<i32>} : memref<16x16xf32, #tpu.memory_space<vmem>>, vector<16x16xf32>,
    return
  }
}

module attributes {stable_mosaic.version = 11 : i64} {
  func.func @_fp_kernel(%arg0: memref<32x3xi32, #tpu.memory_space<vmem>>, %arg1: memref<32x3xf32, #tpu.memory_space<vmem>>, %arg2: memref<16x16xf32, #tpu.memory_space<vmem>>, %arg3: memref<32x16xf32, #tpu.memory_space<vmem>>, %arg4: memref<16x32xf32, #tpu.memory_space<vmem>>, %arg5: memref<16x32xf32, #tpu.memory_space<vmem>>, %arg6: memref<1x32xf32, #tpu.memory_space<vmem>>, %arg7: memref<1x32xf32, #tpu.memory_space<vmem>>, %arg8: memref<32x16xf32, #tpu.memory_space<vmem>>, %arg9: memref<1x16xf32, #tpu.memory_space<vmem>>, %arg10: memref<1x16xf32, #tpu.memory_space<vmem>>, %arg11: memref<32x16xf32, #tpu.memory_space<vmem>>) attributes {dimension_semantics = [], scalar_prefetch = 0 : i64, scratch_operands = 0 : i64, tpu.core_type = #tpu.core_type<tc>} {
    %0 = tpu.iota {dimensions = array<i32: 1>} : vector<32x16xi32>
    %c0 = arith.constant 0 : index
    %c0_0 = arith.constant 0 : index
    %1 = vector.load %arg0[%c0, %c0_0] : memref<32x3xi32, #tpu.memory_space<vmem>>, vector<32x3xi32>
    %c0_1 = arith.constant 0 : index
    %c0_2 = arith.constant 0 : index
    %2 = vector.load %arg1[%c0_1, %c0_2] : memref<32x3xf32, #tpu.memory_space<vmem>>, vector<32x3xf32>
    %cst = arith.constant 0.000000e+00 : f32
    %3 = vector.broadcast %cst : f32 to vector<32x16xf32>
    %4 = vector.extract_strided_slice %1 {offsets = [0, 0], sizes = [32, 1], strides = [1, 1]} : vector<32x3xi32> to vector<32x1xi32>
    %5 = vector.broadcast %4 : vector<32x1xi32> to vector<32x16xi32>
    %6 = arith.cmpi eq, %0, %5 : vector<32x16xi32>
    %7 = vector.extract_strided_slice %2 {offsets = [0, 0], sizes = [32, 1], strides = [1, 1]} : vector<32x3xf32> to vector<32x1xf32>
    %cst_3 = arith.constant 0.000000e+00 : f32
    %8 = vector.shape_cast %7 : vector<32x1xf32> to vector<32x1xf32>
    %9 = vector.broadcast %8 : vector<32x1xf32> to vector<32x16xf32>
    %10 = vector.broadcast %cst_3 : f32 to vector<32x16xf32>
    %11 = arith.select %6, %9, %10 : vector<32x16xi1>, vector<32x16xf32>
    %12 = arith.addf %3, %11 : vector<32x16xf32>
    %13 = vector.extract_strided_slice %1 {offsets = [0, 1], sizes = [32, 1], strides = [1, 1]} : vector<32x3xi32> to vector<32x1xi32>
    %14 = vector.broadcast %13 : vector<32x1xi32> to vector<32x16xi32>
    %15 = arith.cmpi eq, %0, %14 : vector<32x16xi32>
    %16 = vector.extract_strided_slice %2 {offsets = [0, 1], sizes = [32, 1], strides = [1, 1]} : vector<32x3xf32> to vector<32x1xf32>
    %cst_4 = arith.constant 0.000000e+00 : f32
    %17 = vector.shape_cast %16 : vector<32x1xf32> to vector<32x1xf32>
    %18 = vector.broadcast %17 : vector<32x1xf32> to vector<32x16xf32>
    %19 = vector.broadcast %cst_4 : f32 to vector<32x16xf32>
    %20 = arith.select %15, %18, %19 : vector<32x16xi1>, vector<32x16xf32>
    %21 = arith.addf %12, %20 : vector<32x16xf32>
    %22 = vector.extract_strided_slice %1 {offsets = [0, 2], sizes = [32, 1], strides = [1, 1]} : vector<32x3xi32> to vector<32x1xi32>
    %23 = vector.broadcast %22 : vector<32x1xi32> to vector<32x16xi32>
    %24 = arith.cmpi eq, %0, %23 : vector<32x16xi32>
    %25 = vector.extract_strided_slice %2 {offsets = [0, 2], sizes = [32, 1], strides = [1, 1]} : vector<32x3xf32> to vector<32x1xf32>
    %cst_5 = arith.constant 0.000000e+00 : f32
    %26 = vector.shape_cast %25 : vector<32x1xf32> to vector<32x1xf32>
    %27 = vector.broadcast %26 : vector<32x1xf32> to vector<32x16xf32>
    %28 = vector.broadcast %cst_5 : f32 to vector<32x16xf32>
    %29 = arith.select %24, %27, %28 : vector<32x16xi1>, vector<32x16xf32>
    %30 = arith.addf %21, %29 : vector<32x16xf32>
    %c0_6 = arith.constant 0 : index
    %c0_7 = arith.constant 0 : index
    %31 = vector.load %arg2[%c0_6, %c0_7] : memref<16x16xf32, #tpu.memory_space<vmem>>, vector<16x16xf32>
    %cst_8 = arith.constant dense<0.000000e+00> : vector<32x16xf32>
    %32 = tpu.matmul %30, %31, %cst_8 {dimension_numbers = #tpu.dot_dimension_numbers<[1], [0], [0], [1], [0, 0, 1, 1], [], []>} : vector<32x16xf32>, vector<16x16xf32>, vector<32x16xf32> -> vector<32x16xf32>
    %c0_9 = arith.constant 0 : index
    %c0_10 = arith.constant 0 : index
    %33 = vector.load %arg4[%c0_9, %c0_10] : memref<16x32xf32, #tpu.memory_space<vmem>>, vector<16x32xf32>
    %cst_11 = arith.constant dense<0.000000e+00> : vector<32x32xf32>
    %34 = tpu.matmul %32, %33, %cst_11 {dimension_numbers = #tpu.dot_dimension_numbers<[1], [0], [0], [1], [0, 0, 1, 1], [], []>} : vector<32x16xf32>, vector<16x32xf32>, vector<32x32xf32> -> vector<32x32xf32>
    %c0_12 = arith.constant 0 : index
    %c0_13 = arith.constant 0 : index
    %35 = vector.load %arg3[%c0_12, %c0_13] : memref<32x16xf32, #tpu.memory_space<vmem>>, vector<32x16xf32>
    %c0_14 = arith.constant 0 : index
    %c0_15 = arith.constant 0 : index
    %36 = vector.load %arg5[%c0_14, %c0_15] : memref<16x32xf32, #tpu.memory_space<vmem>>, vector<16x32xf32>
    %cst_16 = arith.constant dense<0.000000e+00> : vector<32x32xf32>
    %37 = tpu.matmul %35, %36, %cst_16 {dimension_numbers = #tpu.dot_dimension_numbers<[1], [0], [0], [1], [0, 0, 1, 1], [], []>} : vector<32x16xf32>, vector<16x32xf32>, vector<32x32xf32> -> vector<32x32xf32>
    %38 = arith.addf %34, %37 : vector<32x32xf32>
    %c0_17 = arith.constant 0 : index
    %c0_18 = arith.constant 0 : index
    %39 = vector.load %arg6[%c0_17, %c0_18] : memref<1x32xf32, #tpu.memory_space<vmem>>, vector<1x32xf32>
    %40 = vector.broadcast %39 : vector<1x32xf32> to vector<32x32xf32>
    %41 = arith.mulf %38, %40 : vector<32x32xf32>
    %c0_19 = arith.constant 0 : index
    %c0_20 = arith.constant 0 : index
    %42 = vector.load %arg7[%c0_19, %c0_20] : memref<1x32xf32, #tpu.memory_space<vmem>>, vector<1x32xf32>
    %43 = vector.broadcast %42 : vector<1x32xf32> to vector<32x32xf32>
    %44 = arith.addf %41, %43 : vector<32x32xf32>
    %cst_21 = arith.constant 0.000000e+00 : f32
    %45 = vector.broadcast %cst_21 : f32 to vector<32x32xf32>
    %46 = arith.maximumf %44, %45 : vector<32x32xf32>
    %c0_22 = arith.constant 0 : index
    %c0_23 = arith.constant 0 : index
    %47 = vector.load %arg8[%c0_22, %c0_23] : memref<32x16xf32, #tpu.memory_space<vmem>>, vector<32x16xf32>
    %cst_24 = arith.constant dense<0.000000e+00> : vector<32x16xf32>
    %48 = tpu.matmul %46, %47, %cst_24 {dimension_numbers = #tpu.dot_dimension_numbers<[1], [0], [0], [1], [0, 0, 1, 1], [], []>} : vector<32x32xf32>, vector<32x16xf32>, vector<32x16xf32> -> vector<32x16xf32>
    %c0_25 = arith.constant 0 : index
    %c0_26 = arith.constant 0 : index
    %49 = vector.load %arg9[%c0_25, %c0_26] : memref<1x16xf32, #tpu.memory_space<vmem>>, vector<1x16xf32>
    %50 = vector.broadcast %49 : vector<1x16xf32> to vector<32x16xf32>
    %51 = arith.mulf %48, %50 : vector<32x16xf32>
    %c0_27 = arith.constant 0 : index
    %c0_28 = arith.constant 0 : index
    %52 = vector.load %arg10[%c0_27, %c0_28] : memref<1x16xf32, #tpu.memory_space<vmem>>, vector<1x16xf32>
    %53 = vector.broadcast %52 : vector<1x16xf32> to vector<32x16xf32>
    %54 = arith.addf %51, %53 : vector<32x16xf32>
    %cst_29 = arith.constant 0.000000e+00 : f32
    %55 = vector.broadcast %cst_29 : f32 to vector<32x16xf32>
    %56 = arith.maximumf %54, %55 : vector<32x16xf32>
    %c0_30 = arith.constant 0 : index
    %c0_31 = arith.constant 0 : index
    %57 = vector.load %arg11[%c0_30, %c0_31] : memref<32x16xf32, #tpu.memory_space<vmem>>, vector<32x16xf32>
    tpu.vector_store %arg11[%c0_30, %c0_31], %56 {strides = array<i32>} : memref<32x16xf32, #tpu.memory_space<vmem>>, vector<32x16xf32>,
    return
  }
}

module attributes {stable_mosaic.version = 11 : i64} {
  func.func @_mlp2_kernel(%arg0: memref<64x16xf32, #tpu.memory_space<vmem>>, %arg1: memref<16x16xf32, #tpu.memory_space<vmem>>, %arg2: memref<1x16xf32, #tpu.memory_space<vmem>>, %arg3: memref<1x16xf32, #tpu.memory_space<vmem>>, %arg4: memref<16x2xf32, #tpu.memory_space<vmem>>, %arg5: memref<1x2xf32, #tpu.memory_space<vmem>>, %arg6: memref<1x2xf32, #tpu.memory_space<vmem>>, %arg7: memref<64x2xf32, #tpu.memory_space<vmem>>) attributes {dimension_semantics = [], scalar_prefetch = 0 : i64, scratch_operands = 0 : i64, tpu.core_type = #tpu.core_type<tc>} {
    %c0 = arith.constant 0 : index
    %c0_0 = arith.constant 0 : index
    %0 = vector.load %arg0[%c0, %c0_0] : memref<64x16xf32, #tpu.memory_space<vmem>>, vector<64x16xf32>
    %c0_1 = arith.constant 0 : index
    %c0_2 = arith.constant 0 : index
    %1 = vector.load %arg1[%c0_1, %c0_2] : memref<16x16xf32, #tpu.memory_space<vmem>>, vector<16x16xf32>
    %cst = arith.constant dense<0.000000e+00> : vector<64x16xf32>
    %2 = tpu.matmul %0, %1, %cst {dimension_numbers = #tpu.dot_dimension_numbers<[1], [0], [0], [1], [0, 0, 1, 1], [], []>} : vector<64x16xf32>, vector<16x16xf32>, vector<64x16xf32> -> vector<64x16xf32>
    %c0_3 = arith.constant 0 : index
    %c0_4 = arith.constant 0 : index
    %3 = vector.load %arg2[%c0_3, %c0_4] : memref<1x16xf32, #tpu.memory_space<vmem>>, vector<1x16xf32>
    %4 = vector.broadcast %3 : vector<1x16xf32> to vector<64x16xf32>
    %5 = arith.mulf %2, %4 : vector<64x16xf32>
    %c0_5 = arith.constant 0 : index
    %c0_6 = arith.constant 0 : index
    %6 = vector.load %arg3[%c0_5, %c0_6] : memref<1x16xf32, #tpu.memory_space<vmem>>, vector<1x16xf32>
    %7 = vector.broadcast %6 : vector<1x16xf32> to vector<64x16xf32>
    %8 = arith.addf %5, %7 : vector<64x16xf32>
    %cst_7 = arith.constant 0.000000e+00 : f32
    %9 = vector.broadcast %cst_7 : f32 to vector<64x16xf32>
    %10 = arith.maximumf %8, %9 : vector<64x16xf32>
    %c0_8 = arith.constant 0 : index
    %c0_9 = arith.constant 0 : index
    %11 = vector.load %arg4[%c0_8, %c0_9] : memref<16x2xf32, #tpu.memory_space<vmem>>, vector<16x2xf32>
    %cst_10 = arith.constant dense<0.000000e+00> : vector<64x2xf32>
    %12 = tpu.matmul %10, %11, %cst_10 {dimension_numbers = #tpu.dot_dimension_numbers<[1], [0], [0], [1], [0, 0, 1, 1], [], []>} : vector<64x16xf32>, vector<16x2xf32>, vector<64x2xf32> -> vector<64x2xf32>
    %c0_11 = arith.constant 0 : index
    %c0_12 = arith.constant 0 : index
    %13 = vector.load %arg5[%c0_11, %c0_12] : memref<1x2xf32, #tpu.memory_space<vmem>>, vector<1x2xf32>
    %14 = vector.broadcast %13 : vector<1x2xf32> to vector<64x2xf32>
    %15 = arith.mulf %12, %14 : vector<64x2xf32>
    %c0_13 = arith.constant 0 : index
    %c0_14 = arith.constant 0 : index
    %16 = vector.load %arg6[%c0_13, %c0_14] : memref<1x2xf32, #tpu.memory_space<vmem>>, vector<1x2xf32>
    %17 = vector.broadcast %16 : vector<1x2xf32> to vector<64x2xf32>
    %18 = arith.addf %15, %17 : vector<64x2xf32>
    %c0_15 = arith.constant 0 : index
    %c0_16 = arith.constant 0 : index
    %19 = vector.load %arg7[%c0_15, %c0_16] : memref<64x2xf32, #tpu.memory_space<vmem>>, vector<64x2xf32>
    tpu.vector_store %arg7[%c0_15, %c0_16], %18 {strides = array<i32>} : memref<64x2xf32, #tpu.memory_space<vmem>>, vector<64x2xf32>,
    return
  }
}

module attributes {stable_mosaic.version = 11 : i64} {
  func.func @_fp_kernel(%arg0: memref<64x3xi32, #tpu.memory_space<vmem>>, %arg1: memref<64x3xf32, #tpu.memory_space<vmem>>, %arg2: memref<32x16xf32, #tpu.memory_space<vmem>>, %arg3: memref<64x16xf32, #tpu.memory_space<vmem>>, %arg4: memref<16x32xf32, #tpu.memory_space<vmem>>, %arg5: memref<16x32xf32, #tpu.memory_space<vmem>>, %arg6: memref<1x32xf32, #tpu.memory_space<vmem>>, %arg7: memref<1x32xf32, #tpu.memory_space<vmem>>, %arg8: memref<32x16xf32, #tpu.memory_space<vmem>>, %arg9: memref<1x16xf32, #tpu.memory_space<vmem>>, %arg10: memref<1x16xf32, #tpu.memory_space<vmem>>, %arg11: memref<64x16xf32, #tpu.memory_space<vmem>>) attributes {dimension_semantics = [], scalar_prefetch = 0 : i64, scratch_operands = 0 : i64, tpu.core_type = #tpu.core_type<tc>} {
    %0 = tpu.iota {dimensions = array<i32: 1>} : vector<64x32xi32>
    %c0 = arith.constant 0 : index
    %c0_0 = arith.constant 0 : index
    %1 = vector.load %arg0[%c0, %c0_0] : memref<64x3xi32, #tpu.memory_space<vmem>>, vector<64x3xi32>
    %c0_1 = arith.constant 0 : index
    %c0_2 = arith.constant 0 : index
    %2 = vector.load %arg1[%c0_1, %c0_2] : memref<64x3xf32, #tpu.memory_space<vmem>>, vector<64x3xf32>
    %cst = arith.constant 0.000000e+00 : f32
    %3 = vector.broadcast %cst : f32 to vector<64x32xf32>
    %4 = vector.extract_strided_slice %1 {offsets = [0, 0], sizes = [64, 1], strides = [1, 1]} : vector<64x3xi32> to vector<64x1xi32>
    %5 = vector.broadcast %4 : vector<64x1xi32> to vector<64x32xi32>
    %6 = arith.cmpi eq, %0, %5 : vector<64x32xi32>
    %7 = vector.extract_strided_slice %2 {offsets = [0, 0], sizes = [64, 1], strides = [1, 1]} : vector<64x3xf32> to vector<64x1xf32>
    %cst_3 = arith.constant 0.000000e+00 : f32
    %8 = vector.shape_cast %7 : vector<64x1xf32> to vector<64x1xf32>
    %9 = vector.broadcast %8 : vector<64x1xf32> to vector<64x32xf32>
    %10 = vector.broadcast %cst_3 : f32 to vector<64x32xf32>
    %11 = arith.select %6, %9, %10 : vector<64x32xi1>, vector<64x32xf32>
    %12 = arith.addf %3, %11 : vector<64x32xf32>
    %13 = vector.extract_strided_slice %1 {offsets = [0, 1], sizes = [64, 1], strides = [1, 1]} : vector<64x3xi32> to vector<64x1xi32>
    %14 = vector.broadcast %13 : vector<64x1xi32> to vector<64x32xi32>
    %15 = arith.cmpi eq, %0, %14 : vector<64x32xi32>
    %16 = vector.extract_strided_slice %2 {offsets = [0, 1], sizes = [64, 1], strides = [1, 1]} : vector<64x3xf32> to vector<64x1xf32>
    %cst_4 = arith.constant 0.000000e+00 : f32
    %17 = vector.shape_cast %16 : vector<64x1xf32> to vector<64x1xf32>
    %18 = vector.broadcast %17 : vector<64x1xf32> to vector<64x32xf32>
    %19 = vector.broadcast %cst_4 : f32 to vector<64x32xf32>
    %20 = arith.select %15, %18, %19 : vector<64x32xi1>, vector<64x32xf32>
    %21 = arith.addf %12, %20 : vector<64x32xf32>
    %22 = vector.extract_strided_slice %1 {offsets = [0, 2], sizes = [64, 1], strides = [1, 1]} : vector<64x3xi32> to vector<64x1xi32>
    %23 = vector.broadcast %22 : vector<64x1xi32> to vector<64x32xi32>
    %24 = arith.cmpi eq, %0, %23 : vector<64x32xi32>
    %25 = vector.extract_strided_slice %2 {offsets = [0, 2], sizes = [64, 1], strides = [1, 1]} : vector<64x3xf32> to vector<64x1xf32>
    %cst_5 = arith.constant 0.000000e+00 : f32
    %26 = vector.shape_cast %25 : vector<64x1xf32> to vector<64x1xf32>
    %27 = vector.broadcast %26 : vector<64x1xf32> to vector<64x32xf32>
    %28 = vector.broadcast %cst_5 : f32 to vector<64x32xf32>
    %29 = arith.select %24, %27, %28 : vector<64x32xi1>, vector<64x32xf32>
    %30 = arith.addf %21, %29 : vector<64x32xf32>
    %c0_6 = arith.constant 0 : index
    %c0_7 = arith.constant 0 : index
    %31 = vector.load %arg2[%c0_6, %c0_7] : memref<32x16xf32, #tpu.memory_space<vmem>>, vector<32x16xf32>
    %cst_8 = arith.constant dense<0.000000e+00> : vector<64x16xf32>
    %32 = tpu.matmul %30, %31, %cst_8 {dimension_numbers = #tpu.dot_dimension_numbers<[1], [0], [0], [1], [0, 0, 1, 1], [], []>} : vector<64x32xf32>, vector<32x16xf32>, vector<64x16xf32> -> vector<64x16xf32>
    %c0_9 = arith.constant 0 : index
    %c0_10 = arith.constant 0 : index
    %33 = vector.load %arg4[%c0_9, %c0_10] : memref<16x32xf32, #tpu.memory_space<vmem>>, vector<16x32xf32>
    %cst_11 = arith.constant dense<0.000000e+00> : vector<64x32xf32>
    %34 = tpu.matmul %32, %33, %cst_11 {dimension_numbers = #tpu.dot_dimension_numbers<[1], [0], [0], [1], [0, 0, 1, 1], [], []>} : vector<64x16xf32>, vector<16x32xf32>, vector<64x32xf32> -> vector<64x32xf32>
    %c0_12 = arith.constant 0 : index
    %c0_13 = arith.constant 0 : index
    %35 = vector.load %arg3[%c0_12, %c0_13] : memref<64x16xf32, #tpu.memory_space<vmem>>, vector<64x16xf32>
    %c0_14 = arith.constant 0 : index
    %c0_15 = arith.constant 0 : index
    %36 = vector.load %arg5[%c0_14, %c0_15] : memref<16x32xf32, #tpu.memory_space<vmem>>, vector<16x32xf32>
    %cst_16 = arith.constant dense<0.000000e+00> : vector<64x32xf32>
    %37 = tpu.matmul %35, %36, %cst_16 {dimension_numbers = #tpu.dot_dimension_numbers<[1], [0], [0], [1], [0, 0, 1, 1], [], []>} : vector<64x16xf32>, vector<16x32xf32>, vector<64x32xf32> -> vector<64x32xf32>
    %38 = arith.addf %34, %37 : vector<64x32xf32>
    %c0_17 = arith.constant 0 : index
    %c0_18 = arith.constant 0 : index
    %39 = vector.load %arg6[%c0_17, %c0_18] : memref<1x32xf32, #tpu.memory_space<vmem>>, vector<1x32xf32>
    %40 = vector.broadcast %39 : vector<1x32xf32> to vector<64x32xf32>
    %41 = arith.mulf %38, %40 : vector<64x32xf32>
    %c0_19 = arith.constant 0 : index
    %c0_20 = arith.constant 0 : index
    %42 = vector.load %arg7[%c0_19, %c0_20] : memref<1x32xf32, #tpu.memory_space<vmem>>, vector<1x32xf32>
    %43 = vector.broadcast %42 : vector<1x32xf32> to vector<64x32xf32>
    %44 = arith.addf %41, %43 : vector<64x32xf32>
    %cst_21 = arith.constant 0.000000e+00 : f32
    %45 = vector.broadcast %cst_21 : f32 to vector<64x32xf32>
    %46 = arith.maximumf %44, %45 : vector<64x32xf32>
    %c0_22 = arith.constant 0 : index
    %c0_23 = arith.constant 0 : index
    %47 = vector.load %arg8[%c0_22, %c0_23] : memref<32x16xf32, #tpu.memory_space<vmem>>, vector<32x16xf32>
    %cst_24 = arith.constant dense<0.000000e+00> : vector<64x16xf32>
    %48 = tpu.matmul %46, %47, %cst_24 {dimension_numbers = #tpu.dot_dimension_numbers<[1], [0], [0], [1], [0, 0, 1, 1], [], []>} : vector<64x32xf32>, vector<32x16xf32>, vector<64x16xf32> -> vector<64x16xf32>
    %c0_25 = arith.constant 0 : index
    %c0_26 = arith.constant 0 : index
    %49 = vector.load %arg9[%c0_25, %c0_26] : memref<1x16xf32, #tpu.memory_space<vmem>>, vector<1x16xf32>
    %50 = vector.broadcast %49 : vector<1x16xf32> to vector<64x16xf32>
    %51 = arith.mulf %48, %50 : vector<64x16xf32>
    %c0_27 = arith.constant 0 : index
    %c0_28 = arith.constant 0 : index
    %52 = vector.load %arg10[%c0_27, %c0_28] : memref<1x16xf32, #tpu.memory_space<vmem>>, vector<1x16xf32>
    %53 = vector.broadcast %52 : vector<1x16xf32> to vector<64x16xf32>
    %54 = arith.addf %51, %53 : vector<64x16xf32>
    %cst_29 = arith.constant 0.000000e+00 : f32
    %55 = vector.broadcast %cst_29 : f32 to vector<64x16xf32>
    %56 = arith.maximumf %54, %55 : vector<64x16xf32>
    %c0_30 = arith.constant 0 : index
    %c0_31 = arith.constant 0 : index
    %57 = vector.load %arg11[%c0_30, %c0_31] : memref<64x16xf32, #tpu.memory_space<vmem>>, vector<64x16xf32>
    tpu.vector_store %arg11[%c0_30, %c0_31], %56 {strides = array<i32>} : memref<64x16xf32, #tpu.memory_space<vmem>>, vector<64x16xf32>,
    return
  }
}

</mosaic_0001>

<llo_original>
// kernel: neg.6
$region0: #{neg.6}
  #allocation0 [shape = 's32[1]{0}', space=sflag, size = 0x4, scoped, tag = 'scoped memory for neg.6']
  %s0 = inlined_call_operand.vmem [shape: f32[32,64], index: 0, kind: input, shape index: {}]
  %s1 = inlined_call_operand.vmem [shape: f32[32,64], index: 1, kind: output, shape index: {}]
  %v2 = vld [vmem:[%s0] sm:$0xff]
  %3 = xla_tuple %v2
  %4 = xla_tuple %3
  %v5 = vxor.u32 %v2, 2147483648
  %6 = xla_tuple %v5
  %7 = vst [vmem:[%s1] sm:$0xff] %v5
  %s8 = scalar_lea.vmem %s0, 8
  %v9 = vld [vmem:[%s8] sm:$0xff]
  %10 = xla_tuple %v9
  %11 = xla_tuple %10
  %v12 = vxor.u32 %v9, 2147483648
  %13 = xla_tuple %v12
  %s14 = scalar_lea.vmem %s1, 8
  %15 = vst [vmem:[%s14] sm:$0xff] %v12
  %s16 = scalar_lea.vmem %s0, 16
  %v17 = vld [vmem:[%s16] sm:$0xff]
  %18 = xla_tuple %v17
  %19 = xla_tuple %18
  %v20 = vxor.u32 %v17, 2147483648
  %21 = xla_tuple %v20
  %s22 = scalar_lea.vmem %s1, 16
  %23 = vst [vmem:[%s22] sm:$0xff] %v20
  %s24 = scalar_lea.vmem %s0, 24
  %v25 = vld [vmem:[%s24] sm:$0xff]
  %26 = xla_tuple %v25
  %27 = xla_tuple %26
  %v28 = vxor.u32 %v25, 2147483648
  %29 = xla_tuple %v28
  %s30 = scalar_lea.vmem %s1, 24
  %31 = vst [vmem:[%s30] sm:$0xff] %v28

// kernel: model_forward.8
$region0: #{model_forward.8}
  #allocation0 [shape = 'u32[]', space=smem, size = 0x4, offset = 0x4, fixed_abs, tag = 'smem constant byte address 0x4 - core index']
  #allocation1 [shape = 'u32[72,128]{1,0:T(1,128)}', space=vmem, size = 0x9000, scoped, tag = 'internal scratch']
  %s0 = inlined_call_operand.vmem [shape: f32[64,8], index: 0, kind: input, shape index: {}]
  %s1 = inlined_call_operand.vmem [shape: f32[8,8], index: 1, kind: input, shape index: {}]
  %s2 = inlined_call_operand.vmem [shape: f32[1,8], index: 2, kind: input, shape index: {}]
  %s3 = inlined_call_operand.vmem [shape: f32[1,8], index: 3, kind: input, shape index: {}]
  %s4 = inlined_call_operand.vmem [shape: f32[8,16], index: 4, kind: input, shape index: {}]
  %s5 = inlined_call_operand.vmem [shape: f32[1,16], index: 5, kind: input, shape index: {}]
  %s6 = inlined_call_operand.vmem [shape: f32[1,16], index: 6, kind: input, shape index: {}]
  %s7 = inlined_call_operand.vmem [shape: f32[64,16], index: 7, kind: output, shape index: {}]
  %s8 = sld [smem:[#allocation0]]
  $region38: #{model_forward.8} parent=0
    _
  %s10 = ssub.s32 1, %s8
  %s11 = scalar_select 0, %s10, %s8
  // Predicated region
  $region2: #{model_forward.8} parent=0 // pred_check
    _
  $region3: #{model_forward.8} parent=0 // pred_check_branch
    %13 = sbr.rel (0) target = $region5
  $region4: #{model_forward.8} parent=0 // pred_region
    _
  $region5: #{model_forward.8} parent=0 // pred_fallthru
    _
  // Predicated region
  $region6: #{model_forward.8} parent=0 // pred_check
    _
  $region7: #{model_forward.8} parent=0 // pred_check_branch
    %15 = sbr.rel (0) target = $region9
  $region8: #{model_forward.8} parent=0 // pred_region
    _
  $region9: #{model_forward.8} parent=0 // pred_fallthru
    _
  // Predicated region
  $region10: #{model_forward.8} parent=0 // pred_check
    _
  $region11: #{model_forward.8} parent=0 // pred_check_branch
    %17 = sbr.rel (0) target = $region13
  $region12: #{model_forward.8} parent=0 // pred_region
    _
  $region13: #{model_forward.8} parent=0 // pred_fallthru
    _
  // Predicated region
  $region14: #{model_forward.8} parent=0 // pred_check
    _
  $region15: #{model_forward.8} parent=0 // pred_check_branch
    %19 = sbr.rel (0) target = $region17
  $region16: #{model_forward.8} parent=0 // pred_region
    _
  $region17: #{model_forward.8} parent=0 // pred_fallthru
    _
  // Predicated region
  $region18: #{model_forward.8} parent=0 // pred_check
    _
  $region19: #{model_forward.8} parent=0 // pred_check_branch
    %21 = sbr.rel (0) target = $region21
  $region20: #{model_forward.8} parent=0 // pred_region
    _
  $region21: #{model_forward.8} parent=0 // pred_fallthru
    _
  // Predicated region
  $region22: #{model_forward.8} parent=0 // pred_check
    _
  $region23: #{model_forward.8} parent=0 // pred_check_branch
    %23 = sbr.rel (0) target = $region25
  $region24: #{model_forward.8} parent=0 // pred_region
    _
  $region25: #{model_forward.8} parent=0 // pred_fallthru
    _
  // Predicated region
  $region26: #{model_forward.8} parent=0 // pred_check
    _
  $region27: #{model_forward.8} parent=0 // pred_check_branch
    %25 = sbr.rel (0) target = $region29
  $region28: #{model_forward.8} parent=0 // pred_region
    _
  $region29: #{model_forward.8} parent=0 // pred_fallthru
    _
  %v26 = vld [vmem:[%s0] sm:$0xff]
  %v27 = vld [vmem:[%s0 + $0x8] sm:$0xff]
  %v28 = vld [vmem:[%s0 + $0x10] sm:$0xff]
  %v29 = vld [vmem:[%s0 + $0x18] sm:$0xff]
  %v30 = vld [vmem:[%s0 + $0x20] sm:$0xff]
  %v31 = vld [vmem:[%s0 + $0x28] sm:$0xff]
  %v32 = vld [vmem:[%s0 + $0x30] sm:$0xff]
  %v33 = vld [vmem:[%s0 + $0x38] sm:$0xff]
  %v34 = vld [vmem:[%s1] sm:$0xff]
  %vm35 = vcmask 64512
  %v37 = vsel %vm35, %v26, 0
  %v40 = vsel %vm35, %v27, 0
  %v43 = vsel %vm35, %v28, 0
  %v46 = vsel %vm35, %v29, 0
  %v49 = vsel %vm35, %v30, 0
  %v52 = vsel %vm35, %v31, 0
  %v55 = vsel %vm35, %v32, 0
  %v58 = vsel %vm35, %v33, 0
  %60 = vmatpush.msra.mxu0 0.0
  %61 = vmatpush.msra.mxu0 0.0
  %62 = vmatpush.msra.mxu0 0.0
  %63 = vmatpush.msra.mxu0 0.0
  %64 = vmatpush.msra.mxu0 0.0
  %65 = vmatpush.msra.mxu0 0.0
  %66 = vmatpush.msra.mxu0 0.0
  %67 = vmatpush.msra.mxu0 0.0
  %68 = vmatpush.msra.mxu0 0.0
  %69 = vmatpush.msra.mxu0 0.0
  %70 = vmatpush.msra.mxu0 0.0
  %71 = vmatpush.msra.mxu0 0.0
  %72 = vmatpush.msra.mxu0 0.0
  %73 = vmatpush.msra.mxu0 0.0
  %74 = vmatpush.msra.mxu0 0.0
  %75 = vmatpush.msra.mxu0 %v34
  %76 = vmatmul.f32.gmra.mxu0 %v37
  %v77 = vpop.f32.mrf.mxu0
  %v78 = vadd.f32 0.0, %v77
  %79 = vmatmul.f32.gmra.mxu0 %v40
  %v80 = vpop.f32.mrf.mxu0
  %v81 = vadd.f32 0.0, %v80
  %82 = vmatmul.f32.gmra.mxu0 %v43
  %v83 = vpop.f32.mrf.mxu0
  %v84 = vadd.f32 0.0, %v83
  %85 = vmatmul.f32.gmra.mxu0 %v46
  %v86 = vpop.f32.mrf.mxu0
  %v87 = vadd.f32 0.0, %v86
  %88 = vmatmul.f32.gmra.mxu0 %v49
  %v89 = vpop.f32.mrf.mxu0
  %v90 = vadd.f32 0.0, %v89
  %91 = vmatmul.f32.gmra.mxu0 %v52
  %v92 = vpop.f32.mrf.mxu0
  %v93 = vadd.f32 0.0, %v92
  %94 = vmatmul.f32.gmra.mxu0 %v55
  %v95 = vpop.f32.mrf.mxu0
  %v96 = vadd.f32 0.0, %v95
  %97 = vmatmul.f32.gmra.mxu0 %v58
  %v98 = vpop.f32.mrf.mxu0
  %v99 = vadd.f32 0.0, %v98
  %100 = vdwg.mxu0
  %v101 = vld [vmem:[%s2] sm:$0x1]
  %v103 = vperm.slane %v101, 0
  %v105 = vmul.f32 %v78, %v103
  %v106 = vmul.f32 %v81, %v103
  %v107 = vmul.f32 %v84, %v103
  %v108 = vmul.f32 %v87, %v103
  %v109 = vmul.f32 %v90, %v103
  %v110 = vmul.f32 %v93, %v103
  %v111 = vmul.f32 %v96, %v103
  %v112 = vmul.f32 %v99, %v103
  %v113 = vld [vmem:[%s3] sm:$0x1]
  %v115 = vperm.slane %v113, 0
  %v117 = vadd.f32 %v105, %v115
  %v118 = vadd.f32 %v106, %v115
  %v119 = vadd.f32 %v107, %v115
  %v120 = vadd.f32 %v108, %v115
  %v121 = vadd.f32 %v109, %v115
  %v122 = vadd.f32 %v110, %v115
  %v123 = vadd.f32 %v111, %v115
  %v124 = vadd.f32 %v112, %v115
  %v125 = vmax.f32 %v117, 0.0
  %v126 = vmax.f32 %v118, 0.0
  %v127 = vmax.f32 %v119, 0.0
  %v128 = vmax.f32 %v120, 0.0
  %v129 = vmax.f32 %v121, 0.0
  %v130 = vmax.f32 %v122, 0.0
  %v131 = vmax.f32 %v123, 0.0
  %v132 = vmax.f32 %v124, 0.0
  %v133 = vld [vmem:[%s4] sm:$0xff]
  %v135 = vsel %vm35, %v125, 0
  %v138 = vsel %vm35, %v126, 0
  %v141 = vsel %vm35, %v127, 0
  %v144 = vsel %vm35, %v128, 0
  %v147 = vsel %vm35, %v129, 0
  %v150 = vsel %vm35, %v130, 0
  %v153 = vsel %vm35, %v131, 0
  %v156 = vsel %vm35, %v132, 0
  %158 = vmatpush.msra.mxu0 0.0
  %159 = vmatpush.msra.mxu0 0.0
  %160 = vmatpush.msra.mxu0 0.0
  %161 = vmatpush.msra.mxu0 0.0
  %162 = vmatpush.msra.mxu0 0.0
  %163 = vmatpush.msra.mxu0 0.0
  %164 = vmatpush.msra.mxu0 0.0
  %165 = vmatpush.msra.mxu0 0.0
  %166 = vmatpush.msra.mxu0 0.0
  %167 = vmatpush.msra.mxu0 0.0
  %168 = vmatpush.msra.mxu0 0.0
  %169 = vmatpush.msra.mxu0 0.0
  %170 = vmatpush.msra.mxu0 0.0
  %171 = vmatpush.msra.mxu0 0.0
  %172 = vmatpush.msra.mxu0 0.0
  %173 = vmatpush.msra.mxu0 %v133
  %174 = vmatmul.f32.gmra.mxu0 %v135
  %v175 = vpop.f32.mrf.mxu0
  %v176 = vadd.f32 0.0, %v175
  %177 = vmatmul.f32.gmra.mxu0 %v138
  %v178 = vpop.f32.mrf.mxu0
  %v179 = vadd.f32 0.0, %v178
  %180 = vmatmul.f32.gmra.mxu0 %v141
  %v181 = vpop.f32.mrf.mxu0
  %v182 = vadd.f32 0.0, %v181
  %183 = vmatmul.f32.gmra.mxu0 %v144
  %v184 = vpop.f32.mrf.mxu0
  %v185 = vadd.f32 0.0, %v184
  %186 = vmatmul.f32.gmra.mxu0 %v147
  %v187 = vpop.f32.mrf.mxu0
  %v188 = vadd.f32 0.0, %v187
  %189 = vmatmul.f32.gmra.mxu0 %v150
  %v190 = vpop.f32.mrf.mxu0
  %v191 = vadd.f32 0.0, %v190
  %192 = vmatmul.f32.gmra.mxu0 %v153
  %v193 = vpop.f32.mrf.mxu0
  %v194 = vadd.f32 0.0, %v193
  %195 = vmatmul.f32.gmra.mxu0 %v156
  %v196 = vpop.f32.mrf.mxu0
  %v197 = vadd.f32 0.0, %v196
  %198 = vdwg.mxu0
  %v199 = vld [vmem:[%s5] sm:$0x1]
  %v201 = vperm.slane %v199, 0
  %v203 = vmul.f32 %v176, %v201
  %v204 = vmul.f32 %v179, %v201
  %v205 = vmul.f32 %v182, %v201
  %v206 = vmul.f32 %v185, %v201
  %v207 = vmul.f32 %v188, %v201
  %v208 = vmul.f32 %v191, %v201
  %v209 = vmul.f32 %v194, %v201
  %v210 = vmul.f32 %v197, %v201
  %v211 = vld [vmem:[%s6] sm:$0x1]
  %v213 = vperm.slane %v211, 0
  %v215 = vadd.f32 %v203, %v213
  %v216 = vadd.f32 %v204, %v213
  %v217 = vadd.f32 %v205, %v213
  %v218 = vadd.f32 %v206, %v213
  %v219 = vadd.f32 %v207, %v213
  %v220 = vadd.f32 %v208, %v213
  %v221 = vadd.f32 %v209, %v213
  %v222 = vadd.f32 %v210, %v213
  %v223 = vmax.f32 %v215, 0.0
  %v224 = vmax.f32 %v216, 0.0
  %v225 = vmax.f32 %v217, 0.0
  %v226 = vmax.f32 %v218, 0.0
  %v227 = vmax.f32 %v219, 0.0
  %v228 = vmax.f32 %v220, 0.0
  %v229 = vmax.f32 %v221, 0.0
  %v230 = vmax.f32 %v222, 0.0
  %vm231 = vcmask 130048
  %232 = vst.msk [vmem:[%s7] sm:$0xff] %vm231, %v223
  %233 = vst.msk [vmem:[%s7 + $0x8] sm:$0xff] %vm231, %v224
  %234 = vst.msk [vmem:[%s7 + $0x10] sm:$0xff] %vm231, %v225
  %235 = vst.msk [vmem:[%s7 + $0x18] sm:$0xff] %vm231, %v226
  %236 = vst.msk [vmem:[%s7 + $0x20] sm:$0xff] %vm231, %v227
  %237 = vst.msk [vmem:[%s7 + $0x28] sm:$0xff] %vm231, %v228
  %238 = vst.msk [vmem:[%s7 + $0x30] sm:$0xff] %vm231, %v229
  %239 = vst.msk [vmem:[%s7 + $0x38] sm:$0xff] %vm231, %v230
  // Predicated region
  $region30: #{model_forward.8} parent=0 // pred_check
    _
  $region31: #{model_forward.8} parent=0 // pred_check_branch
    %241 = sbr.rel (0) target = $region33
  $region32: #{model_forward.8} parent=0 // pred_region
    _
  $region33: #{model_forward.8} parent=0 // pred_fallthru
    _
  // Predicated region
  $region34: #{model_forward.8} parent=0 // pred_check
    _
  $region35: #{model_forward.8} parent=0 // pred_check_branch
    %243 = sbr.rel (0) target = $region37
  $region36: #{model_forward.8} parent=0 // pred_region
    _
  $region37: #{model_forward.8} parent=0 // pred_fallthru
    _

// kernel: model_forward.9
$region0: #{model_forward.9}
  #allocation0 [shape = 'u32[]', space=smem, size = 0x4, offset = 0x4, fixed_abs, tag = 'smem constant byte address 0x4 - core index']
  #allocation1 [shape = 'u32[72,128]{1,0:T(1,128)}', space=vmem, size = 0x9000, scoped, tag = 'internal scratch']
  %s0 = inlined_call_operand.vmem [shape: s32[256,1], index: 0, kind: input, shape index: {}]
  %s1 = inlined_call_operand.vmem [shape: f32[256,4], index: 1, kind: input, shape index: {}]
  %s2 = inlined_call_operand.vmem [shape: f32[64,16], index: 2, kind: input, shape index: {}]
  %s3 = inlined_call_operand.vmem [shape: f32[16,16], index: 3, kind: input, shape index: {}]
  %s4 = inlined_call_operand.vmem [shape: f32[4,16], index: 4, kind: input, shape index: {}]
  %s5 = inlined_call_operand.vmem [shape: f32[1,16], index: 5, kind: input, shape index: {}]
  %s6 = inlined_call_operand.vmem [shape: f32[16,16], index: 6, kind: input, shape index: {}]
  %s7 = inlined_call_operand.vmem [shape: f32[1,16], index: 7, kind: input, shape index: {}]
  %s8 = inlined_call_operand.vmem [shape: f32[16,16], index: 8, kind: input, shape index: {}]
  %s9 = inlined_call_operand.vmem [shape: f32[1,16], index: 9, kind: input, shape index: {}]
  %s10 = inlined_call_operand.vmem [shape: f32[16,16], index: 10, kind: input, shape index: {}]
  %s11 = inlined_call_operand.vmem [shape: f32[1,16], index: 11, kind: input, shape index: {}]
  %s12 = inlined_call_operand.vmem [shape: f32[32,16], index: 12, kind: output, shape index: {}]
  %s13 = sld [smem:[#allocation0]]
  $region58: #{model_forward.9} parent=0
    _
  %s15 = ssub.s32 1, %s13
  %s16 = scalar_select 0, %s15, %s13
  // Predicated region
  $region2: #{model_forward.9} parent=0 // pred_check
    _
  $region3: #{model_forward.9} parent=0 // pred_check_branch
    %18 = sbr.rel (0) target = $region5
  $region4: #{model_forward.9} parent=0 // pred_region
    _
  $region5: #{model_forward.9} parent=0 // pred_fallthru
    _
  // Predicated region
  $region6: #{model_forward.9} parent=0 // pred_check
    _
  $region7: #{model_forward.9} parent=0 // pred_check_branch
    %20 = sbr.rel (0) target = $region9
  $region8: #{model_forward.9} parent=0 // pred_region
    _
  $region9: #{model_forward.9} parent=0 // pred_fallthru
    _
  // Predicated region
  $region10: #{model_forward.9} parent=0 // pred_check
    _
  $region11: #{model_forward.9} parent=0 // pred_check_branch
    %22 = sbr.rel (0) target = $region13
  $region12: #{model_forward.9} parent=0 // pred_region
    _
  $region13: #{model_forward.9} parent=0 // pred_fallthru
    _
  // Predicated region
  $region14: #{model_forward.9} parent=0 // pred_check
    _
  $region15: #{model_forward.9} parent=0 // pred_check_branch
    %24 = sbr.rel (0) target = $region17
  $region16: #{model_forward.9} parent=0 // pred_region
    _
  $region17: #{model_forward.9} parent=0 // pred_fallthru
    _
  // Predicated region
  $region18: #{model_forward.9} parent=0 // pred_check
    _
  $region19: #{model_forward.9} parent=0 // pred_check_branch
    %26 = sbr.rel (0) target = $region21
  $region20: #{model_forward.9} parent=0 // pred_region
    _
  $region21: #{model_forward.9} parent=0 // pred_fallthru
    _
  // Predicated region
  $region22: #{model_forward.9} parent=0 // pred_check
    _
  $region23: #{model_forward.9} parent=0 // pred_check_branch
    %28 = sbr.rel (0) target = $region25
  $region24: #{model_forward.9} parent=0 // pred_region
    _
  $region25: #{model_forward.9} parent=0 // pred_fallthru
    _
  // Predicated region
  $region26: #{model_forward.9} parent=0 // pred_check
    _
  $region27: #{model_forward.9} parent=0 // pred_check_branch
    %30 = sbr.rel (0) target = $region29
  $region28: #{model_forward.9} parent=0 // pred_region
    _
  $region29: #{model_forward.9} parent=0 // pred_fallthru
    _
  // Predicated region
  $region30: #{model_forward.9} parent=0 // pred_check
    _
  $region31: #{model_forward.9} parent=0 // pred_check_branch
    %32 = sbr.rel (0) target = $region33
  $region32: #{model_forward.9} parent=0 // pred_region
    _
  $region33: #{model_forward.9} parent=0 // pred_fallthru
    _
  // Predicated region
  $region34: #{model_forward.9} parent=0 // pred_check
    _
  $region35: #{model_forward.9} parent=0 // pred_check_branch
    %34 = sbr.rel (0) target = $region37
  $region36: #{model_forward.9} parent=0 // pred_region
    _
  $region37: #{model_forward.9} parent=0 // pred_fallthru
    _
  // Predicated region
  $region38: #{model_forward.9} parent=0 // pred_check
    _
  $region39: #{model_forward.9} parent=0 // pred_check_branch
    %36 = sbr.rel (0) target = $region41
  $region40: #{model_forward.9} parent=0 // pred_region
    _
  $region41: #{model_forward.9} parent=0 // pred_fallthru
    _
  // Predicated region
  $region42: #{model_forward.9} parent=0 // pred_check
    _
  $region43: #{model_forward.9} parent=0 // pred_check_branch
    %38 = sbr.rel (0) target = $region45
  $region44: #{model_forward.9} parent=0 // pred_region
    _
  $region45: #{model_forward.9} parent=0 // pred_fallthru
    _
  // Predicated region
  $region46: #{model_forward.9} parent=0 // pred_check
    _
  $region47: #{model_forward.9} parent=0 // pred_check_branch
    %40 = sbr.rel (0) target = $region49
  $region48: #{model_forward.9} parent=0 // pred_region
    _
  $region49: #{model_forward.9} parent=0 // pred_fallthru
    _
  %v41 = vlaneseq
  %v42 = vand.u32 %v41, 127
  %v43 = vld [vmem:[%s0] sm:$0xff]
  %v44 = vld [vmem:[%s0 + $0x8] sm:$0xff]
  %v45 = vld [vmem:[%s0 + $0x10] sm:$0xff]
  %v46 = vld [vmem:[%s0 + $0x18] sm:$0xff]
  %v47 = vld [vmem:[%s0 + $0x20] sm:$0xff]
  %v48 = vld [vmem:[%s0 + $0x28] sm:$0xff]
  %v49 = vld [vmem:[%s0 + $0x30] sm:$0xff]
  %v50 = vld [vmem:[%s0 + $0x38] sm:$0xff]
  %v51 = vld [vmem:[%s0 + $0x40] sm:$0xff]
  %v52 = vld [vmem:[%s0 + $0x48] sm:$0xff]
  %v53 = vld [vmem:[%s0 + $0x50] sm:$0xff]
  %v54 = vld [vmem:[%s0 + $0x58] sm:$0xff]
  %v55 = vld [vmem:[%s0 + $0x60] sm:$0xff]
  %v56 = vld [vmem:[%s0 + $0x68] sm:$0xff]
  %v57 = vld [vmem:[%s0 + $0x70] sm:$0xff]
  %v58 = vld [vmem:[%s0 + $0x78] sm:$0xff]
  %v59 = vld [vmem:[%s0 + $0x80] sm:$0xff]
  %v60 = vld [vmem:[%s0 + $0x88] sm:$0xff]
  %v61 = vld [vmem:[%s0 + $0x90] sm:$0xff]
  %v62 = vld [vmem:[%s0 + $0x98] sm:$0xff]
  %v63 = vld [vmem:[%s0 + $0xa0] sm:$0xff]
  %v64 = vld [vmem:[%s0 + $0xa8] sm:$0xff]
  %v65 = vld [vmem:[%s0 + $0xb0] sm:$0xff]
  %v66 = vld [vmem:[%s0 + $0xb8] sm:$0xff]
  %v67 = vld [vmem:[%s0 + $0xc0] sm:$0xff]
  %v68 = vld [vmem:[%s0 + $0xc8] sm:$0xff]
  %v69 = vld [vmem:[%s0 + $0xd0] sm:$0xff]
  %v70 = vld [vmem:[%s0 + $0xd8] sm:$0xff]
  %v71 = vld [vmem:[%s0 + $0xe0] sm:$0xff]
  %v72 = vld [vmem:[%s0 + $0xe8] sm:$0xff]
  %v73 = vld [vmem:[%s0 + $0xf0] sm:$0xff]
  %v74 = vld [vmem:[%s0 + $0xf8] sm:$0xff]
  %75 = vset.pattern.permute.xlu0 0
  %76 = vperm.xlu0 %75, %v43
  %v77 = vpop.permute.xlu0 %76
  %78 = vset.pattern.permute.xlu0 0
  %79 = vperm.xlu0 %78, %v44
  %v80 = vpop.permute.xlu0 %79
  %81 = vset.pattern.permute.xlu0 0
  %82 = vperm.xlu0 %81, %v45
  %v83 = vpop.permute.xlu0 %82
  %84 = vset.pattern.permute.xlu0 0
  %85 = vperm.xlu0 %84, %v46
  %v86 = vpop.permute.xlu0 %85
  %87 = vset.pattern.permute.xlu0 0
  %88 = vperm.xlu0 %87, %v47
  %v89 = vpop.permute.xlu0 %88
  %90 = vset.pattern.permute.xlu0 0
  %91 = vperm.xlu0 %90, %v48
  %v92 = vpop.permute.xlu0 %91
  %93 = vset.pattern.permute.xlu0 0
  %94 = vperm.xlu0 %93, %v49
  %v95 = vpop.permute.xlu0 %94
  %96 = vset.pattern.permute.xlu0 0
  %97 = vperm.xlu0 %96, %v50
  %v98 = vpop.permute.xlu0 %97
  %99 = vset.pattern.permute.xlu0 0
  %100 = vperm.xlu0 %99, %v51
  %v101 = vpop.permute.xlu0 %100
  %102 = vset.pattern.permute.xlu0 0
  %103 = vperm.xlu0 %102, %v52
  %v104 = vpop.permute.xlu0 %103
  %105 = vset.pattern.permute.xlu0 0
  %106 = vperm.xlu0 %105, %v53
  %v107 = vpop.permute.xlu0 %106
  %108 = vset.pattern.permute.xlu0 0
  %109 = vperm.xlu0 %108, %v54
  %v110 = vpop.permute.xlu0 %109
  %111 = vset.pattern.permute.xlu0 0
  %112 = vperm.xlu0 %111, %v55
  %v113 = vpop.permute.xlu0 %112
  %114 = vset.pattern.permute.xlu0 0
  %115 = vperm.xlu0 %114, %v56
  %v116 = vpop.permute.xlu0 %115
  %117 = vset.pattern.permute.xlu0 0
  %118 = vperm.xlu0 %117, %v57
  %v119 = vpop.permute.xlu0 %118
  %120 = vset.pattern.permute.xlu0 0
  %121 = vperm.xlu0 %120, %v58
  %v122 = vpop.permute.xlu0 %121
  %123 = vset.pattern.permute.xlu0 0
  %124 = vperm.xlu0 %123, %v59
  %v125 = vpop.permute.xlu0 %124
  %126 = vset.pattern.permute.xlu0 0
  %127 = vperm.xlu0 %126, %v60
  %v128 = vpop.permute.xlu0 %127
  %129 = vset.pattern.permute.xlu0 0
  %130 = vperm.xlu0 %129, %v61
  %v131 = vpop.permute.xlu0 %130
  %132 = vset.pattern.permute.xlu0 0
  %133 = vperm.xlu0 %132, %v62
  %v134 = vpop.permute.xlu0 %133
  %135 = vset.pattern.permute.xlu0 0
  %136 = vperm.xlu0 %135, %v63
  %v137 = vpop.permute.xlu0 %136
  %138 = vset.pattern.permute.xlu0 0
  %139 = vperm.xlu0 %138, %v64
  %v140 = vpop.permute.xlu0 %139
  %141 = vset.pattern.permute.xlu0 0
  %142 = vperm.xlu0 %141, %v65
  %v143 = vpop.permute.xlu0 %142
  %144 = vset.pattern.permute.xlu0 0
  %145 = vperm.xlu0 %144, %v66
  %v146 = vpop.permute.xlu0 %145
  %147 = vset.pattern.permute.xlu0 0
  %148 = vperm.xlu0 %147, %v67
  %v149 = vpop.permute.xlu0 %148
  %150 = vset.pattern.permute.xlu0 0
  %151 = vperm.xlu0 %150, %v68
  %v152 = vpop.permute.xlu0 %151
  %153 = vset.pattern.permute.xlu0 0
  %154 = vperm.xlu0 %153, %v69
  %v155 = vpop.permute.xlu0 %154
  %156 = vset.pattern.permute.xlu0 0
  %157 = vperm.xlu0 %156, %v70
  %v158 = vpop.permute.xlu0 %157
  %159 = vset.pattern.permute.xlu0 0
  %160 = vperm.xlu0 %159, %v71
  %v161 = vpop.permute.xlu0 %160
  %162 = vset.pattern.permute.xlu0 0
  %163 = vperm.xlu0 %162, %v72
  %v164 = vpop.permute.xlu0 %163
  %165 = vset.pattern.permute.xlu0 0
  %166 = vperm.xlu0 %165, %v73
  %v167 = vpop.permute.xlu0 %166
  %168 = vset.pattern.permute.xlu0 0
  %169 = vperm.xlu0 %168, %v74
  %v170 = vpop.permute.xlu0 %169
  %vm171 = vcmp.eq.s32.totalorder %v42, %v77
  %vm172 = vcmp.eq.s32.totalorder %v42, %v80
  %vm173 = vcmp.eq.s32.totalorder %v42, %v83
  %vm174 = vcmp.eq.s32.totalorder %v42, %v86
  %vm175 = vcmp.eq.s32.totalorder %v42, %v89
  %vm176 = vcmp.eq.s32.totalorder %v42, %v92
  %vm177 = vcmp.eq.s32.totalorder %v42, %v95
  %vm178 = vcmp.eq.s32.totalorder %v42, %v98
  %vm179 = vcmp.eq.s32.totalorder %v42, %v101
  %vm180 = vcmp.eq.s32.totalorder %v42, %v104
  %vm181 = vcmp.eq.s32.totalorder %v42, %v107
  %vm182 = vcmp.eq.s32.totalorder %v42, %v110
  %vm183 = vcmp.eq.s32.totalorder %v42, %v113
  %vm184 = vcmp.eq.s32.totalorder %v42, %v116
  %vm185 = vcmp.eq.s32.totalorder %v42, %v119
  %vm186 = vcmp.eq.s32.totalorder %v42, %v122
  %vm187 = vcmp.eq.s32.totalorder %v42, %v125
  %vm188 = vcmp.eq.s32.totalorder %v42, %v128
  %vm189 = vcmp.eq.s32.totalorder %v42, %v131
  %vm190 = vcmp.eq.s32.totalorder %v42, %v134
  %vm191 = vcmp.eq.s32.totalorder %v42, %v137
  %vm192 = vcmp.eq.s32.totalorder %v42, %v140
  %vm193 = vcmp.eq.s32.totalorder %v42, %v143
  %vm194 = vcmp.eq.s32.totalorder %v42, %v146
  %vm195 = vcmp.eq.s32.totalorder %v42, %v149
  %vm196 = vcmp.eq.s32.totalorder %v42, %v152
  %vm197 = vcmp.eq.s32.totalorder %v42, %v155
  %vm198 = vcmp.eq.s32.totalorder %v42, %v158
  %vm199 = vcmp.eq.s32.totalorder %v42, %v161
  %vm200 = vcmp.eq.s32.totalorder %v42, %v164
  %vm201 = vcmp.eq.s32.totalorder %v42, %v167
  %vm202 = vcmp.eq.s32.totalorder %v42, %v170
  %v203 = vsel %vm171, 1, 0
  %v204 = vsel %vm172, 1, 0
  %v205 = vsel %vm173, 1, 0
  %v206 = vsel %vm174, 1, 0
  %v207 = vsel %vm175, 1, 0
  %v208 = vsel %vm176, 1, 0
  %v209 = vsel %vm177, 1, 0
  %v210 = vsel %vm178, 1, 0
  %v211 = vsel %vm179, 1, 0
  %v212 = vsel %vm180, 1, 0
  %v213 = vsel %vm181, 1, 0
  %v214 = vsel %vm182, 1, 0
  %v215 = vsel %vm183, 1, 0
  %v216 = vsel %vm184, 1, 0
  %v217 = vsel %vm185, 1, 0
  %v218 = vsel %vm186, 1, 0
  %v219 = vsel %vm187, 1, 0
  %v220 = vsel %vm188, 1, 0
  %v221 = vsel %vm189, 1, 0
  %v222 = vsel %vm190, 1, 0
  %v223 = vsel %vm191, 1, 0
  %v224 = vsel %vm192, 1, 0
  %v225 = vsel %vm193, 1, 0
  %v226 = vsel %vm194, 1, 0
  %v227 = vsel %vm195, 1, 0
  %v228 = vsel %vm196, 1, 0
  %v229 = vsel %vm197, 1, 0
  %v230 = vsel %vm198, 1, 0
  %v231 = vsel %vm199, 1, 0
  %v232 = vsel %vm200, 1, 0
  %v233 = vsel %vm201, 1, 0
  %v234 = vsel %vm202, 1, 0
  %v235 = vcvt.s32.f32 %v203
  %v236 = vcvt.s32.f32 %v204
  %v237 = vcvt.s32.f32 %v205
  %v238 = vcvt.s32.f32 %v206
  %v239 = vcvt.s32.f32 %v207
  %v240 = vcvt.s32.f32 %v208
  %v241 = vcvt.s32.f32 %v209
  %v242 = vcvt.s32.f32 %v210
  %v243 = vcvt.s32.f32 %v211
  %v244 = vcvt.s32.f32 %v212
  %v245 = vcvt.s32.f32 %v213
  %v246 = vcvt.s32.f32 %v214
  %v247 = vcvt.s32.f32 %v215
  %v248 = vcvt.s32.f32 %v216
  %v249 = vcvt.s32.f32 %v217
  %v250 = vcvt.s32.f32 %v218
  %v251 = vcvt.s32.f32 %v219
  %v252 = vcvt.s32.f32 %v220
  %v253 = vcvt.s32.f32 %v221
  %v254 = vcvt.s32.f32 %v222
  %v255 = vcvt.s32.f32 %v223
  %v256 = vcvt.s32.f32 %v224
  %v257 = vcvt.s32.f32 %v225
  %v258 = vcvt.s32.f32 %v226
  %v259 = vcvt.s32.f32 %v227
  %v260 = vcvt.s32.f32 %v228
  %v261 = vcvt.s32.f32 %v229
  %v262 = vcvt.s32.f32 %v230
  %v263 = vcvt.s32.f32 %v231
  %v264 = vcvt.s32.f32 %v232
  %v265 = vcvt.s32.f32 %v233
  %v266 = vcvt.s32.f32 %v234
  %v267 = vld [vmem:[%s2] sm:$0xff]
  %v268 = vld [vmem:[%s2 + $0x8] sm:$0xff]
  %v269 = vld [vmem:[%s2 + $0x10] sm:$0xff]
  %v270 = vld [vmem:[%s2 + $0x18] sm:$0xff]
  %v271 = vld [vmem:[%s2 + $0x20] sm:$0xff]
  %v272 = vld [vmem:[%s2 + $0x28] sm:$0xff]
  %v273 = vld [vmem:[%s2 + $0x30] sm:$0xff]
  %v274 = vld [vmem:[%s2 + $0x38] sm:$0xff]
  %vm275 = vcmask 523264
  %v277 = vsel %vm275, %v235, 0
  %v280 = vsel %vm275, %v236, 0
  %v283 = vsel %vm275, %v237, 0
  %v286 = vsel %vm275, %v238, 0
  %v289 = vsel %vm275, %v239, 0
  %v292 = vsel %vm275, %v240, 0
  %v295 = vsel %vm275, %v241, 0
  %v298 = vsel %vm275, %v242, 0
  %v301 = vsel %vm275, %v243, 0
  %v304 = vsel %vm275, %v244, 0
  %v307 = vsel %vm275, %v245, 0
  %v310 = vsel %vm275, %v246, 0
  %v313 = vsel %vm275, %v247, 0
  %v316 = vsel %vm275, %v248, 0
  %v319 = vsel %vm275, %v249, 0
  %v322 = vsel %vm275, %v250, 0
  %v325 = vsel %vm275, %v251, 0
  %v328 = vsel %vm275, %v252, 0
  %v331 = vsel %vm275, %v253, 0
  %v334 = vsel %vm275, %v254, 0
  %v337 = vsel %vm275, %v255, 0
  %v340 = vsel %vm275, %v256, 0
  %v343 = vsel %vm275, %v257, 0
  %v346 = vsel %vm275, %v258, 0
  %v349 = vsel %vm275, %v259, 0
  %v352 = vsel %vm275, %v260, 0
  %v355 = vsel %vm275, %v261, 0
  %v358 = vsel %vm275, %v262, 0
  %v361 = vsel %vm275, %v263, 0
  %v364 = vsel %vm275, %v264, 0
  %v367 = vsel %vm275, %v265, 0
  %v370 = vsel %vm275, %v266, 0
  %372 = vmatpush.msra.mxu0 0.0
  %373 = vmatpush.msra.mxu0 0.0
  %374 = vmatpush.msra.mxu0 0.0
  %375 = vmatpush.msra.mxu0 0.0
  %376 = vmatpush.msra.mxu0 0.0
  %377 = vmatpush.msra.mxu0 0.0
  %378 = vmatpush.msra.mxu0 0.0
  %379 = vmatpush.msra.mxu0 0.0
  %380 = vmatpush.msra.mxu0 %v274
  %381 = vmatpush.msra.mxu0 %v273
  %382 = vmatpush.msra.mxu0 %v272
  %383 = vmatpush.msra.mxu0 %v271
  %384 = vmatpush.msra.mxu0 %v270
  %385 = vmatpush.msra.mxu0 %v269
  %386 = vmatpush.msra.mxu0 %v268
  %387 = vmatpush.msra.mxu0 %v267
  %388 = vmatmul.f32.gmra.mxu0 %v277
  %v389 = vpop.f32.mrf.mxu0
  %v390 = vadd.f32 0.0, %v389
  %391 = vmatmul.f32.gmra.mxu0 %v280
  %v392 = vpop.f32.mrf.mxu0
  %v393 = vadd.f32 0.0, %v392
  %394 = vmatmul.f32.gmra.mxu0 %v283
  %v395 = vpop.f32.mrf.mxu0
  %v396 = vadd.f32 0.0, %v395
  %397 = vmatmul.f32.gmra.mxu0 %v286
  %v398 = vpop.f32.mrf.mxu0
  %v399 = vadd.f32 0.0, %v398
  %400 = vmatmul.f32.gmra.mxu0 %v289
  %v401 = vpop.f32.mrf.mxu0
  %v402 = vadd.f32 0.0, %v401
  %403 = vmatmul.f32.gmra.mxu0 %v292
  %v404 = vpop.f32.mrf.mxu0
  %v405 = vadd.f32 0.0, %v404
  %406 = vmatmul.f32.gmra.mxu0 %v295
  %v407 = vpop.f32.mrf.mxu0
  %v408 = vadd.f32 0.0, %v407
  %409 = vmatmul.f32.gmra.mxu0 %v298
  %v410 = vpop.f32.mrf.mxu0
  %v411 = vadd.f32 0.0, %v410
  %412 = vmatmul.f32.gmra.mxu0 %v301
  %v413 = vpop.f32.mrf.mxu0
  %v414 = vadd.f32 0.0, %v413
  %415 = vmatmul.f32.gmra.mxu0 %v304
  %v416 = vpop.f32.mrf.mxu0
  %v417 = vadd.f32 0.0, %v416
  %418 = vmatmul.f32.gmra.mxu0 %v307
  %v419 = vpop.f32.mrf.mxu0
  %v420 = vadd.f32 0.0, %v419
  %421 = vmatmul.f32.gmra.mxu0 %v310
  %v422 = vpop.f32.mrf.mxu0
  %v423 = vadd.f32 0.0, %v422
  %424 = vmatmul.f32.gmra.mxu0 %v313
  %v425 = vpop.f32.mrf.mxu0
  %v426 = vadd.f32 0.0, %v425
  %427 = vmatmul.f32.gmra.mxu0 %v316
  %v428 = vpop.f32.mrf.mxu0
  %v429 = vadd.f32 0.0, %v428
  %430 = vmatmul.f32.gmra.mxu0 %v319
  %v431 = vpop.f32.mrf.mxu0
  %v432 = vadd.f32 0.0, %v431
  %433 = vmatmul.f32.gmra.mxu0 %v322
  %v434 = vpop.f32.mrf.mxu0
  %v435 = vadd.f32 0.0, %v434
  %436 = vmatmul.f32.gmra.mxu0 %v325
  %v437 = vpop.f32.mrf.mxu0
  %v438 = vadd.f32 0.0, %v437
  %439 = vmatmul.f32.gmra.mxu0 %v328
  %v440 = vpop.f32.mrf.mxu0
  %v441 = vadd.f32 0.0, %v440
  %442 = vmatmul.f32.gmra.mxu0 %v331
  %v443 = vpop.f32.mrf.mxu0
  %v444 = vadd.f32 0.0, %v443
  %445 = vmatmul.f32.gmra.mxu0 %v334
  %v446 = vpop.f32.mrf.mxu0
  %v447 = vadd.f32 0.0, %v446
  %448 = vmatmul.f32.gmra.mxu0 %v337
  %v449 = vpop.f32.mrf.mxu0
  %v450 = vadd.f32 0.0, %v449
  %451 = vmatmul.f32.gmra.mxu0 %v340
  %v452 = vpop.f32.mrf.mxu0
  %v453 = vadd.f32 0.0, %v452
  %454 = vmatmul.f32.gmra.mxu0 %v343
  %v455 = vpop.f32.mrf.mxu0
  %v456 = vadd.f32 0.0, %v455
  %457 = vmatmul.f32.gmra.mxu0 %v346
  %v458 = vpop.f32.mrf.mxu0
  %v459 = vadd.f32 0.0, %v458
  %460 = vmatmul.f32.gmra.mxu0 %v349
  %v461 = vpop.f32.mrf.mxu0
  %v462 = vadd.f32 0.0, %v461
  %463 = vmatmul.f32.gmra.mxu0 %v352
  %v464 = vpop.f32.mrf.mxu0
  %v465 = vadd.f32 0.0, %v464
  %466 = vmatmul.f32.gmra.mxu0 %v355
  %v467 = vpop.f32.mrf.mxu0
  %v468 = vadd.f32 0.0, %v467
  %469 = vmatmul.f32.gmra.mxu0 %v358
  %v470 = vpop.f32.mrf.mxu0
  %v471 = vadd.f32 0.0, %v470
  %472 = vmatmul.f32.gmra.mxu0 %v361
  %v473 = vpop.f32.mrf.mxu0
  %v474 = vadd.f32 0.0, %v473
  %475 = vmatmul.f32.gmra.mxu0 %v364
  %v476 = vpop.f32.mrf.mxu0
  %v477 = vadd.f32 0.0, %v476
  %478 = vmatmul.f32.gmra.mxu0 %v367
  %v479 = vpop.f32.mrf.mxu0
  %v480 = vadd.f32 0.0, %v479
  %481 = vmatmul.f32.gmra.mxu0 %v370
  %v482 = vpop.f32.mrf.mxu0
  %v483 = vadd.f32 0.0, %v482
  %484 = vdwg.mxu0
  %v485 = vld [vmem:[%s3] sm:$0xff]
  %v486 = vld [vmem:[%s3 + $0x8] sm:$0xff]
  %v487 = vld [vmem:[%s1] sm:$0xff]
  %v488 = vld [vmem:[%s1 + $0x8] sm:$0xff]
  %v489 = vld [vmem:[%s1 + $0x10] sm:$0xff]
  %v490 = vld [vmem:[%s1 + $0x18] sm:$0xff]
  %v491 = vld [vmem:[%s1 + $0x20] sm:$0xff]
  %v492 = vld [vmem:[%s1 + $0x28] sm:$0xff]
  %v493 = vld [vmem:[%s1 + $0x30] sm:$0xff]
  %v494 = vld [vmem:[%s1 + $0x38] sm:$0xff]
  %v495 = vld [vmem:[%s1 + $0x40] sm:$0xff]
  %v496 = vld [vmem:[%s1 + $0x48] sm:$0xff]
  %v497 = vld [vmem:[%s1 + $0x50] sm:$0xff]
  %v498 = vld [vmem:[%s1 + $0x58] sm:$0xff]
  %v499 = vld [vmem:[%s1 + $0x60] sm:$0xff]
  %v500 = vld [vmem:[%s1 + $0x68] sm:$0xff]
  %v501 = vld [vmem:[%s1 + $0x70] sm:$0xff]
  %v502 = vld [vmem:[%s1 + $0x78] sm:$0xff]
  %v503 = vld [vmem:[%s1 + $0x80] sm:$0xff]
  %v504 = vld [vmem:[%s1 + $0x88] sm:$0xff]
  %v505 = vld [vmem:[%s1 + $0x90] sm:$0xff]
  %v506 = vld [vmem:[%s1 + $0x98] sm:$0xff]
  %v507 = vld [vmem:[%s1 + $0xa0] sm:$0xff]
  %v508 = vld [vmem:[%s1 + $0xa8] sm:$0xff]
  %v509 = vld [vmem:[%s1 + $0xb0] sm:$0xff]
  %v510 = vld [vmem:[%s1 + $0xb8] sm:$0xff]
  %v511 = vld [vmem:[%s1 + $0xc0] sm:$0xff]
  %v512 = vld [vmem:[%s1 + $0xc8] sm:$0xff]
  %v513 = vld [vmem:[%s1 + $0xd0] sm:$0xff]
  %v514 = vld [vmem:[%s1 + $0xd8] sm:$0xff]
  %v515 = vld [vmem:[%s1 + $0xe0] sm:$0xff]
  %v516 = vld [vmem:[%s1 + $0xe8] sm:$0xff]
  %v517 = vld [vmem:[%s1 + $0xf0] sm:$0xff]
  %v518 = vld [vmem:[%s1 + $0xf8] sm:$0xff]
  %v519 = vld [vmem:[%s4] sm:$0xf]
  %vm520 = vcmask 31744
  %v522 = vsel %vm520, %v487, 0
  %v525 = vsel %vm520, %v488, 0
  %v528 = vsel %vm520, %v489, 0
  %v531 = vsel %vm520, %v490, 0
  %v534 = vsel %vm520, %v491, 0
  %v537 = vsel %vm520, %v492, 0
  %v540 = vsel %vm520, %v493, 0
  %v543 = vsel %vm520, %v494, 0
  %v546 = vsel %vm520, %v495, 0
  %v549 = vsel %vm520, %v496, 0
  %v552 = vsel %vm520, %v497, 0
  %v555 = vsel %vm520, %v498, 0
  %v558 = vsel %vm520, %v499, 0
  %v561 = vsel %vm520, %v500, 0
  %v564 = vsel %vm520, %v501, 0
  %v567 = vsel %vm520, %v502, 0
  %v570 = vsel %vm520, %v503, 0
  %v573 = vsel %vm520, %v504, 0
  %v576 = vsel %vm520, %v505, 0
  %v579 = vsel %vm520, %v506, 0
  %v582 = vsel %vm520, %v507, 0
  %v585 = vsel %vm520, %v508, 0
  %v588 = vsel %vm520, %v509, 0
  %v591 = vsel %vm520, %v510, 0
  %v594 = vsel %vm520, %v511, 0
  %v597 = vsel %vm520, %v512, 0
  %v600 = vsel %vm520, %v513, 0
  %v603 = vsel %vm520, %v514, 0
  %v606 = vsel %vm520, %v515, 0
  %v609 = vsel %vm520, %v516, 0
  %v612 = vsel %vm520, %v517, 0
  %v615 = vsel %vm520, %v518, 0
  %vm617 = vcmask 1043456
  %v619 = vsel %vm617, %v519, 0
  %621 = vmatpush.msra.mxu0 0.0
  %622 = vmatpush.msra.mxu0 0.0
  %623 = vmatpush.msra.mxu0 0.0
  %624 = vmatpush.msra.mxu0 0.0
  %625 = vmatpush.msra.mxu0 0.0
  %626 = vmatpush.msra.mxu0 0.0
  %627 = vmatpush.msra.mxu0 0.0
  %628 = vmatpush.msra.mxu0 0.0
  %629 = vmatpush.msra.mxu0 0.0
  %630 = vmatpush.msra.mxu0 0.0
  %631 = vmatpush.msra.mxu0 0.0
  %632 = vmatpush.msra.mxu0 0.0
  %633 = vmatpush.msra.mxu0 0.0
  %634 = vmatpush.msra.mxu0 0.0
  %635 = vmatpush.msra.mxu0 0.0
  %636 = vmatpush.msra.mxu0 %v619
  %637 = vmatmul.f32.gmra.mxu0 %v522
  %v638 = vpop.f32.mrf.mxu0
  %v639 = vadd.f32 0.0, %v638
  %640 = vmatmul.f32.gmra.mxu0 %v525
  %v641 = vpop.f32.mrf.mxu0
  %v642 = vadd.f32 0.0, %v641
  %643 = vmatmul.f32.gmra.mxu0 %v528
  %v644 = vpop.f32.mrf.mxu0
  %v645 = vadd.f32 0.0, %v644
  %646 = vmatmul.f32.gmra.mxu0 %v531
  %v647 = vpop.f32.mrf.mxu0
  %v648 = vadd.f32 0.0, %v647
  %649 = vmatmul.f32.gmra.mxu0 %v534
  %v650 = vpop.f32.mrf.mxu0
  %v651 = vadd.f32 0.0, %v650
  %652 = vmatmul.f32.gmra.mxu0 %v537
  %v653 = vpop.f32.mrf.mxu0
  %v654 = vadd.f32 0.0, %v653
  %655 = vmatmul.f32.gmra.mxu0 %v540
  %v656 = vpop.f32.mrf.mxu0
  %v657 = vadd.f32 0.0, %v656
  %658 = vmatmul.f32.gmra.mxu0 %v543
  %v659 = vpop.f32.mrf.mxu0
  %v660 = vadd.f32 0.0, %v659
  %661 = vmatmul.f32.gmra.mxu0 %v546
  %v662 = vpop.f32.mrf.mxu0
  %v663 = vadd.f32 0.0, %v662
  %664 = vmatmul.f32.gmra.mxu0 %v549
  %v665 = vpop.f32.mrf.mxu0
  %v666 = vadd.f32 0.0, %v665
  %667 = vmatmul.f32.gmra.mxu0 %v552
  %v668 = vpop.f32.mrf.mxu0
  %v669 = vadd.f32 0.0, %v668
  %670 = vmatmul.f32.gmra.mxu0 %v555
  %v671 = vpop.f32.mrf.mxu0
  %v672 = vadd.f32 0.0, %v671
  %673 = vmatmul.f32.gmra.mxu0 %v558
  %v674 = vpop.f32.mrf.mxu0
  %v675 = vadd.f32 0.0, %v674
  %676 = vmatmul.f32.gmra.mxu0 %v561
  %v677 = vpop.f32.mrf.mxu0
  %v678 = vadd.f32 0.0, %v677
  %679 = vmatmul.f32.gmra.mxu0 %v564
  %v680 = vpop.f32.mrf.mxu0
  %v681 = vadd.f32 0.0, %v680
  %682 = vmatmul.f32.gmra.mxu0 %v567
  %v683 = vpop.f32.mrf.mxu0
  %v684 = vadd.f32 0.0, %v683
  %685 = vmatmul.f32.gmra.mxu0 %v570
  %v686 = vpop.f32.mrf.mxu0
  %v687 = vadd.f32 0.0, %v686
  %688 = vmatmul.f32.gmra.mxu0 %v573
  %v689 = vpop.f32.mrf.mxu0
  %v690 = vadd.f32 0.0, %v689
  %691 = vmatmul.f32.gmra.mxu0 %v576
  %v692 = vpop.f32.mrf.mxu0
  %v693 = vadd.f32 0.0, %v692
  %694 = vmatmul.f32.gmra.mxu0 %v579
  %v695 = vpop.f32.mrf.mxu0
  %v696 = vadd.f32 0.0, %v695
  %697 = vmatmul.f32.gmra.mxu0 %v582
  %v698 = vpop.f32.mrf.mxu0
  %v699 = vadd.f32 0.0, %v698
  %700 = vmatmul.f32.gmra.mxu0 %v585
  %v701 = vpop.f32.mrf.mxu0
  %v702 = vadd.f32 0.0, %v701
  %703 = vmatmul.f32.gmra.mxu0 %v588
  %v704 = vpop.f32.mrf.mxu0
  %v705 = vadd.f32 0.0, %v704
  %706 = vmatmul.f32.gmra.mxu0 %v591
  %v707 = vpop.f32.mrf.mxu0
  %v708 = vadd.f32 0.0, %v707
  %709 = vmatmul.f32.gmra.mxu0 %v594
  %v710 = vpop.f32.mrf.mxu0
  %v711 = vadd.f32 0.0, %v710
  %712 = vmatmul.f32.gmra.mxu0 %v597
  %v713 = vpop.f32.mrf.mxu0
  %v714 = vadd.f32 0.0, %v713
  %715 = vmatmul.f32.gmra.mxu0 %v600
  %v716 = vpop.f32.mrf.mxu0
  %v717 = vadd.f32 0.0, %v716
  %718 = vmatmul.f32.gmra.mxu0 %v603
  %v719 = vpop.f32.mrf.mxu0
  %v720 = vadd.f32 0.0, %v719
  %721 = vmatmul.f32.gmra.mxu0 %v606
  %v722 = vpop.f32.mrf.mxu0
  %v723 = vadd.f32 0.0, %v722
  %724 = vmatmul.f32.gmra.mxu0 %v609
  %v725 = vpop.f32.mrf.mxu0
  %v726 = vadd.f32 0.0, %v725
  %727 = vmatmul.f32.gmra.mxu0 %v612
  %v728 = vpop.f32.mrf.mxu0
  %v729 = vadd.f32 0.0, %v728
  %730 = vmatmul.f32.gmra.mxu0 %v615
  %v731 = vpop.f32.mrf.mxu0
  %v732 = vadd.f32 0.0, %v731
  %733 = vdwg.mxu0
  %vm734 = vcmask 130048
  %v736 = vsel %vm734, %v390, 0
  %v739 = vsel %vm734, %v393, 0
  %v742 = vsel %vm734, %v396, 0
  %v745 = vsel %vm734, %v399, 0
  %v748 = vsel %vm734, %v402, 0
  %v751 = vsel %vm734, %v405, 0
  %v754 = vsel %vm734, %v408, 0
  %v757 = vsel %vm734, %v411, 0
  %v760 = vsel %vm734, %v414, 0
  %v763 = vsel %vm734, %v417, 0
  %v766 = vsel %vm734, %v420, 0
  %v769 = vsel %vm734, %v423, 0
  %v772 = vsel %vm734, %v426, 0
  %v775 = vsel %vm734, %v429, 0
  %v778 = vsel %vm734, %v432, 0
  %v781 = vsel %vm734, %v435, 0
  %v784 = vsel %vm734, %v438, 0
  %v787 = vsel %vm734, %v441, 0
  %v790 = vsel %vm734, %v444, 0
  %v793 = vsel %vm734, %v447, 0
  %v796 = vsel %vm734, %v450, 0
  %v799 = vsel %vm734, %v453, 0
  %v802 = vsel %vm734, %v456, 0
  %v805 = vsel %vm734, %v459, 0
  %v808 = vsel %vm734, %v462, 0
  %v811 = vsel %vm734, %v465, 0
  %v814 = vsel %vm734, %v468, 0
  %v817 = vsel %vm734, %v471, 0
  %v820 = vsel %vm734, %v474, 0
  %v823 = vsel %vm734, %v477, 0
  %v826 = vsel %vm734, %v480, 0
  %v829 = vsel %vm734, %v483, 0
  %831 = vmatpush.msra.mxu0 0.0
  %832 = vmatpush.msra.mxu0 0.0
  %833 = vmatpush.msra.mxu0 0.0
  %834 = vmatpush.msra.mxu0 0.0
  %835 = vmatpush.msra.mxu0 0.0
  %836 = vmatpush.msra.mxu0 0.0
  %837 = vmatpush.msra.mxu0 0.0
  %838 = vmatpush.msra.mxu0 0.0
  %839 = vmatpush.msra.mxu0 0.0
  %840 = vmatpush.msra.mxu0 0.0
  %841 = vmatpush.msra.mxu0 0.0
  %842 = vmatpush.msra.mxu0 0.0
  %843 = vmatpush.msra.mxu0 0.0
  %844 = vmatpush.msra.mxu0 0.0
  %845 = vmatpush.msra.mxu0 %v486
  %846 = vmatpush.msra.mxu0 %v485
  %847 = vmatmul.f32.gmra.mxu0 %v736
  %v848 = vpop.f32.mrf.mxu0
  %v849 = vadd.f32 %v639, %v848
  %850 = vmatmul.f32.gmra.mxu0 %v739
  %v851 = vpop.f32.mrf.mxu0
  %v852 = vadd.f32 %v642, %v851
  %853 = vmatmul.f32.gmra.mxu0 %v742
  %v854 = vpop.f32.mrf.mxu0
  %v855 = vadd.f32 %v645, %v854
  %856 = vmatmul.f32.gmra.mxu0 %v745
  %v857 = vpop.f32.mrf.mxu0
  %v858 = vadd.f32 %v648, %v857
  %859 = vmatmul.f32.gmra.mxu0 %v748
  %v860 = vpop.f32.mrf.mxu0
  %v861 = vadd.f32 %v651, %v860
  %862 = vmatmul.f32.gmra.mxu0 %v751
  %v863 = vpop.f32.mrf.mxu0
  %v864 = vadd.f32 %v654, %v863
  %865 = vmatmul.f32.gmra.mxu0 %v754
  %v866 = vpop.f32.mrf.mxu0
  %v867 = vadd.f32 %v657, %v866
  %868 = vmatmul.f32.gmra.mxu0 %v757
  %v869 = vpop.f32.mrf.mxu0
  %v870 = vadd.f32 %v660, %v869
  %871 = vmatmul.f32.gmra.mxu0 %v760
  %v872 = vpop.f32.mrf.mxu0
  %v873 = vadd.f32 %v663, %v872
  %874 = vmatmul.f32.gmra.mxu0 %v763
  %v875 = vpop.f32.mrf.mxu0
  %v876 = vadd.f32 %v666, %v875
  %877 = vmatmul.f32.gmra.mxu0 %v766
  %v878 = vpop.f32.mrf.mxu0
  %v879 = vadd.f32 %v669, %v878
  %880 = vmatmul.f32.gmra.mxu0 %v769
  %v881 = vpop.f32.mrf.mxu0
  %v882 = vadd.f32 %v672, %v881
  %883 = vmatmul.f32.gmra.mxu0 %v772
  %v884 = vpop.f32.mrf.mxu0
  %v885 = vadd.f32 %v675, %v884
  %886 = vmatmul.f32.gmra.mxu0 %v775
  %v887 = vpop.f32.mrf.mxu0
  %v888 = vadd.f32 %v678, %v887
  %889 = vmatmul.f32.gmra.mxu0 %v778
  %v890 = vpop.f32.mrf.mxu0
  %v891 = vadd.f32 %v681, %v890
  %892 = vmatmul.f32.gmra.mxu0 %v781
  %v893 = vpop.f32.mrf.mxu0
  %v894 = vadd.f32 %v684, %v893
  %895 = vmatmul.f32.gmra.mxu0 %v784
  %v896 = vpop.f32.mrf.mxu0
  %v897 = vadd.f32 %v687, %v896
  %898 = vmatmul.f32.gmra.mxu0 %v787
  %v899 = vpop.f32.mrf.mxu0
  %v900 = vadd.f32 %v690, %v899
  %901 = vmatmul.f32.gmra.mxu0 %v790
  %v902 = vpop.f32.mrf.mxu0
  %v903 = vadd.f32 %v693, %v902
  %904 = vmatmul.f32.gmra.mxu0 %v793
  %v905 = vpop.f32.mrf.mxu0
  %v906 = vadd.f32 %v696, %v905
  %907 = vmatmul.f32.gmra.mxu0 %v796
  %v908 = vpop.f32.mrf.mxu0
  %v909 = vadd.f32 %v699, %v908
  %910 = vmatmul.f32.gmra.mxu0 %v799
  %v911 = vpop.f32.mrf.mxu0
  %v912 = vadd.f32 %v702, %v911
  %913 = vmatmul.f32.gmra.mxu0 %v802
  %v914 = vpop.f32.mrf.mxu0
  %v915 = vadd.f32 %v705, %v914
  %916 = vmatmul.f32.gmra.mxu0 %v805
  %v917 = vpop.f32.mrf.mxu0
  %v918 = vadd.f32 %v708, %v917
  %919 = vmatmul.f32.gmra.mxu0 %v808
  %v920 = vpop.f32.mrf.mxu0
  %v921 = vadd.f32 %v711, %v920
  %922 = vmatmul.f32.gmra.mxu0 %v811
  %v923 = vpop.f32.mrf.mxu0
  %v924 = vadd.f32 %v714, %v923
  %925 = vmatmul.f32.gmra.mxu0 %v814
  %v926 = vpop.f32.mrf.mxu0
  %v927 = vadd.f32 %v717, %v926
  %928 = vmatmul.f32.gmra.mxu0 %v817
  %v929 = vpop.f32.mrf.mxu0
  %v930 = vadd.f32 %v720, %v929
  %931 = vmatmul.f32.gmra.mxu0 %v820
  %v932 = vpop.f32.mrf.mxu0
  %v933 = vadd.f32 %v723, %v932
  %934 = vmatmul.f32.gmra.mxu0 %v823
  %v935 = vpop.f32.mrf.mxu0
  %v936 = vadd.f32 %v726, %v935
  %937 = vmatmul.f32.gmra.mxu0 %v826
  %v938 = vpop.f32.mrf.mxu0
  %v939 = vadd.f32 %v729, %v938
  %940 = vmatmul.f32.gmra.mxu0 %v829
  %v941 = vpop.f32.mrf.mxu0
  %v942 = vadd.f32 %v732, %v941
  %943 = vdwg.mxu0
  %v944 = vld [vmem:[%s5] sm:$0x1]
  %v946 = vperm.slane %v944, 0
  %v948 = vadd.f32 %v849, %v946
  %v949 = vadd.f32 %v852, %v946
  %v950 = vadd.f32 %v855, %v946
  %v951 = vadd.f32 %v858, %v946
  %v952 = vadd.f32 %v861, %v946
  %v953 = vadd.f32 %v864, %v946
  %v954 = vadd.f32 %v867, %v946
  %v955 = vadd.f32 %v870, %v946
  %v956 = vadd.f32 %v873, %v946
  %v957 = vadd.f32 %v876, %v946
  %v958 = vadd.f32 %v879, %v946
  %v959 = vadd.f32 %v882, %v946
  %v960 = vadd.f32 %v885, %v946
  %v961 = vadd.f32 %v888, %v946
  %v962 = vadd.f32 %v891, %v946
  %v963 = vadd.f32 %v894, %v946
  %v964 = vadd.f32 %v897, %v946
  %v965 = vadd.f32 %v900, %v946
  %v966 = vadd.f32 %v903, %v946
  %v967 = vadd.f32 %v906, %v946
  %v968 = vadd.f32 %v909, %v946
  %v969 = vadd.f32 %v912, %v946
  %v970 = vadd.f32 %v915, %v946
  %v971 = vadd.f32 %v918, %v946
  %v972 = vadd.f32 %v921, %v946
  %v973 = vadd.f32 %v924, %v946
  %v974 = vadd.f32 %v927, %v946
  %v975 = vadd.f32 %v930, %v946
  %v976 = vadd.f32 %v933, %v946
  %v977 = vadd.f32 %v936, %v946
  %v978 = vadd.f32 %v939, %v946
  %v979 = vadd.f32 %v942, %v946
  %v980 = vmax.f32 %v948, 0.0
  %v981 = vmax.f32 %v949, 0.0
  %v982 = vmax.f32 %v950, 0.0
  %v983 = vmax.f32 %v951, 0.0
  %v984 = vmax.f32 %v952, 0.0
  %v985 = vmax.f32 %v953, 0.0
  %v986 = vmax.f32 %v954, 0.0
  %v987 = vmax.f32 %v955, 0.0
  %v988 = vmax.f32 %v956, 0.0
  %v989 = vmax.f32 %v957, 0.0
  %v990 = vmax.f32 %v958, 0.0
  %v991 = vmax.f32 %v959, 0.0
  %v992 = vmax.f32 %v960, 0.0
  %v993 = vmax.f32 %v961, 0.0
  %v994 = vmax.f32 %v962, 0.0
  %v995 = vmax.f32 %v963, 0.0
  %v996 = vmax.f32 %v964, 0.0
  %v997 = vmax.f32 %v965, 0.0
  %v998 = vmax.f32 %v966, 0.0
  %v999 = vmax.f32 %v967, 0.0
  %v1000 = vmax.f32 %v968, 0.0
  %v1001 = vmax.f32 %v969, 0.0
  %v1002 = vmax.f32 %v970, 0.0
  %v1003 = vmax.f32 %v971, 0.0
  %v1004 = vmax.f32 %v972, 0.0
  %v1005 = vmax.f32 %v973, 0.0
  %v1006 = vmax.f32 %v974, 0.0
  %v1007 = vmax.f32 %v975, 0.0
  %v1008 = vmax.f32 %v976, 0.0
  %v1009 = vmax.f32 %v977, 0.0
  %v1010 = vmax.f32 %v978, 0.0
  %v1011 = vmax.f32 %v979, 0.0
  %v1012 = vld [vmem:[%s6] sm:$0xff]
  %v1013 = vld [vmem:[%s6 + $0x8] sm:$0xff]
  %v1014 = vld [vmem:[%s7] sm:$0x1]
  %v1016 = vperm.slane %v1014, 0
  %v1019 = vsel %vm734, %v980, 0
  %v1022 = vsel %vm734, %v981, 0
  %v1025 = vsel %vm734, %v982, 0
  %v1028 = vsel %vm734, %v983, 0
  %v1031 = vsel %vm734, %v984, 0
  %v1034 = vsel %vm734, %v985, 0
  %v1037 = vsel %vm734, %v986, 0
  %v1040 = vsel %vm734, %v987, 0
  %v1043 = vsel %vm734, %v988, 0
  %v1046 = vsel %vm734, %v989, 0
  %v1049 = vsel %vm734, %v990, 0
  %v1052 = vsel %vm734, %v991, 0
  %v1055 = vsel %vm734, %v992, 0
  %v1058 = vsel %vm734, %v993, 0
  %v1061 = vsel %vm734, %v994, 0
  %v1064 = vsel %vm734, %v995, 0
  %v1067 = vsel %vm734, %v996, 0
  %v1070 = vsel %vm734, %v997, 0
  %v1073 = vsel %vm734, %v998, 0
  %v1076 = vsel %vm734, %v999, 0
  %v1079 = vsel %vm734, %v1000, 0
  %v1082 = vsel %vm734, %v1001, 0
  %v1085 = vsel %vm734, %v1002, 0
  %v1088 = vsel %vm734, %v1003, 0
  %v1091 = vsel %vm734, %v1004, 0
  %v1094 = vsel %vm734, %v1005, 0
  %v1097 = vsel %vm734, %v1006, 0
  %v1100 = vsel %vm734, %v1007, 0
  %v1103 = vsel %vm734, %v1008, 0
  %v1106 = vsel %vm734, %v1009, 0
  %v1109 = vsel %vm734, %v1010, 0
  %v1112 = vsel %vm734, %v1011, 0
  %1114 = vmatpush.msra.mxu0 0.0
  %1115 = vmatpush.msra.mxu0 0.0
  %1116 = vmatpush.msra.mxu0 0.0
  %1117 = vmatpush.msra.mxu0 0.0
  %1118 = vmatpush.msra.mxu0 0.0
  %1119 = vmatpush.msra.mxu0 0.0
  %1120 = vmatpush.msra.mxu0 0.0
  %1121 = vmatpush.msra.mxu0 0.0
  %1122 = vmatpush.msra.mxu0 0.0
  %1123 = vmatpush.msra.mxu0 0.0
  %1124 = vmatpush.msra.mxu0 0.0
  %1125 = vmatpush.msra.mxu0 0.0
  %1126 = vmatpush.msra.mxu0 0.0
  %1127 = vmatpush.msra.mxu0 0.0
  %1128 = vmatpush.msra.mxu0 %v1013
  %1129 = vmatpush.msra.mxu0 %v1012
  %1130 = vmatmul.f32.gmra.mxu0 %v1019
  %v1131 = vpop.f32.mrf.mxu0
  %v1132 = vadd.f32 %v1016, %v1131
  %1133 = vmatmul.f32.gmra.mxu0 %v1022
  %v1134 = vpop.f32.mrf.mxu0
  %v1135 = vadd.f32 %v1016, %v1134
  %1136 = vmatmul.f32.gmra.mxu0 %v1025
  %v1137 = vpop.f32.mrf.mxu0
  %v1138 = vadd.f32 %v1016, %v1137
  %1139 = vmatmul.f32.gmra.mxu0 %v1028
  %v1140 = vpop.f32.mrf.mxu0
  %v1141 = vadd.f32 %v1016, %v1140
  %1142 = vmatmul.f32.gmra.mxu0 %v1031
  %v1143 = vpop.f32.mrf.mxu0
  %v1144 = vadd.f32 %v1016, %v1143
  %1145 = vmatmul.f32.gmra.mxu0 %v1034
  %v1146 = vpop.f32.mrf.mxu0
  %v1147 = vadd.f32 %v1016, %v1146
  %1148 = vmatmul.f32.gmra.mxu0 %v1037
  %v1149 = vpop.f32.mrf.mxu0
  %v1150 = vadd.f32 %v1016, %v1149
  %1151 = vmatmul.f32.gmra.mxu0 %v1040
  %v1152 = vpop.f32.mrf.mxu0
  %v1153 = vadd.f32 %v1016, %v1152
  %1154 = vmatmul.f32.gmra.mxu0 %v1043
  %v1155 = vpop.f32.mrf.mxu0
  %v1156 = vadd.f32 %v1016, %v1155
  %1157 = vmatmul.f32.gmra.mxu0 %v1046
  %v1158 = vpop.f32.mrf.mxu0
  %v1159 = vadd.f32 %v1016, %v1158
  %1160 = vmatmul.f32.gmra.mxu0 %v1049
  %v1161 = vpop.f32.mrf.mxu0
  %v1162 = vadd.f32 %v1016, %v1161
  %1163 = vmatmul.f32.gmra.mxu0 %v1052
  %v1164 = vpop.f32.mrf.mxu0
  %v1165 = vadd.f32 %v1016, %v1164
  %1166 = vmatmul.f32.gmra.mxu0 %v1055
  %v1167 = vpop.f32.mrf.mxu0
  %v1168 = vadd.f32 %v1016, %v1167
  %1169 = vmatmul.f32.gmra.mxu0 %v1058
  %v1170 = vpop.f32.mrf.mxu0
  %v1171 = vadd.f32 %v1016, %v1170
  %1172 = vmatmul.f32.gmra.mxu0 %v1061
  %v1173 = vpop.f32.mrf.mxu0
  %v1174 = vadd.f32 %v1016, %v1173
  %1175 = vmatmul.f32.gmra.mxu0 %v1064
  %v1176 = vpop.f32.mrf.mxu0
  %v1177 = vadd.f32 %v1016, %v1176
  %1178 = vmatmul.f32.gmra.mxu0 %v1067
  %v1179 = vpop.f32.mrf.mxu0
  %v1180 = vadd.f32 %v1016, %v1179
  %1181 = vmatmul.f32.gmra.mxu0 %v1070
  %v1182 = vpop.f32.mrf.mxu0
  %v1183 = vadd.f32 %v1016, %v1182
  %1184 = vmatmul.f32.gmra.mxu0 %v1073
  %v1185 = vpop.f32.mrf.mxu0
  %v1186 = vadd.f32 %v1016, %v1185
  %1187 = vmatmul.f32.gmra.mxu0 %v1076
  %v1188 = vpop.f32.mrf.mxu0
  %v1189 = vadd.f32 %v1016, %v1188
  %1190 = vmatmul.f32.gmra.mxu0 %v1079
  %v1191 = vpop.f32.mrf.mxu0
  %v1192 = vadd.f32 %v1016, %v1191
  %1193 = vmatmul.f32.gmra.mxu0 %v1082
  %v1194 = vpop.f32.mrf.mxu0
  %v1195 = vadd.f32 %v1016, %v1194
  %1196 = vmatmul.f32.gmra.mxu0 %v1085
  %v1197 = vpop.f32.mrf.mxu0
  %v1198 = vadd.f32 %v1016, %v1197
  %1199 = vmatmul.f32.gmra.mxu0 %v1088
  %v1200 = vpop.f32.mrf.mxu0
  %v1201 = vadd.f32 %v1016, %v1200
  %1202 = vmatmul.f32.gmra.mxu0 %v1091
  %v1203 = vpop.f32.mrf.mxu0
  %v1204 = vadd.f32 %v1016, %v1203
  %1205 = vmatmul.f32.gmra.mxu0 %v1094
  %v1206 = vpop.f32.mrf.mxu0
  %v1207 = vadd.f32 %v1016, %v1206
  %1208 = vmatmul.f32.gmra.mxu0 %v1097
  %v1209 = vpop.f32.mrf.mxu0
  %v1210 = vadd.f32 %v1016, %v1209
  %1211 = vmatmul.f32.gmra.mxu0 %v1100
  %v1212 = vpop.f32.mrf.mxu0
  %v1213 = vadd.f32 %v1016, %v1212
  %1214 = vmatmul.f32.gmra.mxu0 %v1103
  %v1215 = vpop.f32.mrf.mxu0
  %v1216 = vadd.f32 %v1016, %v1215
  %1217 = vmatmul.f32.gmra.mxu0 %v1106
  %v1218 = vpop.f32.mrf.mxu0
  %v1219 = vadd.f32 %v1016, %v1218
  %1220 = vmatmul.f32.gmra.mxu0 %v1109
  %v1221 = vpop.f32.mrf.mxu0
  %v1222 = vadd.f32 %v1016, %v1221
  %1223 = vmatmul.f32.gmra.mxu0 %v1112
  %v1224 = vpop.f32.mrf.mxu0
  %v1225 = vadd.f32 %v1016, %v1224
  %1226 = vdwg.mxu0
  %v1227 = vmax.f32 %v1132, 0.0
  %v1228 = vmax.f32 %v1135, 0.0
  %v1229 = vmax.f32 %v1138, 0.0
  %v1230 = vmax.f32 %v1141, 0.0
  %v1231 = vmax.f32 %v1144, 0.0
  %v1232 = vmax.f32 %v1147, 0.0
  %v1233 = vmax.f32 %v1150, 0.0
  %v1234 = vmax.f32 %v1153, 0.0
  %v1235 = vmax.f32 %v1156, 0.0
  %v1236 = vmax.f32 %v1159, 0.0
  %v1237 = vmax.f32 %v1162, 0.0
  %v1238 = vmax.f32 %v1165, 0.0
  %v1239 = vmax.f32 %v1168, 0.0
  %v1240 = vmax.f32 %v1171, 0.0
  %v1241 = vmax.f32 %v1174, 0.0
  %v1242 = vmax.f32 %v1177, 0.0
  %v1243 = vmax.f32 %v1180, 0.0
  %v1244 = vmax.f32 %v1183, 0.0
  %v1245 = vmax.f32 %v1186, 0.0
  %v1246 = vmax.f32 %v1189, 0.0
  %v1247 = vmax.f32 %v1192, 0.0
  %v1248 = vmax.f32 %v1195, 0.0
  %v1249 = vmax.f32 %v1198, 0.0
  %v1250 = vmax.f32 %v1201, 0.0
  %v1251 = vmax.f32 %v1204, 0.0
  %v1252 = vmax.f32 %v1207, 0.0
  %v1253 = vmax.f32 %v1210, 0.0
  %v1254 = vmax.f32 %v1213, 0.0
  %v1255 = vmax.f32 %v1216, 0.0
  %v1256 = vmax.f32 %v1219, 0.0
  %v1257 = vmax.f32 %v1222, 0.0
  %v1258 = vmax.f32 %v1225, 0.0
  %v1259 = vld [vmem:[%s8] sm:$0xff]
  %v1260 = vld [vmem:[%s8 + $0x8] sm:$0xff]
  %v1261 = vld [vmem:[%s9] sm:$0x1]
  %v1263 = vperm.slane %v1261, 0
  %v1266 = vsel %vm734, %v1227, 0
  %v1269 = vsel %vm734, %v1228, 0
  %v1272 = vsel %vm734, %v1229, 0
  %v1275 = vsel %vm734, %v1230, 0
  %v1278 = vsel %vm734, %v1231, 0
  %v1281 = vsel %vm734, %v1232, 0
  %v1284 = vsel %vm734, %v1233, 0
  %v1287 = vsel %vm734, %v1234, 0
  %v1290 = vsel %vm734, %v1235, 0
  %v1293 = vsel %vm734, %v1236, 0
  %v1296 = vsel %vm734, %v1237, 0
  %v1299 = vsel %vm734, %v1238, 0
  %v1302 = vsel %vm734, %v1239, 0
  %v1305 = vsel %vm734, %v1240, 0
  %v1308 = vsel %vm734, %v1241, 0
  %v1311 = vsel %vm734, %v1242, 0
  %v1314 = vsel %vm734, %v1243, 0
  %v1317 = vsel %vm734, %v1244, 0
  %v1320 = vsel %vm734, %v1245, 0
  %v1323 = vsel %vm734, %v1246, 0
  %v1326 = vsel %vm734, %v1247, 0
  %v1329 = vsel %vm734, %v1248, 0
  %v1332 = vsel %vm734, %v1249, 0
  %v1335 = vsel %vm734, %v1250, 0
  %v1338 = vsel %vm734, %v1251, 0
  %v1341 = vsel %vm734, %v1252, 0
  %v1344 = vsel %vm734, %v1253, 0
  %v1347 = vsel %vm734, %v1254, 0
  %v1350 = vsel %vm734, %v1255, 0
  %v1353 = vsel %vm734, %v1256, 0
  %v1356 = vsel %vm734, %v1257, 0
  %v1359 = vsel %vm734, %v1258, 0
  %1361 = vmatpush.msra.mxu0 0.0
  %1362 = vmatpush.msra.mxu0 0.0
  %1363 = vmatpush.msra.mxu0 0.0
  %1364 = vmatpush.msra.mxu0 0.0
  %1365 = vmatpush.msra.mxu0 0.0
  %1366 = vmatpush.msra.mxu0 0.0
  %1367 = vmatpush.msra.mxu0 0.0
  %1368 = vmatpush.msra.mxu0 0.0
  %1369 = vmatpush.msra.mxu0 0.0
  %1370 = vmatpush.msra.mxu0 0.0
  %1371 = vmatpush.msra.mxu0 0.0
  %1372 = vmatpush.msra.mxu0 0.0
  %1373 = vmatpush.msra.mxu0 0.0
  %1374 = vmatpush.msra.mxu0 0.0
  %1375 = vmatpush.msra.mxu0 %v1260
  %1376 = vmatpush.msra.mxu0 %v1259
  %1377 = vmatmul.f32.gmra.mxu0 %v1266
  %v1378 = vpop.f32.mrf.mxu0
  %v1379 = vadd.f32 %v1263, %v1378
  %1380 = vmatmul.f32.gmra.mxu0 %v1269
  %v1381 = vpop.f32.mrf.mxu0
  %v1382 = vadd.f32 %v1263, %v1381
  %1383 = vmatmul.f32.gmra.mxu0 %v1272
  %v1384 = vpop.f32.mrf.mxu0
  %v1385 = vadd.f32 %v1263, %v1384
  %1386 = vmatmul.f32.gmra.mxu0 %v1275
  %v1387 = vpop.f32.mrf.mxu0
  %v1388 = vadd.f32 %v1263, %v1387
  %1389 = vmatmul.f32.gmra.mxu0 %v1278
  %v1390 = vpop.f32.mrf.mxu0
  %v1391 = vadd.f32 %v1263, %v1390
  %1392 = vmatmul.f32.gmra.mxu0 %v1281
  %v1393 = vpop.f32.mrf.mxu0
  %v1394 = vadd.f32 %v1263, %v1393
  %1395 = vmatmul.f32.gmra.mxu0 %v1284
  %v1396 = vpop.f32.mrf.mxu0
  %v1397 = vadd.f32 %v1263, %v1396
  %1398 = vmatmul.f32.gmra.mxu0 %v1287
  %v1399 = vpop.f32.mrf.mxu0
  %v1400 = vadd.f32 %v1263, %v1399
  %1401 = vmatmul.f32.gmra.mxu0 %v1290
  %v1402 = vpop.f32.mrf.mxu0
  %v1403 = vadd.f32 %v1263, %v1402
  %1404 = vmatmul.f32.gmra.mxu0 %v1293
  %v1405 = vpop.f32.mrf.mxu0
  %v1406 = vadd.f32 %v1263, %v1405
  %1407 = vmatmul.f32.gmra.mxu0 %v1296
  %v1408 = vpop.f32.mrf.mxu0
  %v1409 = vadd.f32 %v1263, %v1408
  %1410 = vmatmul.f32.gmra.mxu0 %v1299
  %v1411 = vpop.f32.mrf.mxu0
  %v1412 = vadd.f32 %v1263, %v1411
  %1413 = vmatmul.f32.gmra.mxu0 %v1302
  %v1414 = vpop.f32.mrf.mxu0
  %v1415 = vadd.f32 %v1263, %v1414
  %1416 = vmatmul.f32.gmra.mxu0 %v1305
  %v1417 = vpop.f32.mrf.mxu0
  %v1418 = vadd.f32 %v1263, %v1417
  %1419 = vmatmul.f32.gmra.mxu0 %v1308
  %v1420 = vpop.f32.mrf.mxu0
  %v1421 = vadd.f32 %v1263, %v1420
  %1422 = vmatmul.f32.gmra.mxu0 %v1311
  %v1423 = vpop.f32.mrf.mxu0
  %v1424 = vadd.f32 %v1263, %v1423
  %1425 = vmatmul.f32.gmra.mxu0 %v1314
  %v1426 = vpop.f32.mrf.mxu0
  %v1427 = vadd.f32 %v1263, %v1426
  %1428 = vmatmul.f32.gmra.mxu0 %v1317
  %v1429 = vpop.f32.mrf.mxu0
  %v1430 = vadd.f32 %v1263, %v1429
  %1431 = vmatmul.f32.gmra.mxu0 %v1320
  %v1432 = vpop.f32.mrf.mxu0
  %v1433 = vadd.f32 %v1263, %v1432
  %1434 = vmatmul.f32.gmra.mxu0 %v1323
  %v1435 = vpop.f32.mrf.mxu0
  %v1436 = vadd.f32 %v1263, %v1435
  %1437 = vmatmul.f32.gmra.mxu0 %v1326
  %v1438 = vpop.f32.mrf.mxu0
  %v1439 = vadd.f32 %v1263, %v1438
  %1440 = vmatmul.f32.gmra.mxu0 %v1329
  %v1441 = vpop.f32.mrf.mxu0
  %v1442 = vadd.f32 %v1263, %v1441
  %1443 = vmatmul.f32.gmra.mxu0 %v1332
  %v1444 = vpop.f32.mrf.mxu0
  %v1445 = vadd.f32 %v1263, %v1444
  %1446 = vmatmul.f32.gmra.mxu0 %v1335
  %v1447 = vpop.f32.mrf.mxu0
  %v1448 = vadd.f32 %v1263, %v1447
  %1449 = vmatmul.f32.gmra.mxu0 %v1338
  %v1450 = vpop.f32.mrf.mxu0
  %v1451 = vadd.f32 %v1263, %v1450
  %1452 = vmatmul.f32.gmra.mxu0 %v1341
  %v1453 = vpop.f32.mrf.mxu0
  %v1454 = vadd.f32 %v1263, %v1453
  %1455 = vmatmul.f32.gmra.mxu0 %v1344
  %v1456 = vpop.f32.mrf.mxu0
  %v1457 = vadd.f32 %v1263, %v1456
  %1458 = vmatmul.f32.gmra.mxu0 %v1347
  %v1459 = vpop.f32.mrf.mxu0
  %v1460 = vadd.f32 %v1263, %v1459
  %1461 = vmatmul.f32.gmra.mxu0 %v1350
  %v1462 = vpop.f32.mrf.mxu0
  %v1463 = vadd.f32 %v1263, %v1462
  %1464 = vmatmul.f32.gmra.mxu0 %v1353
  %v1465 = vpop.f32.mrf.mxu0
  %v1466 = vadd.f32 %v1263, %v1465
  %1467 = vmatmul.f32.gmra.mxu0 %v1356
  %v1468 = vpop.f32.mrf.mxu0
  %v1469 = vadd.f32 %v1263, %v1468
  %1470 = vmatmul.f32.gmra.mxu0 %v1359
  %v1471 = vpop.f32.mrf.mxu0
  %v1472 = vadd.f32 %v1263, %v1471
  %1473 = vdwg.mxu0
  %v1474 = vmax.f32 %v1379, 0.0
  %v1475 = vmax.f32 %v1382, 0.0
  %v1476 = vmax.f32 %v1385, 0.0
  %v1477 = vmax.f32 %v1388, 0.0
  %v1478 = vmax.f32 %v1391, 0.0
  %v1479 = vmax.f32 %v1394, 0.0
  %v1480 = vmax.f32 %v1397, 0.0
  %v1481 = vmax.f32 %v1400, 0.0
  %v1482 = vmax.f32 %v1403, 0.0
  %v1483 = vmax.f32 %v1406, 0.0
  %v1484 = vmax.f32 %v1409, 0.0
  %v1485 = vmax.f32 %v1412, 0.0
  %v1486 = vmax.f32 %v1415, 0.0
  %v1487 = vmax.f32 %v1418, 0.0
  %v1488 = vmax.f32 %v1421, 0.0
  %v1489 = vmax.f32 %v1424, 0.0
  %v1490 = vmax.f32 %v1427, 0.0
  %v1491 = vmax.f32 %v1430, 0.0
  %v1492 = vmax.f32 %v1433, 0.0
  %v1493 = vmax.f32 %v1436, 0.0
  %v1494 = vmax.f32 %v1439, 0.0
  %v1495 = vmax.f32 %v1442, 0.0
  %v1496 = vmax.f32 %v1445, 0.0
  %v1497 = vmax.f32 %v1448, 0.0
  %v1498 = vmax.f32 %v1451, 0.0
  %v1499 = vmax.f32 %v1454, 0.0
  %v1500 = vmax.f32 %v1457, 0.0
  %v1501 = vmax.f32 %v1460, 0.0
  %v1502 = vmax.f32 %v1463, 0.0
  %v1503 = vmax.f32 %v1466, 0.0
  %v1504 = vmax.f32 %v1469, 0.0
  %v1505 = vmax.f32 %v1472, 0.0
  %v1506 = vmax.f32 %v1474, %v1478
  %v1507 = vmax.f32 %v1475, %v1479
  %v1508 = vmax.f32 %v1476, %v1480
  %v1509 = vmax.f32 %v1477, %v1481
  %v1510 = vmax.f32 %v1506, %v1482
  %v1511 = vmax.f32 %v1507, %v1483
  %v1512 = vmax.f32 %v1508, %v1484
  %v1513 = vmax.f32 %v1509, %v1485
  %v1514 = vmax.f32 %v1510, %v1486
  %v1515 = vmax.f32 %v1511, %v1487
  %v1516 = vmax.f32 %v1512, %v1488
  %v1517 = vmax.f32 %v1513, %v1489
  %v1518 = vmax.f32 %v1514, %v1490
  %v1519 = vmax.f32 %v1515, %v1491
  %v1520 = vmax.f32 %v1516, %v1492
  %v1521 = vmax.f32 %v1517, %v1493
  %v1522 = vmax.f32 %v1518, %v1494
  %v1523 = vmax.f32 %v1519, %v1495
  %v1524 = vmax.f32 %v1520, %v1496
  %v1525 = vmax.f32 %v1521, %v1497
  %v1526 = vmax.f32 %v1522, %v1498
  %v1527 = vmax.f32 %v1523, %v1499
  %v1528 = vmax.f32 %v1524, %v1500
  %v1529 = vmax.f32 %v1525, %v1501
  %v1530 = vmax.f32 %v1526, %v1502
  %v1531 = vmax.f32 %v1527, %v1503
  %v1532 = vmax.f32 %v1528, %v1504
  %v1533 = vmax.f32 %v1529, %v1505
  %v1534 = vld [vmem:[%s10] sm:$0xff]
  %v1535 = vld [vmem:[%s10 + $0x8] sm:$0xff]
  %v1536 = vld [vmem:[%s11] sm:$0x1]
  %v1538 = vperm.slane %v1536, 0
  %v1541 = vsel %vm734, %v1530, 0
  %v1544 = vsel %vm734, %v1531, 0
  %v1547 = vsel %vm734, %v1532, 0
  %v1550 = vsel %vm734, %v1533, 0
  %1552 = vmatpush.msra.mxu0 0.0
  %1553 = vmatpush.msra.mxu0 0.0
  %1554 = vmatpush.msra.mxu0 0.0
  %1555 = vmatpush.msra.mxu0 0.0
  %1556 = vmatpush.msra.mxu0 0.0
  %1557 = vmatpush.msra.mxu0 0.0
  %1558 = vmatpush.msra.mxu0 0.0
  %1559 = vmatpush.msra.mxu0 0.0
  %1560 = vmatpush.msra.mxu0 0.0
  %1561 = vmatpush.msra.mxu0 0.0
  %1562 = vmatpush.msra.mxu0 0.0
  %1563 = vmatpush.msra.mxu0 0.0
  %1564 = vmatpush.msra.mxu0 0.0
  %1565 = vmatpush.msra.mxu0 0.0
  %1566 = vmatpush.msra.mxu0 %v1535
  %1567 = vmatpush.msra.mxu0 %v1534
  %1568 = vmatmul.f32.gmra.mxu0 %v1541
  %v1569 = vpop.f32.mrf.mxu0
  %v1570 = vadd.f32 %v1538, %v1569
  %1571 = vmatmul.f32.gmra.mxu0 %v1544
  %v1572 = vpop.f32.mrf.mxu0
  %v1573 = vadd.f32 %v1538, %v1572
  %1574 = vmatmul.f32.gmra.mxu0 %v1547
  %v1575 = vpop.f32.mrf.mxu0
  %v1576 = vadd.f32 %v1538, %v1575
  %1577 = vmatmul.f32.gmra.mxu0 %v1550
  %v1578 = vpop.f32.mrf.mxu0
  %v1579 = vadd.f32 %v1538, %v1578
  %1580 = vdwg.mxu0
  %v1581 = vmax.f32 %v1570, 0.0
  %v1582 = vmax.f32 %v1573, 0.0
  %v1583 = vmax.f32 %v1576, 0.0
  %v1584 = vmax.f32 %v1579, 0.0
  %1585 = vst.msk [vmem:[%s12] sm:$0xff] %vm734, %v1581
  %1586 = vst.msk [vmem:[%s12 + $0x8] sm:$0xff] %vm734, %v1582
  %1587 = vst.msk [vmem:[%s12 + $0x10] sm:$0xff] %vm734, %v1583
  %1588 = vst.msk [vmem:[%s12 + $0x18] sm:$0xff] %vm734, %v1584
  // Predicated region
  $region50: #{model_forward.9} parent=0 // pred_check
    _
  $region51: #{model_forward.9} parent=0 // pred_check_branch
    %1590 = sbr.rel (0) target = $region53
  $region52: #{model_forward.9} parent=0 // pred_region
    _
  $region53: #{model_forward.9} parent=0 // pred_fallthru
    _
  // Predicated region
  $region54: #{model_forward.9} parent=0 // pred_check
    _
  $region55: #{model_forward.9} parent=0 // pred_check_branch
    %1592 = sbr.rel (0) target = $region57
  $region56: #{model_forward.9} parent=0 // pred_region
    _
  $region57: #{model_forward.9} parent=0 // pred_fallthru
    _

// kernel: neg.7
$region0: #{neg.7}
  #allocation0 [shape = 's32[1]{0}', space=sflag, size = 0x4, scoped, tag = 'scoped memory for neg.7']
  %s0 = inlined_call_operand.vmem [shape: f32[16,32], index: 0, kind: input, shape index: {}]
  %s1 = inlined_call_operand.vmem [shape: f32[16,32], index: 1, kind: output, shape index: {}]
  %v2 = vld [vmem:[%s0] sm:$0xff]
  %3 = xla_tuple %v2
  %4 = xla_tuple %3
  %v5 = vxor.u32 %v2, 2147483648
  %6 = xla_tuple %v5
  %7 = vst [vmem:[%s1] sm:$0xff] %v5
  %s8 = scalar_lea.vmem %s0, 8
  %v9 = vld [vmem:[%s8] sm:$0xff]
  %10 = xla_tuple %v9
  %11 = xla_tuple %10
  %v12 = vxor.u32 %v9, 2147483648
  %13 = xla_tuple %v12
  %s14 = scalar_lea.vmem %s1, 8
  %15 = vst [vmem:[%s14] sm:$0xff] %v12

// kernel: neg.8
$region0: #{neg.8}
  #allocation0 [shape = 's32[1]{0}', space=sflag, size = 0x4, scoped, tag = 'scoped memory for neg.8']
  %s0 = inlined_call_operand.vmem [shape: f32[8,16], index: 0, kind: input, shape index: {}]
  %s1 = inlined_call_operand.vmem [shape: f32[8,16], index: 1, kind: output, shape index: {}]
  %v2 = vld [vmem:[%s0] sm:$0xff]
  %3 = xla_tuple %v2
  %4 = xla_tuple %3
  %v5 = vxor.u32 %v2, 2147483648
  %6 = xla_tuple %v5
  %7 = vst [vmem:[%s1] sm:$0xff] %v5

// kernel: neg.9
$region0: #{neg.9}
  #allocation0 [shape = 's32[1]{0}', space=sflag, size = 0x4, scoped, tag = 'scoped memory for neg.9']
  %s0 = inlined_call_operand.vmem [shape: f32[16,8], index: 0, kind: input, shape index: {}]
  %s1 = inlined_call_operand.vmem [shape: f32[16,8], index: 1, kind: output, shape index: {}]
  %v2 = vld [vmem:[%s0] sm:$0xff]
  %3 = xla_tuple %v2
  %4 = xla_tuple %3
  %v5 = vxor.u32 %v2, 2147483648
  %6 = xla_tuple %v5
  %7 = vst [vmem:[%s1] sm:$0xff] %v5

// kernel: model_forward.10
$region0: #{model_forward.10}
  #allocation0 [shape = 'u32[]', space=smem, size = 0x4, offset = 0x4, fixed_abs, tag = 'smem constant byte address 0x4 - core index']
  #allocation1 [shape = 'u32[72,128]{1,0:T(1,128)}', space=vmem, size = 0x9000, scoped, tag = 'internal scratch']
  %s0 = inlined_call_operand.vmem [shape: s32[128,1], index: 0, kind: input, shape index: {}]
  %s1 = inlined_call_operand.vmem [shape: f32[128,4], index: 1, kind: input, shape index: {}]
  %s2 = inlined_call_operand.vmem [shape: f32[32,16], index: 2, kind: input, shape index: {}]
  %s3 = inlined_call_operand.vmem [shape: f32[16,16], index: 3, kind: input, shape index: {}]
  %s4 = inlined_call_operand.vmem [shape: f32[4,16], index: 4, kind: input, shape index: {}]
  %s5 = inlined_call_operand.vmem [shape: f32[1,16], index: 5, kind: input, shape index: {}]
  %s6 = inlined_call_operand.vmem [shape: f32[16,16], index: 6, kind: input, shape index: {}]
  %s7 = inlined_call_operand.vmem [shape: f32[1,16], index: 7, kind: input, shape index: {}]
  %s8 = inlined_call_operand.vmem [shape: f32[16,16], index: 8, kind: input, shape index: {}]
  %s9 = inlined_call_operand.vmem [shape: f32[1,16], index: 9, kind: input, shape index: {}]
  %s10 = inlined_call_operand.vmem [shape: f32[16,16], index: 10, kind: input, shape index: {}]
  %s11 = inlined_call_operand.vmem [shape: f32[1,16], index: 11, kind: input, shape index: {}]
  %s12 = inlined_call_operand.vmem [shape: f32[16,16], index: 12, kind: output, shape index: {}]
  %s13 = sld [smem:[#allocation0]]
  $region58: #{model_forward.10} parent=0
    _
  %s15 = ssub.s32 1, %s13
  %s16 = scalar_select 0, %s15, %s13
  // Predicated region
  $region2: #{model_forward.10} parent=0 // pred_check
    _
  $region3: #{model_forward.10} parent=0 // pred_check_branch
    %18 = sbr.rel (0) target = $region5
  $region4: #{model_forward.10} parent=0 // pred_region
    _
  $region5: #{model_forward.10} parent=0 // pred_fallthru
    _
  // Predicated region
  $region6: #{model_forward.10} parent=0 // pred_check
    _
  $region7: #{model_forward.10} parent=0 // pred_check_branch
    %20 = sbr.rel (0) target = $region9
  $region8: #{model_forward.10} parent=0 // pred_region
    _
  $region9: #{model_forward.10} parent=0 // pred_fallthru
    _
  // Predicated region
  $region10: #{model_forward.10} parent=0 // pred_check
    _
  $region11: #{model_forward.10} parent=0 // pred_check_branch
    %22 = sbr.rel (0) target = $region13
  $region12: #{model_forward.10} parent=0 // pred_region
    _
  $region13: #{model_forward.10} parent=0 // pred_fallthru
    _
  // Predicated region
  $region14: #{model_forward.10} parent=0 // pred_check
    _
  $region15: #{model_forward.10} parent=0 // pred_check_branch
    %24 = sbr.rel (0) target = $region17
  $region16: #{model_forward.10} parent=0 // pred_region
    _
  $region17: #{model_forward.10} parent=0 // pred_fallthru
    _
  // Predicated region
  $region18: #{model_forward.10} parent=0 // pred_check
    _
  $region19: #{model_forward.10} parent=0 // pred_check_branch
    %26 = sbr.rel (0) target = $region21
  $region20: #{model_forward.10} parent=0 // pred_region
    _
  $region21: #{model_forward.10} parent=0 // pred_fallthru
    _
  // Predicated region
  $region22: #{model_forward.10} parent=0 // pred_check
    _
  $region23: #{model_forward.10} parent=0 // pred_check_branch
    %28 = sbr.rel (0) target = $region25
  $region24: #{model_forward.10} parent=0 // pred_region
    _
  $region25: #{model_forward.10} parent=0 // pred_fallthru
    _
  // Predicated region
  $region26: #{model_forward.10} parent=0 // pred_check
    _
  $region27: #{model_forward.10} parent=0 // pred_check_branch
    %30 = sbr.rel (0) target = $region29
  $region28: #{model_forward.10} parent=0 // pred_region
    _
  $region29: #{model_forward.10} parent=0 // pred_fallthru
    _
  // Predicated region
  $region30: #{model_forward.10} parent=0 // pred_check
    _
  $region31: #{model_forward.10} parent=0 // pred_check_branch
    %32 = sbr.rel (0) target = $region33
  $region32: #{model_forward.10} parent=0 // pred_region
    _
  $region33: #{model_forward.10} parent=0 // pred_fallthru
    _
  // Predicated region
  $region34: #{model_forward.10} parent=0 // pred_check
    _
  $region35: #{model_forward.10} parent=0 // pred_check_branch
    %34 = sbr.rel (0) target = $region37
  $region36: #{model_forward.10} parent=0 // pred_region
    _
  $region37: #{model_forward.10} parent=0 // pred_fallthru
    _
  // Predicated region
  $region38: #{model_forward.10} parent=0 // pred_check
    _
  $region39: #{model_forward.10} parent=0 // pred_check_branch
    %36 = sbr.rel (0) target = $region41
  $region40: #{model_forward.10} parent=0 // pred_region
    _
  $region41: #{model_forward.10} parent=0 // pred_fallthru
    _
  // Predicated region
  $region42: #{model_forward.10} parent=0 // pred_check
    _
  $region43: #{model_forward.10} parent=0 // pred_check_branch
    %38 = sbr.rel (0) target = $region45
  $region44: #{model_forward.10} parent=0 // pred_region
    _
  $region45: #{model_forward.10} parent=0 // pred_fallthru
    _
  // Predicated region
  $region46: #{model_forward.10} parent=0 // pred_check
    _
  $region47: #{model_forward.10} parent=0 // pred_check_branch
    %40 = sbr.rel (0) target = $region49
  $region48: #{model_forward.10} parent=0 // pred_region
    _
  $region49: #{model_forward.10} parent=0 // pred_fallthru
    _
  %v41 = vlaneseq
  %v42 = vand.u32 %v41, 127
  %v43 = vld [vmem:[%s0] sm:$0xff]
  %v44 = vld [vmem:[%s0 + $0x8] sm:$0xff]
  %v45 = vld [vmem:[%s0 + $0x10] sm:$0xff]
  %v46 = vld [vmem:[%s0 + $0x18] sm:$0xff]
  %v47 = vld [vmem:[%s0 + $0x20] sm:$0xff]
  %v48 = vld [vmem:[%s0 + $0x28] sm:$0xff]
  %v49 = vld [vmem:[%s0 + $0x30] sm:$0xff]
  %v50 = vld [vmem:[%s0 + $0x38] sm:$0xff]
  %v51 = vld [vmem:[%s0 + $0x40] sm:$0xff]
  %v52 = vld [vmem:[%s0 + $0x48] sm:$0xff]
  %v53 = vld [vmem:[%s0 + $0x50] sm:$0xff]
  %v54 = vld [vmem:[%s0 + $0x58] sm:$0xff]
  %v55 = vld [vmem:[%s0 + $0x60] sm:$0xff]
  %v56 = vld [vmem:[%s0 + $0x68] sm:$0xff]
  %v57 = vld [vmem:[%s0 + $0x70] sm:$0xff]
  %v58 = vld [vmem:[%s0 + $0x78] sm:$0xff]
  %59 = vset.pattern.permute.xlu0 0
  %60 = vperm.xlu0 %59, %v43
  %v61 = vpop.permute.xlu0 %60
  %62 = vset.pattern.permute.xlu0 0
  %63 = vperm.xlu0 %62, %v44
  %v64 = vpop.permute.xlu0 %63
  %65 = vset.pattern.permute.xlu0 0
  %66 = vperm.xlu0 %65, %v45
  %v67 = vpop.permute.xlu0 %66
  %68 = vset.pattern.permute.xlu0 0
  %69 = vperm.xlu0 %68, %v46
  %v70 = vpop.permute.xlu0 %69
  %71 = vset.pattern.permute.xlu0 0
  %72 = vperm.xlu0 %71, %v47
  %v73 = vpop.permute.xlu0 %72
  %74 = vset.pattern.permute.xlu0 0
  %75 = vperm.xlu0 %74, %v48
  %v76 = vpop.permute.xlu0 %75
  %77 = vset.pattern.permute.xlu0 0
  %78 = vperm.xlu0 %77, %v49
  %v79 = vpop.permute.xlu0 %78
  %80 = vset.pattern.permute.xlu0 0
  %81 = vperm.xlu0 %80, %v50
  %v82 = vpop.permute.xlu0 %81
  %83 = vset.pattern.permute.xlu0 0
  %84 = vperm.xlu0 %83, %v51
  %v85 = vpop.permute.xlu0 %84
  %86 = vset.pattern.permute.xlu0 0
  %87 = vperm.xlu0 %86, %v52
  %v88 = vpop.permute.xlu0 %87
  %89 = vset.pattern.permute.xlu0 0
  %90 = vperm.xlu0 %89, %v53
  %v91 = vpop.permute.xlu0 %90
  %92 = vset.pattern.permute.xlu0 0
  %93 = vperm.xlu0 %92, %v54
  %v94 = vpop.permute.xlu0 %93
  %95 = vset.pattern.permute.xlu0 0
  %96 = vperm.xlu0 %95, %v55
  %v97 = vpop.permute.xlu0 %96
  %98 = vset.pattern.permute.xlu0 0
  %99 = vperm.xlu0 %98, %v56
  %v100 = vpop.permute.xlu0 %99
  %101 = vset.pattern.permute.xlu0 0
  %102 = vperm.xlu0 %101, %v57
  %v103 = vpop.permute.xlu0 %102
  %104 = vset.pattern.permute.xlu0 0
  %105 = vperm.xlu0 %104, %v58
  %v106 = vpop.permute.xlu0 %105
  %vm107 = vcmp.eq.s32.totalorder %v42, %v61
  %vm108 = vcmp.eq.s32.totalorder %v42, %v64
  %vm109 = vcmp.eq.s32.totalorder %v42, %v67
  %vm110 = vcmp.eq.s32.totalorder %v42, %v70
  %vm111 = vcmp.eq.s32.totalorder %v42, %v73
  %vm112 = vcmp.eq.s32.totalorder %v42, %v76
  %vm113 = vcmp.eq.s32.totalorder %v42, %v79
  %vm114 = vcmp.eq.s32.totalorder %v42, %v82
  %vm115 = vcmp.eq.s32.totalorder %v42, %v85
  %vm116 = vcmp.eq.s32.totalorder %v42, %v88
  %vm117 = vcmp.eq.s32.totalorder %v42, %v91
  %vm118 = vcmp.eq.s32.totalorder %v42, %v94
  %vm119 = vcmp.eq.s32.totalorder %v42, %v97
  %vm120 = vcmp.eq.s32.totalorder %v42, %v100
  %vm121 = vcmp.eq.s32.totalorder %v42, %v103
  %vm122 = vcmp.eq.s32.totalorder %v42, %v106
  %v123 = vsel %vm107, 1, 0
  %v124 = vsel %vm108, 1, 0
  %v125 = vsel %vm109, 1, 0
  %v126 = vsel %vm110, 1, 0
  %v127 = vsel %vm111, 1, 0
  %v128 = vsel %vm112, 1, 0
  %v129 = vsel %vm113, 1, 0
  %v130 = vsel %vm114, 1, 0
  %v131 = vsel %vm115, 1, 0
  %v132 = vsel %vm116, 1, 0
  %v133 = vsel %vm117, 1, 0
  %v134 = vsel %vm118, 1, 0
  %v135 = vsel %vm119, 1, 0
  %v136 = vsel %vm120, 1, 0
  %v137 = vsel %vm121, 1, 0
  %v138 = vsel %vm122, 1, 0
  %v139 = vcvt.s32.f32 %v123
  %v140 = vcvt.s32.f32 %v124
  %v141 = vcvt.s32.f32 %v125
  %v142 = vcvt.s32.f32 %v126
  %v143 = vcvt.s32.f32 %v127
  %v144 = vcvt.s32.f32 %v128
  %v145 = vcvt.s32.f32 %v129
  %v146 = vcvt.s32.f32 %v130
  %v147 = vcvt.s32.f32 %v131
  %v148 = vcvt.s32.f32 %v132
  %v149 = vcvt.s32.f32 %v133
  %v150 = vcvt.s32.f32 %v134
  %v151 = vcvt.s32.f32 %v135
  %v152 = vcvt.s32.f32 %v136
  %v153 = vcvt.s32.f32 %v137
  %v154 = vcvt.s32.f32 %v138
  %v155 = vld [vmem:[%s2] sm:$0xff]
  %v156 = vld [vmem:[%s2 + $0x8] sm:$0xff]
  %v157 = vld [vmem:[%s2 + $0x10] sm:$0xff]
  %v158 = vld [vmem:[%s2 + $0x18] sm:$0xff]
  %vm159 = vcmask 261120
  %v161 = vsel %vm159, %v139, 0
  %v164 = vsel %vm159, %v140, 0
  %v167 = vsel %vm159, %v141, 0
  %v170 = vsel %vm159, %v142, 0
  %v173 = vsel %vm159, %v143, 0
  %v176 = vsel %vm159, %v144, 0
  %v179 = vsel %vm159, %v145, 0
  %v182 = vsel %vm159, %v146, 0
  %v185 = vsel %vm159, %v147, 0
  %v188 = vsel %vm159, %v148, 0
  %v191 = vsel %vm159, %v149, 0
  %v194 = vsel %vm159, %v150, 0
  %v197 = vsel %vm159, %v151, 0
  %v200 = vsel %vm159, %v152, 0
  %v203 = vsel %vm159, %v153, 0
  %v206 = vsel %vm159, %v154, 0
  %208 = vmatpush.msra.mxu0 0.0
  %209 = vmatpush.msra.mxu0 0.0
  %210 = vmatpush.msra.mxu0 0.0
  %211 = vmatpush.msra.mxu0 0.0
  %212 = vmatpush.msra.mxu0 0.0
  %213 = vmatpush.msra.mxu0 0.0
  %214 = vmatpush.msra.mxu0 0.0
  %215 = vmatpush.msra.mxu0 0.0
  %216 = vmatpush.msra.mxu0 0.0
  %217 = vmatpush.msra.mxu0 0.0
  %218 = vmatpush.msra.mxu0 0.0
  %219 = vmatpush.msra.mxu0 0.0
  %220 = vmatpush.msra.mxu0 %v158
  %221 = vmatpush.msra.mxu0 %v157
  %222 = vmatpush.msra.mxu0 %v156
  %223 = vmatpush.msra.mxu0 %v155
  %224 = vmatmul.f32.gmra.mxu0 %v161
  %v225 = vpop.f32.mrf.mxu0
  %v226 = vadd.f32 0.0, %v225
  %227 = vmatmul.f32.gmra.mxu0 %v164
  %v228 = vpop.f32.mrf.mxu0
  %v229 = vadd.f32 0.0, %v228
  %230 = vmatmul.f32.gmra.mxu0 %v167
  %v231 = vpop.f32.mrf.mxu0
  %v232 = vadd.f32 0.0, %v231
  %233 = vmatmul.f32.gmra.mxu0 %v170
  %v234 = vpop.f32.mrf.mxu0
  %v235 = vadd.f32 0.0, %v234
  %236 = vmatmul.f32.gmra.mxu0 %v173
  %v237 = vpop.f32.mrf.mxu0
  %v238 = vadd.f32 0.0, %v237
  %239 = vmatmul.f32.gmra.mxu0 %v176
  %v240 = vpop.f32.mrf.mxu0
  %v241 = vadd.f32 0.0, %v240
  %242 = vmatmul.f32.gmra.mxu0 %v179
  %v243 = vpop.f32.mrf.mxu0
  %v244 = vadd.f32 0.0, %v243
  %245 = vmatmul.f32.gmra.mxu0 %v182
  %v246 = vpop.f32.mrf.mxu0
  %v247 = vadd.f32 0.0, %v246
  %248 = vmatmul.f32.gmra.mxu0 %v185
  %v249 = vpop.f32.mrf.mxu0
  %v250 = vadd.f32 0.0, %v249
  %251 = vmatmul.f32.gmra.mxu0 %v188
  %v252 = vpop.f32.mrf.mxu0
  %v253 = vadd.f32 0.0, %v252
  %254 = vmatmul.f32.gmra.mxu0 %v191
  %v255 = vpop.f32.mrf.mxu0
  %v256 = vadd.f32 0.0, %v255
  %257 = vmatmul.f32.gmra.mxu0 %v194
  %v258 = vpop.f32.mrf.mxu0
  %v259 = vadd.f32 0.0, %v258
  %260 = vmatmul.f32.gmra.mxu0 %v197
  %v261 = vpop.f32.mrf.mxu0
  %v262 = vadd.f32 0.0, %v261
  %263 = vmatmul.f32.gmra.mxu0 %v200
  %v264 = vpop.f32.mrf.mxu0
  %v265 = vadd.f32 0.0, %v264
  %266 = vmatmul.f32.gmra.mxu0 %v203
  %v267 = vpop.f32.mrf.mxu0
  %v268 = vadd.f32 0.0, %v267
  %269 = vmatmul.f32.gmra.mxu0 %v206
  %v270 = vpop.f32.mrf.mxu0
  %v271 = vadd.f32 0.0, %v270
  %272 = vdwg.mxu0
  %v273 = vld [vmem:[%s3] sm:$0xff]
  %v274 = vld [vmem:[%s3 + $0x8] sm:$0xff]
  %v275 = vld [vmem:[%s1] sm:$0xff]
  %v276 = vld [vmem:[%s1 + $0x8] sm:$0xff]
  %v277 = vld [vmem:[%s1 + $0x10] sm:$0xff]
  %v278 = vld [vmem:[%s1 + $0x18] sm:$0xff]
  %v279 = vld [vmem:[%s1 + $0x20] sm:$0xff]
  %v280 = vld [vmem:[%s1 + $0x28] sm:$0xff]
  %v281 = vld [vmem:[%s1 + $0x30] sm:$0xff]
  %v282 = vld [vmem:[%s1 + $0x38] sm:$0xff]
  %v283 = vld [vmem:[%s1 + $0x40] sm:$0xff]
  %v284 = vld [vmem:[%s1 + $0x48] sm:$0xff]
  %v285 = vld [vmem:[%s1 + $0x50] sm:$0xff]
  %v286 = vld [vmem:[%s1 + $0x58] sm:$0xff]
  %v287 = vld [vmem:[%s1 + $0x60] sm:$0xff]
  %v288 = vld [vmem:[%s1 + $0x68] sm:$0xff]
  %v289 = vld [vmem:[%s1 + $0x70] sm:$0xff]
  %v290 = vld [vmem:[%s1 + $0x78] sm:$0xff]
  %v291 = vld [vmem:[%s4] sm:$0xf]
  %vm292 = vcmask 31744
  %v294 = vsel %vm292, %v275, 0
  %v297 = vsel %vm292, %v276, 0
  %v300 = vsel %vm292, %v277, 0
  %v303 = vsel %vm292, %v278, 0
  %v306 = vsel %vm292, %v279, 0
  %v309 = vsel %vm292, %v280, 0
  %v312 = vsel %vm292, %v281, 0
  %v315 = vsel %vm292, %v282, 0
  %v318 = vsel %vm292, %v283, 0
  %v321 = vsel %vm292, %v284, 0
  %v324 = vsel %vm292, %v285, 0
  %v327 = vsel %vm292, %v286, 0
  %v330 = vsel %vm292, %v287, 0
  %v333 = vsel %vm292, %v288, 0
  %v336 = vsel %vm292, %v289, 0
  %v339 = vsel %vm292, %v290, 0
  %vm341 = vcmask 1043456
  %v343 = vsel %vm341, %v291, 0
  %345 = vmatpush.msra.mxu0 0.0
  %346 = vmatpush.msra.mxu0 0.0
  %347 = vmatpush.msra.mxu0 0.0
  %348 = vmatpush.msra.mxu0 0.0
  %349 = vmatpush.msra.mxu0 0.0
  %350 = vmatpush.msra.mxu0 0.0
  %351 = vmatpush.msra.mxu0 0.0
  %352 = vmatpush.msra.mxu0 0.0
  %353 = vmatpush.msra.mxu0 0.0
  %354 = vmatpush.msra.mxu0 0.0
  %355 = vmatpush.msra.mxu0 0.0
  %356 = vmatpush.msra.mxu0 0.0
  %357 = vmatpush.msra.mxu0 0.0
  %358 = vmatpush.msra.mxu0 0.0
  %359 = vmatpush.msra.mxu0 0.0
  %360 = vmatpush.msra.mxu0 %v343
  %361 = vmatmul.f32.gmra.mxu0 %v294
  %v362 = vpop.f32.mrf.mxu0
  %v363 = vadd.f32 0.0, %v362
  %364 = vmatmul.f32.gmra.mxu0 %v297
  %v365 = vpop.f32.mrf.mxu0
  %v366 = vadd.f32 0.0, %v365
  %367 = vmatmul.f32.gmra.mxu0 %v300
  %v368 = vpop.f32.mrf.mxu0
  %v369 = vadd.f32 0.0, %v368
  %370 = vmatmul.f32.gmra.mxu0 %v303
  %v371 = vpop.f32.mrf.mxu0
  %v372 = vadd.f32 0.0, %v371
  %373 = vmatmul.f32.gmra.mxu0 %v306
  %v374 = vpop.f32.mrf.mxu0
  %v375 = vadd.f32 0.0, %v374
  %376 = vmatmul.f32.gmra.mxu0 %v309
  %v377 = vpop.f32.mrf.mxu0
  %v378 = vadd.f32 0.0, %v377
  %379 = vmatmul.f32.gmra.mxu0 %v312
  %v380 = vpop.f32.mrf.mxu0
  %v381 = vadd.f32 0.0, %v380
  %382 = vmatmul.f32.gmra.mxu0 %v315
  %v383 = vpop.f32.mrf.mxu0
  %v384 = vadd.f32 0.0, %v383
  %385 = vmatmul.f32.gmra.mxu0 %v318
  %v386 = vpop.f32.mrf.mxu0
  %v387 = vadd.f32 0.0, %v386
  %388 = vmatmul.f32.gmra.mxu0 %v321
  %v389 = vpop.f32.mrf.mxu0
  %v390 = vadd.f32 0.0, %v389
  %391 = vmatmul.f32.gmra.mxu0 %v324
  %v392 = vpop.f32.mrf.mxu0
  %v393 = vadd.f32 0.0, %v392
  %394 = vmatmul.f32.gmra.mxu0 %v327
  %v395 = vpop.f32.mrf.mxu0
  %v396 = vadd.f32 0.0, %v395
  %397 = vmatmul.f32.gmra.mxu0 %v330
  %v398 = vpop.f32.mrf.mxu0
  %v399 = vadd.f32 0.0, %v398
  %400 = vmatmul.f32.gmra.mxu0 %v333
  %v401 = vpop.f32.mrf.mxu0
  %v402 = vadd.f32 0.0, %v401
  %403 = vmatmul.f32.gmra.mxu0 %v336
  %v404 = vpop.f32.mrf.mxu0
  %v405 = vadd.f32 0.0, %v404
  %406 = vmatmul.f32.gmra.mxu0 %v339
  %v407 = vpop.f32.mrf.mxu0
  %v408 = vadd.f32 0.0, %v407
  %409 = vdwg.mxu0
  %vm410 = vcmask 130048
  %v412 = vsel %vm410, %v226, 0
  %v415 = vsel %vm410, %v229, 0
  %v418 = vsel %vm410, %v232, 0
  %v421 = vsel %vm410, %v235, 0
  %v424 = vsel %vm410, %v238, 0
  %v427 = vsel %vm410, %v241, 0
  %v430 = vsel %vm410, %v244, 0
  %v433 = vsel %vm410, %v247, 0
  %v436 = vsel %vm410, %v250, 0
  %v439 = vsel %vm410, %v253, 0
  %v442 = vsel %vm410, %v256, 0
  %v445 = vsel %vm410, %v259, 0
  %v448 = vsel %vm410, %v262, 0
  %v451 = vsel %vm410, %v265, 0
  %v454 = vsel %vm410, %v268, 0
  %v457 = vsel %vm410, %v271, 0
  %459 = vmatpush.msra.mxu0 0.0
  %460 = vmatpush.msra.mxu0 0.0
  %461 = vmatpush.msra.mxu0 0.0
  %462 = vmatpush.msra.mxu0 0.0
  %463 = vmatpush.msra.mxu0 0.0
  %464 = vmatpush.msra.mxu0 0.0
  %465 = vmatpush.msra.mxu0 0.0
  %466 = vmatpush.msra.mxu0 0.0
  %467 = vmatpush.msra.mxu0 0.0
  %468 = vmatpush.msra.mxu0 0.0
  %469 = vmatpush.msra.mxu0 0.0
  %470 = vmatpush.msra.mxu0 0.0
  %471 = vmatpush.msra.mxu0 0.0
  %472 = vmatpush.msra.mxu0 0.0
  %473 = vmatpush.msra.mxu0 %v274
  %474 = vmatpush.msra.mxu0 %v273
  %475 = vmatmul.f32.gmra.mxu0 %v412
  %v476 = vpop.f32.mrf.mxu0
  %v477 = vadd.f32 %v363, %v476
  %478 = vmatmul.f32.gmra.mxu0 %v415
  %v479 = vpop.f32.mrf.mxu0
  %v480 = vadd.f32 %v366, %v479
  %481 = vmatmul.f32.gmra.mxu0 %v418
  %v482 = vpop.f32.mrf.mxu0
  %v483 = vadd.f32 %v369, %v482
  %484 = vmatmul.f32.gmra.mxu0 %v421
  %v485 = vpop.f32.mrf.mxu0
  %v486 = vadd.f32 %v372, %v485
  %487 = vmatmul.f32.gmra.mxu0 %v424
  %v488 = vpop.f32.mrf.mxu0
  %v489 = vadd.f32 %v375, %v488
  %490 = vmatmul.f32.gmra.mxu0 %v427
  %v491 = vpop.f32.mrf.mxu0
  %v492 = vadd.f32 %v378, %v491
  %493 = vmatmul.f32.gmra.mxu0 %v430
  %v494 = vpop.f32.mrf.mxu0
  %v495 = vadd.f32 %v381, %v494
  %496 = vmatmul.f32.gmra.mxu0 %v433
  %v497 = vpop.f32.mrf.mxu0
  %v498 = vadd.f32 %v384, %v497
  %499 = vmatmul.f32.gmra.mxu0 %v436
  %v500 = vpop.f32.mrf.mxu0
  %v501 = vadd.f32 %v387, %v500
  %502 = vmatmul.f32.gmra.mxu0 %v439
  %v503 = vpop.f32.mrf.mxu0
  %v504 = vadd.f32 %v390, %v503
  %505 = vmatmul.f32.gmra.mxu0 %v442
  %v506 = vpop.f32.mrf.mxu0
  %v507 = vadd.f32 %v393, %v506
  %508 = vmatmul.f32.gmra.mxu0 %v445
  %v509 = vpop.f32.mrf.mxu0
  %v510 = vadd.f32 %v396, %v509
  %511 = vmatmul.f32.gmra.mxu0 %v448
  %v512 = vpop.f32.mrf.mxu0
  %v513 = vadd.f32 %v399, %v512
  %514 = vmatmul.f32.gmra.mxu0 %v451
  %v515 = vpop.f32.mrf.mxu0
  %v516 = vadd.f32 %v402, %v515
  %517 = vmatmul.f32.gmra.mxu0 %v454
  %v518 = vpop.f32.mrf.mxu0
  %v519 = vadd.f32 %v405, %v518
  %520 = vmatmul.f32.gmra.mxu0 %v457
  %v521 = vpop.f32.mrf.mxu0
  %v522 = vadd.f32 %v408, %v521
  %523 = vdwg.mxu0
  %v524 = vld [vmem:[%s5] sm:$0x1]
  %v526 = vperm.slane %v524, 0
  %v528 = vadd.f32 %v477, %v526
  %v529 = vadd.f32 %v480, %v526
  %v530 = vadd.f32 %v483, %v526
  %v531 = vadd.f32 %v486, %v526
  %v532 = vadd.f32 %v489, %v526
  %v533 = vadd.f32 %v492, %v526
  %v534 = vadd.f32 %v495, %v526
  %v535 = vadd.f32 %v498, %v526
  %v536 = vadd.f32 %v501, %v526
  %v537 = vadd.f32 %v504, %v526
  %v538 = vadd.f32 %v507, %v526
  %v539 = vadd.f32 %v510, %v526
  %v540 = vadd.f32 %v513, %v526
  %v541 = vadd.f32 %v516, %v526
  %v542 = vadd.f32 %v519, %v526
  %v543 = vadd.f32 %v522, %v526
  %v544 = vmax.f32 %v528, 0.0
  %v545 = vmax.f32 %v529, 0.0
  %v546 = vmax.f32 %v530, 0.0
  %v547 = vmax.f32 %v531, 0.0
  %v548 = vmax.f32 %v532, 0.0
  %v549 = vmax.f32 %v533, 0.0
  %v550 = vmax.f32 %v534, 0.0
  %v551 = vmax.f32 %v535, 0.0
  %v552 = vmax.f32 %v536, 0.0
  %v553 = vmax.f32 %v537, 0.0
  %v554 = vmax.f32 %v538, 0.0
  %v555 = vmax.f32 %v539, 0.0
  %v556 = vmax.f32 %v540, 0.0
  %v557 = vmax.f32 %v541, 0.0
  %v558 = vmax.f32 %v542, 0.0
  %v559 = vmax.f32 %v543, 0.0
  %v560 = vld [vmem:[%s6] sm:$0xff]
  %v561 = vld [vmem:[%s6 + $0x8] sm:$0xff]
  %v562 = vld [vmem:[%s7] sm:$0x1]
  %v564 = vperm.slane %v562, 0
  %v567 = vsel %vm410, %v544, 0
  %v570 = vsel %vm410, %v545, 0
  %v573 = vsel %vm410, %v546, 0
  %v576 = vsel %vm410, %v547, 0
  %v579 = vsel %vm410, %v548, 0
  %v582 = vsel %vm410, %v549, 0
  %v585 = vsel %vm410, %v550, 0
  %v588 = vsel %vm410, %v551, 0
  %v591 = vsel %vm410, %v552, 0
  %v594 = vsel %vm410, %v553, 0
  %v597 = vsel %vm410, %v554, 0
  %v600 = vsel %vm410, %v555, 0
  %v603 = vsel %vm410, %v556, 0
  %v606 = vsel %vm410, %v557, 0
  %v609 = vsel %vm410, %v558, 0
  %v612 = vsel %vm410, %v559, 0
  %614 = vmatpush.msra.mxu0 0.0
  %615 = vmatpush.msra.mxu0 0.0
  %616 = vmatpush.msra.mxu0 0.0
  %617 = vmatpush.msra.mxu0 0.0
  %618 = vmatpush.msra.mxu0 0.0
  %619 = vmatpush.msra.mxu0 0.0
  %620 = vmatpush.msra.mxu0 0.0
  %621 = vmatpush.msra.mxu0 0.0
  %622 = vmatpush.msra.mxu0 0.0
  %623 = vmatpush.msra.mxu0 0.0
  %624 = vmatpush.msra.mxu0 0.0
  %625 = vmatpush.msra.mxu0 0.0
  %626 = vmatpush.msra.mxu0 0.0
  %627 = vmatpush.msra.mxu0 0.0
  %628 = vmatpush.msra.mxu0 %v561
  %629 = vmatpush.msra.mxu0 %v560
  %630 = vmatmul.f32.gmra.mxu0 %v567
  %v631 = vpop.f32.mrf.mxu0
  %v632 = vadd.f32 %v564, %v631
  %633 = vmatmul.f32.gmra.mxu0 %v570
  %v634 = vpop.f32.mrf.mxu0
  %v635 = vadd.f32 %v564, %v634
  %636 = vmatmul.f32.gmra.mxu0 %v573
  %v637 = vpop.f32.mrf.mxu0
  %v638 = vadd.f32 %v564, %v637
  %639 = vmatmul.f32.gmra.mxu0 %v576
  %v640 = vpop.f32.mrf.mxu0
  %v641 = vadd.f32 %v564, %v640
  %642 = vmatmul.f32.gmra.mxu0 %v579
  %v643 = vpop.f32.mrf.mxu0
  %v644 = vadd.f32 %v564, %v643
  %645 = vmatmul.f32.gmra.mxu0 %v582
  %v646 = vpop.f32.mrf.mxu0
  %v647 = vadd.f32 %v564, %v646
  %648 = vmatmul.f32.gmra.mxu0 %v585
  %v649 = vpop.f32.mrf.mxu0
  %v650 = vadd.f32 %v564, %v649
  %651 = vmatmul.f32.gmra.mxu0 %v588
  %v652 = vpop.f32.mrf.mxu0
  %v653 = vadd.f32 %v564, %v652
  %654 = vmatmul.f32.gmra.mxu0 %v591
  %v655 = vpop.f32.mrf.mxu0
  %v656 = vadd.f32 %v564, %v655
  %657 = vmatmul.f32.gmra.mxu0 %v594
  %v658 = vpop.f32.mrf.mxu0
  %v659 = vadd.f32 %v564, %v658
  %660 = vmatmul.f32.gmra.mxu0 %v597
  %v661 = vpop.f32.mrf.mxu0
  %v662 = vadd.f32 %v564, %v661
  %663 = vmatmul.f32.gmra.mxu0 %v600
  %v664 = vpop.f32.mrf.mxu0
  %v665 = vadd.f32 %v564, %v664
  %666 = vmatmul.f32.gmra.mxu0 %v603
  %v667 = vpop.f32.mrf.mxu0
  %v668 = vadd.f32 %v564, %v667
  %669 = vmatmul.f32.gmra.mxu0 %v606
  %v670 = vpop.f32.mrf.mxu0
  %v671 = vadd.f32 %v564, %v670
  %672 = vmatmul.f32.gmra.mxu0 %v609
  %v673 = vpop.f32.mrf.mxu0
  %v674 = vadd.f32 %v564, %v673
  %675 = vmatmul.f32.gmra.mxu0 %v612
  %v676 = vpop.f32.mrf.mxu0
  %v677 = vadd.f32 %v564, %v676
  %678 = vdwg.mxu0
  %v679 = vmax.f32 %v632, 0.0
  %v680 = vmax.f32 %v635, 0.0
  %v681 = vmax.f32 %v638, 0.0
  %v682 = vmax.f32 %v641, 0.0
  %v683 = vmax.f32 %v644, 0.0
  %v684 = vmax.f32 %v647, 0.0
  %v685 = vmax.f32 %v650, 0.0
  %v686 = vmax.f32 %v653, 0.0
  %v687 = vmax.f32 %v656, 0.0
  %v688 = vmax.f32 %v659, 0.0
  %v689 = vmax.f32 %v662, 0.0
  %v690 = vmax.f32 %v665, 0.0
  %v691 = vmax.f32 %v668, 0.0
  %v692 = vmax.f32 %v671, 0.0
  %v693 = vmax.f32 %v674, 0.0
  %v694 = vmax.f32 %v677, 0.0
  %v695 = vld [vmem:[%s8] sm:$0xff]
  %v696 = vld [vmem:[%s8 + $0x8] sm:$0xff]
  %v697 = vld [vmem:[%s9] sm:$0x1]
  %v699 = vperm.slane %v697, 0
  %v702 = vsel %vm410, %v679, 0
  %v705 = vsel %vm410, %v680, 0
  %v708 = vsel %vm410, %v681, 0
  %v711 = vsel %vm410, %v682, 0
  %v714 = vsel %vm410, %v683, 0
  %v717 = vsel %vm410, %v684, 0
  %v720 = vsel %vm410, %v685, 0
  %v723 = vsel %vm410, %v686, 0
  %v726 = vsel %vm410, %v687, 0
  %v729 = vsel %vm410, %v688, 0
  %v732 = vsel %vm410, %v689, 0
  %v735 = vsel %vm410, %v690, 0
  %v738 = vsel %vm410, %v691, 0
  %v741 = vsel %vm410, %v692, 0
  %v744 = vsel %vm410, %v693, 0
  %v747 = vsel %vm410, %v694, 0
  %749 = vmatpush.msra.mxu0 0.0
  %750 = vmatpush.msra.mxu0 0.0
  %751 = vmatpush.msra.mxu0 0.0
  %752 = vmatpush.msra.mxu0 0.0
  %753 = vmatpush.msra.mxu0 0.0
  %754 = vmatpush.msra.mxu0 0.0
  %755 = vmatpush.msra.mxu0 0.0
  %756 = vmatpush.msra.mxu0 0.0
  %757 = vmatpush.msra.mxu0 0.0
  %758 = vmatpush.msra.mxu0 0.0
  %759 = vmatpush.msra.mxu0 0.0
  %760 = vmatpush.msra.mxu0 0.0
  %761 = vmatpush.msra.mxu0 0.0
  %762 = vmatpush.msra.mxu0 0.0
  %763 = vmatpush.msra.mxu0 %v696
  %764 = vmatpush.msra.mxu0 %v695
  %765 = vmatmul.f32.gmra.mxu0 %v702
  %v766 = vpop.f32.mrf.mxu0
  %v767 = vadd.f32 %v699, %v766
  %768 = vmatmul.f32.gmra.mxu0 %v705
  %v769 = vpop.f32.mrf.mxu0
  %v770 = vadd.f32 %v699, %v769
  %771 = vmatmul.f32.gmra.mxu0 %v708
  %v772 = vpop.f32.mrf.mxu0
  %v773 = vadd.f32 %v699, %v772
  %774 = vmatmul.f32.gmra.mxu0 %v711
  %v775 = vpop.f32.mrf.mxu0
  %v776 = vadd.f32 %v699, %v775
  %777 = vmatmul.f32.gmra.mxu0 %v714
  %v778 = vpop.f32.mrf.mxu0
  %v779 = vadd.f32 %v699, %v778
  %780 = vmatmul.f32.gmra.mxu0 %v717
  %v781 = vpop.f32.mrf.mxu0
  %v782 = vadd.f32 %v699, %v781
  %783 = vmatmul.f32.gmra.mxu0 %v720
  %v784 = vpop.f32.mrf.mxu0
  %v785 = vadd.f32 %v699, %v784
  %786 = vmatmul.f32.gmra.mxu0 %v723
  %v787 = vpop.f32.mrf.mxu0
  %v788 = vadd.f32 %v699, %v787
  %789 = vmatmul.f32.gmra.mxu0 %v726
  %v790 = vpop.f32.mrf.mxu0
  %v791 = vadd.f32 %v699, %v790
  %792 = vmatmul.f32.gmra.mxu0 %v729
  %v793 = vpop.f32.mrf.mxu0
  %v794 = vadd.f32 %v699, %v793
  %795 = vmatmul.f32.gmra.mxu0 %v732
  %v796 = vpop.f32.mrf.mxu0
  %v797 = vadd.f32 %v699, %v796
  %798 = vmatmul.f32.gmra.mxu0 %v735
  %v799 = vpop.f32.mrf.mxu0
  %v800 = vadd.f32 %v699, %v799
  %801 = vmatmul.f32.gmra.mxu0 %v738
  %v802 = vpop.f32.mrf.mxu0
  %v803 = vadd.f32 %v699, %v802
  %804 = vmatmul.f32.gmra.mxu0 %v741
  %v805 = vpop.f32.mrf.mxu0
  %v806 = vadd.f32 %v699, %v805
  %807 = vmatmul.f32.gmra.mxu0 %v744
  %v808 = vpop.f32.mrf.mxu0
  %v809 = vadd.f32 %v699, %v808
  %810 = vmatmul.f32.gmra.mxu0 %v747
  %v811 = vpop.f32.mrf.mxu0
  %v812 = vadd.f32 %v699, %v811
  %813 = vdwg.mxu0
  %v814 = vmax.f32 %v767, 0.0
  %v815 = vmax.f32 %v770, 0.0
  %v816 = vmax.f32 %v773, 0.0
  %v817 = vmax.f32 %v776, 0.0
  %v818 = vmax.f32 %v779, 0.0
  %v819 = vmax.f32 %v782, 0.0
  %v820 = vmax.f32 %v785, 0.0
  %v821 = vmax.f32 %v788, 0.0
  %v822 = vmax.f32 %v791, 0.0
  %v823 = vmax.f32 %v794, 0.0
  %v824 = vmax.f32 %v797, 0.0
  %v825 = vmax.f32 %v800, 0.0
  %v826 = vmax.f32 %v803, 0.0
  %v827 = vmax.f32 %v806, 0.0
  %v828 = vmax.f32 %v809, 0.0
  %v829 = vmax.f32 %v812, 0.0
  %v830 = vmax.f32 %v814, %v816
  %v831 = vmax.f32 %v815, %v817
  %v832 = vmax.f32 %v830, %v818
  %v833 = vmax.f32 %v831, %v819
  %v834 = vmax.f32 %v832, %v820
  %v835 = vmax.f32 %v833, %v821
  %v836 = vmax.f32 %v834, %v822
  %v837 = vmax.f32 %v835, %v823
  %v838 = vmax.f32 %v836, %v824
  %v839 = vmax.f32 %v837, %v825
  %v840 = vmax.f32 %v838, %v826
  %v841 = vmax.f32 %v839, %v827
  %v842 = vmax.f32 %v840, %v828
  %v843 = vmax.f32 %v841, %v829
  %v844 = vld [vmem:[%s10] sm:$0xff]
  %v845 = vld [vmem:[%s10 + $0x8] sm:$0xff]
  %v846 = vld [vmem:[%s11] sm:$0x1]
  %v848 = vperm.slane %v846, 0
  %v851 = vsel %vm410, %v842, 0
  %v854 = vsel %vm410, %v843, 0
  %856 = vmatpush.msra.mxu0 0.0
  %857 = vmatpush.msra.mxu0 0.0
  %858 = vmatpush.msra.mxu0 0.0
  %859 = vmatpush.msra.mxu0 0.0
  %860 = vmatpush.msra.mxu0 0.0
  %861 = vmatpush.msra.mxu0 0.0
  %862 = vmatpush.msra.mxu0 0.0
  %863 = vmatpush.msra.mxu0 0.0
  %864 = vmatpush.msra.mxu0 0.0
  %865 = vmatpush.msra.mxu0 0.0
  %866 = vmatpush.msra.mxu0 0.0
  %867 = vmatpush.msra.mxu0 0.0
  %868 = vmatpush.msra.mxu0 0.0
  %869 = vmatpush.msra.mxu0 0.0
  %870 = vmatpush.msra.mxu0 %v845
  %871 = vmatpush.msra.mxu0 %v844
  %872 = vmatmul.f32.gmra.mxu0 %v851
  %v873 = vpop.f32.mrf.mxu0
  %v874 = vadd.f32 %v848, %v873
  %875 = vmatmul.f32.gmra.mxu0 %v854
  %v876 = vpop.f32.mrf.mxu0
  %v877 = vadd.f32 %v848, %v876
  %878 = vdwg.mxu0
  %v879 = vmax.f32 %v874, 0.0
  %v880 = vmax.f32 %v877, 0.0
  %881 = vst.msk [vmem:[%s12] sm:$0xff] %vm410, %v879
  %882 = vst.msk [vmem:[%s12 + $0x8] sm:$0xff] %vm410, %v880
  // Predicated region
  $region50: #{model_forward.10} parent=0 // pred_check
    _
  $region51: #{model_forward.10} parent=0 // pred_check_branch
    %884 = sbr.rel (0) target = $region53
  $region52: #{model_forward.10} parent=0 // pred_region
    _
  $region53: #{model_forward.10} parent=0 // pred_fallthru
    _
  // Predicated region
  $region54: #{model_forward.10} parent=0 // pred_check
    _
  $region55: #{model_forward.10} parent=0 // pred_check_branch
    %886 = sbr.rel (0) target = $region57
  $region56: #{model_forward.10} parent=0 // pred_region
    _
  $region57: #{model_forward.10} parent=0 // pred_fallthru
    _

// kernel: model_forward.11
$region0: #{model_forward.11}
  #allocation0 [shape = 'u32[]', space=smem, size = 0x4, offset = 0x4, fixed_abs, tag = 'smem constant byte address 0x4 - core index']
  #allocation1 [shape = 'u32[72,128]{1,0:T(1,128)}', space=vmem, size = 0x9000, scoped, tag = 'internal scratch']
  %s0 = inlined_call_operand.vmem [shape: s32[64,1], index: 0, kind: input, shape index: {}]
  %s1 = inlined_call_operand.vmem [shape: f32[64,4], index: 1, kind: input, shape index: {}]
  %s2 = inlined_call_operand.vmem [shape: f32[16,16], index: 2, kind: input, shape index: {}]
  %s3 = inlined_call_operand.vmem [shape: f32[16,16], index: 3, kind: input, shape index: {}]
  %s4 = inlined_call_operand.vmem [shape: f32[4,16], index: 4, kind: input, shape index: {}]
  %s5 = inlined_call_operand.vmem [shape: f32[1,16], index: 5, kind: input, shape index: {}]
  %s6 = inlined_call_operand.vmem [shape: f32[16,16], index: 6, kind: input, shape index: {}]
  %s7 = inlined_call_operand.vmem [shape: f32[1,16], index: 7, kind: input, shape index: {}]
  %s8 = inlined_call_operand.vmem [shape: f32[16,16], index: 8, kind: input, shape index: {}]
  %s9 = inlined_call_operand.vmem [shape: f32[1,16], index: 9, kind: input, shape index: {}]
  %s10 = inlined_call_operand.vmem [shape: f32[16,16], index: 10, kind: input, shape index: {}]
  %s11 = inlined_call_operand.vmem [shape: f32[1,16], index: 11, kind: input, shape index: {}]
  %s12 = inlined_call_operand.vmem [shape: f32[8,16], index: 12, kind: output, shape index: {}]
  %s13 = sld [smem:[#allocation0]]
  $region58: #{model_forward.11} parent=0
    _
  %s15 = ssub.s32 1, %s13
  %s16 = scalar_select 0, %s15, %s13
  // Predicated region
  $region2: #{model_forward.11} parent=0 // pred_check
    _
  $region3: #{model_forward.11} parent=0 // pred_check_branch
    %18 = sbr.rel (0) target = $region5
  $region4: #{model_forward.11} parent=0 // pred_region
    _
  $region5: #{model_forward.11} parent=0 // pred_fallthru
    _
  // Predicated region
  $region6: #{model_forward.11} parent=0 // pred_check
    _
  $region7: #{model_forward.11} parent=0 // pred_check_branch
    %20 = sbr.rel (0) target = $region9
  $region8: #{model_forward.11} parent=0 // pred_region
    _
  $region9: #{model_forward.11} parent=0 // pred_fallthru
    _
  // Predicated region
  $region10: #{model_forward.11} parent=0 // pred_check
    _
  $region11: #{model_forward.11} parent=0 // pred_check_branch
    %22 = sbr.rel (0) target = $region13
  $region12: #{model_forward.11} parent=0 // pred_region
    _
  $region13: #{model_forward.11} parent=0 // pred_fallthru
    _
  // Predicated region
  $region14: #{model_forward.11} parent=0 // pred_check
    _
  $region15: #{model_forward.11} parent=0 // pred_check_branch
    %24 = sbr.rel (0) target = $region17
  $region16: #{model_forward.11} parent=0 // pred_region
    _
  $region17: #{model_forward.11} parent=0 // pred_fallthru
    _
  // Predicated region
  $region18: #{model_forward.11} parent=0 // pred_check
    _
  $region19: #{model_forward.11} parent=0 // pred_check_branch
    %26 = sbr.rel (0) target = $region21
  $region20: #{model_forward.11} parent=0 // pred_region
    _
  $region21: #{model_forward.11} parent=0 // pred_fallthru
    _
  // Predicated region
  $region22: #{model_forward.11} parent=0 // pred_check
    _
  $region23: #{model_forward.11} parent=0 // pred_check_branch
    %28 = sbr.rel (0) target = $region25
  $region24: #{model_forward.11} parent=0 // pred_region
    _
  $region25: #{model_forward.11} parent=0 // pred_fallthru
    _
  // Predicated region
  $region26: #{model_forward.11} parent=0 // pred_check
    _
  $region27: #{model_forward.11} parent=0 // pred_check_branch
    %30 = sbr.rel (0) target = $region29
  $region28: #{model_forward.11} parent=0 // pred_region
    _
  $region29: #{model_forward.11} parent=0 // pred_fallthru
    _
  // Predicated region
  $region30: #{model_forward.11} parent=0 // pred_check
    _
  $region31: #{model_forward.11} parent=0 // pred_check_branch
    %32 = sbr.rel (0) target = $region33
  $region32: #{model_forward.11} parent=0 // pred_region
    _
  $region33: #{model_forward.11} parent=0 // pred_fallthru
    _
  // Predicated region
  $region34: #{model_forward.11} parent=0 // pred_check
    _
  $region35: #{model_forward.11} parent=0 // pred_check_branch
    %34 = sbr.rel (0) target = $region37
  $region36: #{model_forward.11} parent=0 // pred_region
    _
  $region37: #{model_forward.11} parent=0 // pred_fallthru
    _
  // Predicated region
  $region38: #{model_forward.11} parent=0 // pred_check
    _
  $region39: #{model_forward.11} parent=0 // pred_check_branch
    %36 = sbr.rel (0) target = $region41
  $region40: #{model_forward.11} parent=0 // pred_region
    _
  $region41: #{model_forward.11} parent=0 // pred_fallthru
    _
  // Predicated region
  $region42: #{model_forward.11} parent=0 // pred_check
    _
  $region43: #{model_forward.11} parent=0 // pred_check_branch
    %38 = sbr.rel (0) target = $region45
  $region44: #{model_forward.11} parent=0 // pred_region
    _
  $region45: #{model_forward.11} parent=0 // pred_fallthru
    _
  // Predicated region
  $region46: #{model_forward.11} parent=0 // pred_check
    _
  $region47: #{model_forward.11} parent=0 // pred_check_branch
    %40 = sbr.rel (0) target = $region49
  $region48: #{model_forward.11} parent=0 // pred_region
    _
  $region49: #{model_forward.11} parent=0 // pred_fallthru
    _
  %v41 = vlaneseq
  %v42 = vand.u32 %v41, 127
  %v43 = vld [vmem:[%s0] sm:$0xff]
  %v44 = vld [vmem:[%s0 + $0x8] sm:$0xff]
  %v45 = vld [vmem:[%s0 + $0x10] sm:$0xff]
  %v46 = vld [vmem:[%s0 + $0x18] sm:$0xff]
  %v47 = vld [vmem:[%s0 + $0x20] sm:$0xff]
  %v48 = vld [vmem:[%s0 + $0x28] sm:$0xff]
  %v49 = vld [vmem:[%s0 + $0x30] sm:$0xff]
  %v50 = vld [vmem:[%s0 + $0x38] sm:$0xff]
  %51 = vset.pattern.permute.xlu0 0
  %52 = vperm.xlu0 %51, %v43
  %v53 = vpop.permute.xlu0 %52
  %54 = vset.pattern.permute.xlu0 0
  %55 = vperm.xlu0 %54, %v44
  %v56 = vpop.permute.xlu0 %55
  %57 = vset.pattern.permute.xlu0 0
  %58 = vperm.xlu0 %57, %v45
  %v59 = vpop.permute.xlu0 %58
  %60 = vset.pattern.permute.xlu0 0
  %61 = vperm.xlu0 %60, %v46
  %v62 = vpop.permute.xlu0 %61
  %63 = vset.pattern.permute.xlu0 0
  %64 = vperm.xlu0 %63, %v47
  %v65 = vpop.permute.xlu0 %64
  %66 = vset.pattern.permute.xlu0 0
  %67 = vperm.xlu0 %66, %v48
  %v68 = vpop.permute.xlu0 %67
  %69 = vset.pattern.permute.xlu0 0
  %70 = vperm.xlu0 %69, %v49
  %v71 = vpop.permute.xlu0 %70
  %72 = vset.pattern.permute.xlu0 0
  %73 = vperm.xlu0 %72, %v50
  %v74 = vpop.permute.xlu0 %73
  %vm75 = vcmp.eq.s32.totalorder %v42, %v53
  %vm76 = vcmp.eq.s32.totalorder %v42, %v56
  %vm77 = vcmp.eq.s32.totalorder %v42, %v59
  %vm78 = vcmp.eq.s32.totalorder %v42, %v62
  %vm79 = vcmp.eq.s32.totalorder %v42, %v65
  %vm80 = vcmp.eq.s32.totalorder %v42, %v68
  %vm81 = vcmp.eq.s32.totalorder %v42, %v71
  %vm82 = vcmp.eq.s32.totalorder %v42, %v74
  %v83 = vsel %vm75, 1, 0
  %v84 = vsel %vm76, 1, 0
  %v85 = vsel %vm77, 1, 0
  %v86 = vsel %vm78, 1, 0
  %v87 = vsel %vm79, 1, 0
  %v88 = vsel %vm80, 1, 0
  %v89 = vsel %vm81, 1, 0
  %v90 = vsel %vm82, 1, 0
  %v91 = vcvt.s32.f32 %v83
  %v92 = vcvt.s32.f32 %v84
  %v93 = vcvt.s32.f32 %v85
  %v94 = vcvt.s32.f32 %v86
  %v95 = vcvt.s32.f32 %v87
  %v96 = vcvt.s32.f32 %v88
  %v97 = vcvt.s32.f32 %v89
  %v98 = vcvt.s32.f32 %v90
  %v99 = vld [vmem:[%s2] sm:$0xff]
  %v100 = vld [vmem:[%s2 + $0x8] sm:$0xff]
  %vm101 = vcmask 130048
  %v103 = vsel %vm101, %v91, 0
  %v106 = vsel %vm101, %v92, 0
  %v109 = vsel %vm101, %v93, 0
  %v112 = vsel %vm101, %v94, 0
  %v115 = vsel %vm101, %v95, 0
  %v118 = vsel %vm101, %v96, 0
  %v121 = vsel %vm101, %v97, 0
  %v124 = vsel %vm101, %v98, 0
  %126 = vmatpush.msra.mxu0 0.0
  %127 = vmatpush.msra.mxu0 0.0
  %128 = vmatpush.msra.mxu0 0.0
  %129 = vmatpush.msra.mxu0 0.0
  %130 = vmatpush.msra.mxu0 0.0
  %131 = vmatpush.msra.mxu0 0.0
  %132 = vmatpush.msra.mxu0 0.0
  %133 = vmatpush.msra.mxu0 0.0
  %134 = vmatpush.msra.mxu0 0.0
  %135 = vmatpush.msra.mxu0 0.0
  %136 = vmatpush.msra.mxu0 0.0
  %137 = vmatpush.msra.mxu0 0.0
  %138 = vmatpush.msra.mxu0 0.0
  %139 = vmatpush.msra.mxu0 0.0
  %140 = vmatpush.msra.mxu0 %v100
  %141 = vmatpush.msra.mxu0 %v99
  %142 = vmatmul.f32.gmra.mxu0 %v103
  %v143 = vpop.f32.mrf.mxu0
  %v144 = vadd.f32 0.0, %v143
  %145 = vmatmul.f32.gmra.mxu0 %v106
  %v146 = vpop.f32.mrf.mxu0
  %v147 = vadd.f32 0.0, %v146
  %148 = vmatmul.f32.gmra.mxu0 %v109
  %v149 = vpop.f32.mrf.mxu0
  %v150 = vadd.f32 0.0, %v149
  %151 = vmatmul.f32.gmra.mxu0 %v112
  %v152 = vpop.f32.mrf.mxu0
  %v153 = vadd.f32 0.0, %v152
  %154 = vmatmul.f32.gmra.mxu0 %v115
  %v155 = vpop.f32.mrf.mxu0
  %v156 = vadd.f32 0.0, %v155
  %157 = vmatmul.f32.gmra.mxu0 %v118
  %v158 = vpop.f32.mrf.mxu0
  %v159 = vadd.f32 0.0, %v158
  %160 = vmatmul.f32.gmra.mxu0 %v121
  %v161 = vpop.f32.mrf.mxu0
  %v162 = vadd.f32 0.0, %v161
  %163 = vmatmul.f32.gmra.mxu0 %v124
  %v164 = vpop.f32.mrf.mxu0
  %v165 = vadd.f32 0.0, %v164
  %166 = vdwg.mxu0
  %v167 = vld [vmem:[%s3] sm:$0xff]
  %v168 = vld [vmem:[%s3 + $0x8] sm:$0xff]
  %v169 = vld [vmem:[%s1] sm:$0xff]
  %v170 = vld [vmem:[%s1 + $0x8] sm:$0xff]
  %v171 = vld [vmem:[%s1 + $0x10] sm:$0xff]
  %v172 = vld [vmem:[%s1 + $0x18] sm:$0xff]
  %v173 = vld [vmem:[%s1 + $0x20] sm:$0xff]
  %v174 = vld [vmem:[%s1 + $0x28] sm:$0xff]
  %v175 = vld [vmem:[%s1 + $0x30] sm:$0xff]
  %v176 = vld [vmem:[%s1 + $0x38] sm:$0xff]
  %v177 = vld [vmem:[%s4] sm:$0xf]
  %vm178 = vcmask 31744
  %v180 = vsel %vm178, %v169, 0
  %v183 = vsel %vm178, %v170, 0
  %v186 = vsel %vm178, %v171, 0
  %v189 = vsel %vm178, %v172, 0
  %v192 = vsel %vm178, %v173, 0
  %v195 = vsel %vm178, %v174, 0
  %v198 = vsel %vm178, %v175, 0
  %v201 = vsel %vm178, %v176, 0
  %vm203 = vcmask 1043456
  %v205 = vsel %vm203, %v177, 0
  %207 = vmatpush.msra.mxu0 0.0
  %208 = vmatpush.msra.mxu0 0.0
  %209 = vmatpush.msra.mxu0 0.0
  %210 = vmatpush.msra.mxu0 0.0
  %211 = vmatpush.msra.mxu0 0.0
  %212 = vmatpush.msra.mxu0 0.0
  %213 = vmatpush.msra.mxu0 0.0
  %214 = vmatpush.msra.mxu0 0.0
  %215 = vmatpush.msra.mxu0 0.0
  %216 = vmatpush.msra.mxu0 0.0
  %217 = vmatpush.msra.mxu0 0.0
  %218 = vmatpush.msra.mxu0 0.0
  %219 = vmatpush.msra.mxu0 0.0
  %220 = vmatpush.msra.mxu0 0.0
  %221 = vmatpush.msra.mxu0 0.0
  %222 = vmatpush.msra.mxu0 %v205
  %223 = vmatmul.f32.gmra.mxu0 %v180
  %v224 = vpop.f32.mrf.mxu0
  %v225 = vadd.f32 0.0, %v224
  %226 = vmatmul.f32.gmra.mxu0 %v183
  %v227 = vpop.f32.mrf.mxu0
  %v228 = vadd.f32 0.0, %v227
  %229 = vmatmul.f32.gmra.mxu0 %v186
  %v230 = vpop.f32.mrf.mxu0
  %v231 = vadd.f32 0.0, %v230
  %232 = vmatmul.f32.gmra.mxu0 %v189
  %v233 = vpop.f32.mrf.mxu0
  %v234 = vadd.f32 0.0, %v233
  %235 = vmatmul.f32.gmra.mxu0 %v192
  %v236 = vpop.f32.mrf.mxu0
  %v237 = vadd.f32 0.0, %v236
  %238 = vmatmul.f32.gmra.mxu0 %v195
  %v239 = vpop.f32.mrf.mxu0
  %v240 = vadd.f32 0.0, %v239
  %241 = vmatmul.f32.gmra.mxu0 %v198
  %v242 = vpop.f32.mrf.mxu0
  %v243 = vadd.f32 0.0, %v242
  %244 = vmatmul.f32.gmra.mxu0 %v201
  %v245 = vpop.f32.mrf.mxu0
  %v246 = vadd.f32 0.0, %v245
  %247 = vdwg.mxu0
  %v249 = vsel %vm101, %v144, 0
  %v252 = vsel %vm101, %v147, 0
  %v255 = vsel %vm101, %v150, 0
  %v258 = vsel %vm101, %v153, 0
  %v261 = vsel %vm101, %v156, 0
  %v264 = vsel %vm101, %v159, 0
  %v267 = vsel %vm101, %v162, 0
  %v270 = vsel %vm101, %v165, 0
  %272 = vmatpush.msra.mxu0 0.0
  %273 = vmatpush.msra.mxu0 0.0
  %274 = vmatpush.msra.mxu0 0.0
  %275 = vmatpush.msra.mxu0 0.0
  %276 = vmatpush.msra.mxu0 0.0
  %277 = vmatpush.msra.mxu0 0.0
  %278 = vmatpush.msra.mxu0 0.0
  %279 = vmatpush.msra.mxu0 0.0
  %280 = vmatpush.msra.mxu0 0.0
  %281 = vmatpush.msra.mxu0 0.0
  %282 = vmatpush.msra.mxu0 0.0
  %283 = vmatpush.msra.mxu0 0.0
  %284 = vmatpush.msra.mxu0 0.0
  %285 = vmatpush.msra.mxu0 0.0
  %286 = vmatpush.msra.mxu0 %v168
  %287 = vmatpush.msra.mxu0 %v167
  %288 = vmatmul.f32.gmra.mxu0 %v249
  %v289 = vpop.f32.mrf.mxu0
  %v290 = vadd.f32 %v225, %v289
  %291 = vmatmul.f32.gmra.mxu0 %v252
  %v292 = vpop.f32.mrf.mxu0
  %v293 = vadd.f32 %v228, %v292
  %294 = vmatmul.f32.gmra.mxu0 %v255
  %v295 = vpop.f32.mrf.mxu0
  %v296 = vadd.f32 %v231, %v295
  %297 = vmatmul.f32.gmra.mxu0 %v258
  %v298 = vpop.f32.mrf.mxu0
  %v299 = vadd.f32 %v234, %v298
  %300 = vmatmul.f32.gmra.mxu0 %v261
  %v301 = vpop.f32.mrf.mxu0
  %v302 = vadd.f32 %v237, %v301
  %303 = vmatmul.f32.gmra.mxu0 %v264
  %v304 = vpop.f32.mrf.mxu0
  %v305 = vadd.f32 %v240, %v304
  %306 = vmatmul.f32.gmra.mxu0 %v267
  %v307 = vpop.f32.mrf.mxu0
  %v308 = vadd.f32 %v243, %v307
  %309 = vmatmul.f32.gmra.mxu0 %v270
  %v310 = vpop.f32.mrf.mxu0
  %v311 = vadd.f32 %v246, %v310
  %312 = vdwg.mxu0
  %v313 = vld [vmem:[%s5] sm:$0x1]
  %v315 = vperm.slane %v313, 0
  %v317 = vadd.f32 %v290, %v315
  %v318 = vadd.f32 %v293, %v315
  %v319 = vadd.f32 %v296, %v315
  %v320 = vadd.f32 %v299, %v315
  %v321 = vadd.f32 %v302, %v315
  %v322 = vadd.f32 %v305, %v315
  %v323 = vadd.f32 %v308, %v315
  %v324 = vadd.f32 %v311, %v315
  %v325 = vmax.f32 %v317, 0.0
  %v326 = vmax.f32 %v318, 0.0
  %v327 = vmax.f32 %v319, 0.0
  %v328 = vmax.f32 %v320, 0.0
  %v329 = vmax.f32 %v321, 0.0
  %v330 = vmax.f32 %v322, 0.0
  %v331 = vmax.f32 %v323, 0.0
  %v332 = vmax.f32 %v324, 0.0
  %v333 = vld [vmem:[%s6] sm:$0xff]
  %v334 = vld [vmem:[%s6 + $0x8] sm:$0xff]
  %v335 = vld [vmem:[%s7] sm:$0x1]
  %v337 = vperm.slane %v335, 0
  %v340 = vsel %vm101, %v325, 0
  %v343 = vsel %vm101, %v326, 0
  %v346 = vsel %vm101, %v327, 0
  %v349 = vsel %vm101, %v328, 0
  %v352 = vsel %vm101, %v329, 0
  %v355 = vsel %vm101, %v330, 0
  %v358 = vsel %vm101, %v331, 0
  %v361 = vsel %vm101, %v332, 0
  %363 = vmatpush.msra.mxu0 0.0
  %364 = vmatpush.msra.mxu0 0.0
  %365 = vmatpush.msra.mxu0 0.0
  %366 = vmatpush.msra.mxu0 0.0
  %367 = vmatpush.msra.mxu0 0.0
  %368 = vmatpush.msra.mxu0 0.0
  %369 = vmatpush.msra.mxu0 0.0
  %370 = vmatpush.msra.mxu0 0.0
  %371 = vmatpush.msra.mxu0 0.0
  %372 = vmatpush.msra.mxu0 0.0
  %373 = vmatpush.msra.mxu0 0.0
  %374 = vmatpush.msra.mxu0 0.0
  %375 = vmatpush.msra.mxu0 0.0
  %376 = vmatpush.msra.mxu0 0.0
  %377 = vmatpush.msra.mxu0 %v334
  %378 = vmatpush.msra.mxu0 %v333
  %379 = vmatmul.f32.gmra.mxu0 %v340
  %v380 = vpop.f32.mrf.mxu0
  %v381 = vadd.f32 %v337, %v380
  %382 = vmatmul.f32.gmra.mxu0 %v343
  %v383 = vpop.f32.mrf.mxu0
  %v384 = vadd.f32 %v337, %v383
  %385 = vmatmul.f32.gmra.mxu0 %v346
  %v386 = vpop.f32.mrf.mxu0
  %v387 = vadd.f32 %v337, %v386
  %388 = vmatmul.f32.gmra.mxu0 %v349
  %v389 = vpop.f32.mrf.mxu0
  %v390 = vadd.f32 %v337, %v389
  %391 = vmatmul.f32.gmra.mxu0 %v352
  %v392 = vpop.f32.mrf.mxu0
  %v393 = vadd.f32 %v337, %v392
  %394 = vmatmul.f32.gmra.mxu0 %v355
  %v395 = vpop.f32.mrf.mxu0
  %v396 = vadd.f32 %v337, %v395
  %397 = vmatmul.f32.gmra.mxu0 %v358
  %v398 = vpop.f32.mrf.mxu0
  %v399 = vadd.f32 %v337, %v398
  %400 = vmatmul.f32.gmra.mxu0 %v361
  %v401 = vpop.f32.mrf.mxu0
  %v402 = vadd.f32 %v337, %v401
  %403 = vdwg.mxu0
  %v404 = vmax.f32 %v381, 0.0
  %v405 = vmax.f32 %v384, 0.0
  %v406 = vmax.f32 %v387, 0.0
  %v407 = vmax.f32 %v390, 0.0
  %v408 = vmax.f32 %v393, 0.0
  %v409 = vmax.f32 %v396, 0.0
  %v410 = vmax.f32 %v399, 0.0
  %v411 = vmax.f32 %v402, 0.0
  %v412 = vld [vmem:[%s8] sm:$0xff]
  %v413 = vld [vmem:[%s8 + $0x8] sm:$0xff]
  %v414 = vld [vmem:[%s9] sm:$0x1]
  %v416 = vperm.slane %v414, 0
  %v419 = vsel %vm101, %v404, 0
  %v422 = vsel %vm101, %v405, 0
  %v425 = vsel %vm101, %v406, 0
  %v428 = vsel %vm101, %v407, 0
  %v431 = vsel %vm101, %v408, 0
  %v434 = vsel %vm101, %v409, 0
  %v437 = vsel %vm101, %v410, 0
  %v440 = vsel %vm101, %v411, 0
  %442 = vmatpush.msra.mxu0 0.0
  %443 = vmatpush.msra.mxu0 0.0
  %444 = vmatpush.msra.mxu0 0.0
  %445 = vmatpush.msra.mxu0 0.0
  %446 = vmatpush.msra.mxu0 0.0
  %447 = vmatpush.msra.mxu0 0.0
  %448 = vmatpush.msra.mxu0 0.0
  %449 = vmatpush.msra.mxu0 0.0
  %450 = vmatpush.msra.mxu0 0.0
  %451 = vmatpush.msra.mxu0 0.0
  %452 = vmatpush.msra.mxu0 0.0
  %453 = vmatpush.msra.mxu0 0.0
  %454 = vmatpush.msra.mxu0 0.0
  %455 = vmatpush.msra.mxu0 0.0
  %456 = vmatpush.msra.mxu0 %v413
  %457 = vmatpush.msra.mxu0 %v412
  %458 = vmatmul.f32.gmra.mxu0 %v419
  %v459 = vpop.f32.mrf.mxu0
  %v460 = vadd.f32 %v416, %v459
  %461 = vmatmul.f32.gmra.mxu0 %v422
  %v462 = vpop.f32.mrf.mxu0
  %v463 = vadd.f32 %v416, %v462
  %464 = vmatmul.f32.gmra.mxu0 %v425
  %v465 = vpop.f32.mrf.mxu0
  %v466 = vadd.f32 %v416, %v465
  %467 = vmatmul.f32.gmra.mxu0 %v428
  %v468 = vpop.f32.mrf.mxu0
  %v469 = vadd.f32 %v416, %v468
  %470 = vmatmul.f32.gmra.mxu0 %v431
  %v471 = vpop.f32.mrf.mxu0
  %v472 = vadd.f32 %v416, %v471
  %473 = vmatmul.f32.gmra.mxu0 %v434
  %v474 = vpop.f32.mrf.mxu0
  %v475 = vadd.f32 %v416, %v474
  %476 = vmatmul.f32.gmra.mxu0 %v437
  %v477 = vpop.f32.mrf.mxu0
  %v478 = vadd.f32 %v416, %v477
  %479 = vmatmul.f32.gmra.mxu0 %v440
  %v480 = vpop.f32.mrf.mxu0
  %v481 = vadd.f32 %v416, %v480
  %482 = vdwg.mxu0
  %v483 = vmax.f32 %v460, 0.0
  %v484 = vmax.f32 %v463, 0.0
  %v485 = vmax.f32 %v466, 0.0
  %v486 = vmax.f32 %v469, 0.0
  %v487 = vmax.f32 %v472, 0.0
  %v488 = vmax.f32 %v475, 0.0
  %v489 = vmax.f32 %v478, 0.0
  %v490 = vmax.f32 %v481, 0.0
  %v491 = vmax.f32 %v483, %v484
  %v492 = vmax.f32 %v491, %v485
  %v493 = vmax.f32 %v492, %v486
  %v494 = vmax.f32 %v493, %v487
  %v495 = vmax.f32 %v494, %v488
  %v496 = vmax.f32 %v495, %v489
  %v497 = vmax.f32 %v496, %v490
  %v498 = vld [vmem:[%s10] sm:$0xff]
  %v499 = vld [vmem:[%s10 + $0x8] sm:$0xff]
  %v500 = vld [vmem:[%s11] sm:$0x1]
  %v502 = vperm.slane %v500, 0
  %v505 = vsel %vm101, %v497, 0
  %507 = vmatpush.msra.mxu0 0.0
  %508 = vmatpush.msra.mxu0 0.0
  %509 = vmatpush.msra.mxu0 0.0
  %510 = vmatpush.msra.mxu0 0.0
  %511 = vmatpush.msra.mxu0 0.0
  %512 = vmatpush.msra.mxu0 0.0
  %513 = vmatpush.msra.mxu0 0.0
  %514 = vmatpush.msra.mxu0 0.0
  %515 = vmatpush.msra.mxu0 0.0
  %516 = vmatpush.msra.mxu0 0.0
  %517 = vmatpush.msra.mxu0 0.0
  %518 = vmatpush.msra.mxu0 0.0
  %519 = vmatpush.msra.mxu0 0.0
  %520 = vmatpush.msra.mxu0 0.0
  %521 = vmatpush.msra.mxu0 %v499
  %522 = vmatpush.msra.mxu0 %v498
  %523 = vmatmul.f32.gmra.mxu0 %v505
  %v524 = vpop.f32.mrf.mxu0
  %v525 = vadd.f32 %v502, %v524
  %526 = vdwg.mxu0
  %v527 = vmax.f32 %v525, 0.0
  %528 = vst.msk [vmem:[%s12] sm:$0xff] %vm101, %v527
  // Predicated region
  $region50: #{model_forward.11} parent=0 // pred_check
    _
  $region51: #{model_forward.11} parent=0 // pred_check_branch
    %530 = sbr.rel (0) target = $region53
  $region52: #{model_forward.11} parent=0 // pred_region
    _
  $region53: #{model_forward.11} parent=0 // pred_fallthru
    _
  // Predicated region
  $region54: #{model_forward.11} parent=0 // pred_check
    _
  $region55: #{model_forward.11} parent=0 // pred_check_branch
    %532 = sbr.rel (0) target = $region57
  $region56: #{model_forward.11} parent=0 // pred_region
    _
  $region57: #{model_forward.11} parent=0 // pred_fallthru
    _

// kernel: neg.10
$region0: #{neg.10}
  #allocation0 [shape = 's32[1]{0}', space=sflag, size = 0x4, scoped, tag = 'scoped memory for neg.10']
  %s0 = inlined_call_operand.vmem [shape: f32[32,16], index: 0, kind: input, shape index: {}]
  %s1 = inlined_call_operand.vmem [shape: f32[32,16], index: 1, kind: output, shape index: {}]
  %v2 = vld [vmem:[%s0] sm:$0xff]
  %3 = xla_tuple %v2
  %4 = xla_tuple %3
  %v5 = vxor.u32 %v2, 2147483648
  %6 = xla_tuple %v5
  %7 = vst [vmem:[%s1] sm:$0xff] %v5
  %s8 = scalar_lea.vmem %s0, 8
  %v9 = vld [vmem:[%s8] sm:$0xff]
  %10 = xla_tuple %v9
  %11 = xla_tuple %10
  %v12 = vxor.u32 %v9, 2147483648
  %13 = xla_tuple %v12
  %s14 = scalar_lea.vmem %s1, 8
  %15 = vst [vmem:[%s14] sm:$0xff] %v12

// kernel: neg.11
$region0: #{neg.11}
  #allocation0 [shape = 's32[1]{0}', space=sflag, size = 0x4, scoped, tag = 'scoped memory for neg.11']
  %s0 = inlined_call_operand.vmem [shape: f32[64,32], index: 0, kind: input, shape index: {}]
  %s1 = inlined_call_operand.vmem [shape: f32[64,32], index: 1, kind: output, shape index: {}]
  %v2 = vld [vmem:[%s0] sm:$0xff]
  %3 = xla_tuple %v2
  %4 = xla_tuple %3
  %v5 = vxor.u32 %v2, 2147483648
  %6 = xla_tuple %v5
  %7 = vst [vmem:[%s1] sm:$0xff] %v5
  %s8 = scalar_lea.vmem %s0, 8
  %v9 = vld [vmem:[%s8] sm:$0xff]
  %10 = xla_tuple %v9
  %11 = xla_tuple %10
  %v12 = vxor.u32 %v9, 2147483648
  %13 = xla_tuple %v12
  %s14 = scalar_lea.vmem %s1, 8
  %15 = vst [vmem:[%s14] sm:$0xff] %v12
  %s16 = scalar_lea.vmem %s0, 16
  %v17 = vld [vmem:[%s16] sm:$0xff]
  %18 = xla_tuple %v17
  %19 = xla_tuple %18
  %v20 = vxor.u32 %v17, 2147483648
  %21 = xla_tuple %v20
  %s22 = scalar_lea.vmem %s1, 16
  %23 = vst [vmem:[%s22] sm:$0xff] %v20
  %s24 = scalar_lea.vmem %s0, 24
  %v25 = vld [vmem:[%s24] sm:$0xff]
  %26 = xla_tuple %v25
  %27 = xla_tuple %26
  %v28 = vxor.u32 %v25, 2147483648
  %29 = xla_tuple %v28
  %s30 = scalar_lea.vmem %s1, 24
  %31 = vst [vmem:[%s30] sm:$0xff] %v28

// kernel: model_forward.12
$region0: #{model_forward.12}
  #allocation0 [shape = 'u32[]', space=smem, size = 0x4, offset = 0x4, fixed_abs, tag = 'smem constant byte address 0x4 - core index']
  #allocation1 [shape = 'u32[72,128]{1,0:T(1,128)}', space=vmem, size = 0x9000, scoped, tag = 'internal scratch']
  %s0 = inlined_call_operand.vmem [shape: s32[16,3], index: 0, kind: input, shape index: {}]
  %s1 = inlined_call_operand.vmem [shape: f32[16,3], index: 1, kind: input, shape index: {}]
  %s2 = inlined_call_operand.vmem [shape: f32[8,16], index: 2, kind: input, shape index: {}]
  %s3 = inlined_call_operand.vmem [shape: f32[16,16], index: 3, kind: input, shape index: {}]
  %s4 = inlined_call_operand.vmem [shape: f32[16,32], index: 4, kind: input, shape index: {}]
  %s5 = inlined_call_operand.vmem [shape: f32[16,32], index: 5, kind: input, shape index: {}]
  %s6 = inlined_call_operand.vmem [shape: f32[1,32], index: 6, kind: input, shape index: {}]
  %s7 = inlined_call_operand.vmem [shape: f32[1,32], index: 7, kind: input, shape index: {}]
  %s8 = inlined_call_operand.vmem [shape: f32[32,16], index: 8, kind: input, shape index: {}]
  %s9 = inlined_call_operand.vmem [shape: f32[1,16], index: 9, kind: input, shape index: {}]
  %s10 = inlined_call_operand.vmem [shape: f32[1,16], index: 10, kind: input, shape index: {}]
  %s11 = inlined_call_operand.vmem [shape: f32[16,16], index: 11, kind: output, shape index: {}]
  %s12 = sld [smem:[#allocation0]]
  $region54: #{model_forward.12} parent=0
    _
  %s14 = ssub.s32 1, %s12
  %s15 = scalar_select 0, %s14, %s12
  // Predicated region
  $region2: #{model_forward.12} parent=0 // pred_check
    _
  $region3: #{model_forward.12} parent=0 // pred_check_branch
    %17 = sbr.rel (0) target = $region5
  $region4: #{model_forward.12} parent=0 // pred_region
    _
  $region5: #{model_forward.12} parent=0 // pred_fallthru
    _
  // Predicated region
  $region6: #{model_forward.12} parent=0 // pred_check
    _
  $region7: #{model_forward.12} parent=0 // pred_check_branch
    %19 = sbr.rel (0) target = $region9
  $region8: #{model_forward.12} parent=0 // pred_region
    _
  $region9: #{model_forward.12} parent=0 // pred_fallthru
    _
  // Predicated region
  $region10: #{model_forward.12} parent=0 // pred_check
    _
  $region11: #{model_forward.12} parent=0 // pred_check_branch
    %21 = sbr.rel (0) target = $region13
  $region12: #{model_forward.12} parent=0 // pred_region
    _
  $region13: #{model_forward.12} parent=0 // pred_fallthru
    _
  // Predicated region
  $region14: #{model_forward.12} parent=0 // pred_check
    _
  $region15: #{model_forward.12} parent=0 // pred_check_branch
    %23 = sbr.rel (0) target = $region17
  $region16: #{model_forward.12} parent=0 // pred_region
    _
  $region17: #{model_forward.12} parent=0 // pred_fallthru
    _
  // Predicated region
  $region18: #{model_forward.12} parent=0 // pred_check
    _
  $region19: #{model_forward.12} parent=0 // pred_check_branch
    %25 = sbr.rel (0) target = $region21
  $region20: #{model_forward.12} parent=0 // pred_region
    _
  $region21: #{model_forward.12} parent=0 // pred_fallthru
    _
  // Predicated region
  $region22: #{model_forward.12} parent=0 // pred_check
    _
  $region23: #{model_forward.12} parent=0 // pred_check_branch
    %27 = sbr.rel (0) target = $region25
  $region24: #{model_forward.12} parent=0 // pred_region
    _
  $region25: #{model_forward.12} parent=0 // pred_fallthru
    _
  // Predicated region
  $region26: #{model_forward.12} parent=0 // pred_check
    _
  $region27: #{model_forward.12} parent=0 // pred_check_branch
    %29 = sbr.rel (0) target = $region29
  $region28: #{model_forward.12} parent=0 // pred_region
    _
  $region29: #{model_forward.12} parent=0 // pred_fallthru
    _
  // Predicated region
  $region30: #{model_forward.12} parent=0 // pred_check
    _
  $region31: #{model_forward.12} parent=0 // pred_check_branch
    %31 = sbr.rel (0) target = $region33
  $region32: #{model_forward.12} parent=0 // pred_region
    _
  $region33: #{model_forward.12} parent=0 // pred_fallthru
    _
  // Predicated region
  $region34: #{model_forward.12} parent=0 // pred_check
    _
  $region35: #{model_forward.12} parent=0 // pred_check_branch
    %33 = sbr.rel (0) target = $region37
  $region36: #{model_forward.12} parent=0 // pred_region
    _
  $region37: #{model_forward.12} parent=0 // pred_fallthru
    _
  // Predicated region
  $region38: #{model_forward.12} parent=0 // pred_check
    _
  $region39: #{model_forward.12} parent=0 // pred_check_branch
    %35 = sbr.rel (0) target = $region41
  $region40: #{model_forward.12} parent=0 // pred_region
    _
  $region41: #{model_forward.12} parent=0 // pred_fallthru
    _
  // Predicated region
  $region42: #{model_forward.12} parent=0 // pred_check
    _
  $region43: #{model_forward.12} parent=0 // pred_check_branch
    %37 = sbr.rel (0) target = $region45
  $region44: #{model_forward.12} parent=0 // pred_region
    _
  $region45: #{model_forward.12} parent=0 // pred_fallthru
    _
  %v38 = vlaneseq
  %v39 = vand.u32 %v38, 127
  %v40 = vld [vmem:[%s0] sm:$0xff]
  %v41 = vld [vmem:[%s0 + $0x8] sm:$0xff]
  %v42 = vld [vmem:[%s1] sm:$0xff]
  %v43 = vld [vmem:[%s1 + $0x8] sm:$0xff]
  %44 = vset.pattern.permute.xlu0 0
  %45 = vperm.xlu0 %44, %v40
  %v46 = vpop.permute.xlu0 %45
  %47 = vset.pattern.permute.xlu0 0
  %48 = vperm.xlu0 %47, %v41
  %v49 = vpop.permute.xlu0 %48
  %vm50 = vcmp.eq.s32.totalorder %v39, %v46
  %vm51 = vcmp.eq.s32.totalorder %v39, %v49
  %53 = vset.pattern.permute.xlu0 0
  %54 = vperm.xlu0 %53, %v42
  %v55 = vpop.permute.xlu0 %54
  %58 = vset.pattern.permute.xlu0 0
  %59 = vperm.xlu0 %58, %v43
  %v60 = vpop.permute.xlu0 %59
  %v62 = vsel %vm50, %v55, 0.0
  %v63 = vsel %vm51, %v60, 0.0
  %v64 = vadd.f32 %v62, 0.0
  %v65 = vadd.f32 %v63, 0.0
  %66 = vset.pattern.permute.xlu0 1
  %67 = vperm.xlu0 %66, %v40
  %v68 = vpop.permute.xlu0 %67
  %69 = vset.pattern.permute.xlu0 1
  %70 = vperm.xlu0 %69, %v41
  %v71 = vpop.permute.xlu0 %70
  %vm72 = vcmp.eq.s32.totalorder %v39, %v68
  %vm73 = vcmp.eq.s32.totalorder %v39, %v71
  %74 = vset.pattern.permute.xlu0 1
  %75 = vperm.xlu0 %74, %v42
  %v76 = vpop.permute.xlu0 %75
  %78 = vset.pattern.permute.xlu0 1
  %79 = vperm.xlu0 %78, %v43
  %v80 = vpop.permute.xlu0 %79
  %v82 = vsel %vm72, %v76, 0.0
  %v83 = vsel %vm73, %v80, 0.0
  %v84 = vadd.f32 %v64, %v82
  %v85 = vadd.f32 %v65, %v83
  %86 = vset.pattern.permute.xlu0 2
  %87 = vperm.xlu0 %86, %v40
  %v88 = vpop.permute.xlu0 %87
  %89 = vset.pattern.permute.xlu0 2
  %90 = vperm.xlu0 %89, %v41
  %v91 = vpop.permute.xlu0 %90
  %vm92 = vcmp.eq.s32.totalorder %v39, %v88
  %vm93 = vcmp.eq.s32.totalorder %v39, %v91
  %94 = vset.pattern.permute.xlu0 2
  %95 = vperm.xlu0 %94, %v42
  %v96 = vpop.permute.xlu0 %95
  %98 = vset.pattern.permute.xlu0 2
  %99 = vperm.xlu0 %98, %v43
  %v100 = vpop.permute.xlu0 %99
  %v102 = vsel %vm92, %v96, 0.0
  %v103 = vsel %vm93, %v100, 0.0
  %v104 = vadd.f32 %v84, %v102
  %v105 = vadd.f32 %v85, %v103
  %v106 = vld [vmem:[%s2] sm:$0xff]
  %vm107 = vcmask 64512
  %v109 = vsel %vm107, %v104, 0
  %v112 = vsel %vm107, %v105, 0
  %114 = vmatpush.msra.mxu0 0.0
  %115 = vmatpush.msra.mxu0 0.0
  %116 = vmatpush.msra.mxu0 0.0
  %117 = vmatpush.msra.mxu0 0.0
  %118 = vmatpush.msra.mxu0 0.0
  %119 = vmatpush.msra.mxu0 0.0
  %120 = vmatpush.msra.mxu0 0.0
  %121 = vmatpush.msra.mxu0 0.0
  %122 = vmatpush.msra.mxu0 0.0
  %123 = vmatpush.msra.mxu0 0.0
  %124 = vmatpush.msra.mxu0 0.0
  %125 = vmatpush.msra.mxu0 0.0
  %126 = vmatpush.msra.mxu0 0.0
  %127 = vmatpush.msra.mxu0 0.0
  %128 = vmatpush.msra.mxu0 0.0
  %129 = vmatpush.msra.mxu0 %v106
  %130 = vmatmul.f32.gmra.mxu0 %v109
  %v131 = vpop.f32.mrf.mxu0
  %v132 = vadd.f32 0.0, %v131
  %133 = vmatmul.f32.gmra.mxu0 %v112
  %v134 = vpop.f32.mrf.mxu0
  %v135 = vadd.f32 0.0, %v134
  %136 = vdwg.mxu0
  %v137 = vld [vmem:[%s4] sm:$0xff]
  %v138 = vld [vmem:[%s4 + $0x8] sm:$0xff]
  %v139 = vld [vmem:[%s3] sm:$0xff]
  %v140 = vld [vmem:[%s3 + $0x8] sm:$0xff]
  %v141 = vld [vmem:[%s5] sm:$0xff]
  %v142 = vld [vmem:[%s5 + $0x8] sm:$0xff]
  %vm143 = vcmask 130048
  %v145 = vsel %vm143, %v139, 0
  %v148 = vsel %vm143, %v140, 0
  %150 = vmatpush.msra.mxu0 0.0
  %151 = vmatpush.msra.mxu0 0.0
  %152 = vmatpush.msra.mxu0 0.0
  %153 = vmatpush.msra.mxu0 0.0
  %154 = vmatpush.msra.mxu0 0.0
  %155 = vmatpush.msra.mxu0 0.0
  %156 = vmatpush.msra.mxu0 0.0
  %157 = vmatpush.msra.mxu0 0.0
  %158 = vmatpush.msra.mxu0 0.0
  %159 = vmatpush.msra.mxu0 0.0
  %160 = vmatpush.msra.mxu0 0.0
  %161 = vmatpush.msra.mxu0 0.0
  %162 = vmatpush.msra.mxu0 0.0
  %163 = vmatpush.msra.mxu0 0.0
  %164 = vmatpush.msra.mxu0 %v142
  %165 = vmatpush.msra.mxu0 %v141
  %166 = vmatmul.f32.gmra.mxu0 %v145
  %v167 = vpop.f32.mrf.mxu0
  %v168 = vadd.f32 0.0, %v167
  %169 = vmatmul.f32.gmra.mxu0 %v148
  %v170 = vpop.f32.mrf.mxu0
  %v171 = vadd.f32 0.0, %v170
  %172 = vdwg.mxu0
  %v174 = vsel %vm143, %v132, 0
  %v177 = vsel %vm143, %v135, 0
  %179 = vmatpush.msra.mxu0 0.0
  %180 = vmatpush.msra.mxu0 0.0
  %181 = vmatpush.msra.mxu0 0.0
  %182 = vmatpush.msra.mxu0 0.0
  %183 = vmatpush.msra.mxu0 0.0
  %184 = vmatpush.msra.mxu0 0.0
  %185 = vmatpush.msra.mxu0 0.0
  %186 = vmatpush.msra.mxu0 0.0
  %187 = vmatpush.msra.mxu0 0.0
  %188 = vmatpush.msra.mxu0 0.0
  %189 = vmatpush.msra.mxu0 0.0
  %190 = vmatpush.msra.mxu0 0.0
  %191 = vmatpush.msra.mxu0 0.0
  %192 = vmatpush.msra.mxu0 0.0
  %193 = vmatpush.msra.mxu0 %v138
  %194 = vmatpush.msra.mxu0 %v137
  %195 = vmatmul.f32.gmra.mxu0 %v174
  %v196 = vpop.f32.mrf.mxu0
  %v197 = vadd.f32 %v168, %v196
  %198 = vmatmul.f32.gmra.mxu0 %v177
  %v199 = vpop.f32.mrf.mxu0
  %v200 = vadd.f32 %v171, %v199
  %201 = vdwg.mxu0
  %v202 = vld [vmem:[%s6] sm:$0x1]
  %v204 = vperm.slane %v202, 0
  %v206 = vmul.f32 %v197, %v204
  %v207 = vmul.f32 %v200, %v204
  %v208 = vld [vmem:[%s7] sm:$0x1]
  %v210 = vperm.slane %v208, 0
  %v212 = vadd.f32 %v206, %v210
  %v213 = vadd.f32 %v207, %v210
  %v214 = vmax.f32 %v212, 0.0
  %v215 = vmax.f32 %v213, 0.0
  %v216 = vld [vmem:[%s8] sm:$0xff]
  %v217 = vld [vmem:[%s8 + $0x8] sm:$0xff]
  %v218 = vld [vmem:[%s8 + $0x10] sm:$0xff]
  %v219 = vld [vmem:[%s8 + $0x18] sm:$0xff]
  %vm220 = vcmask 261120
  %v222 = vsel %vm220, %v214, 0
  %v225 = vsel %vm220, %v215, 0
  %227 = vmatpush.msra.mxu0 0.0
  %228 = vmatpush.msra.mxu0 0.0
  %229 = vmatpush.msra.mxu0 0.0
  %230 = vmatpush.msra.mxu0 0.0
  %231 = vmatpush.msra.mxu0 0.0
  %232 = vmatpush.msra.mxu0 0.0
  %233 = vmatpush.msra.mxu0 0.0
  %234 = vmatpush.msra.mxu0 0.0
  %235 = vmatpush.msra.mxu0 0.0
  %236 = vmatpush.msra.mxu0 0.0
  %237 = vmatpush.msra.mxu0 0.0
  %238 = vmatpush.msra.mxu0 0.0
  %239 = vmatpush.msra.mxu0 %v219
  %240 = vmatpush.msra.mxu0 %v218
  %241 = vmatpush.msra.mxu0 %v217
  %242 = vmatpush.msra.mxu0 %v216
  %243 = vmatmul.f32.gmra.mxu0 %v222
  %v244 = vpop.f32.mrf.mxu0
  %v245 = vadd.f32 0.0, %v244
  %246 = vmatmul.f32.gmra.mxu0 %v225
  %v247 = vpop.f32.mrf.mxu0
  %v248 = vadd.f32 0.0, %v247
  %249 = vdwg.mxu0
  %v250 = vld [vmem:[%s9] sm:$0x1]
  %v252 = vperm.slane %v250, 0
  %v254 = vmul.f32 %v245, %v252
  %v255 = vmul.f32 %v248, %v252
  %v256 = vld [vmem:[%s10] sm:$0x1]
  %v258 = vperm.slane %v256, 0
  %v260 = vadd.f32 %v254, %v258
  %v261 = vadd.f32 %v255, %v258
  %v262 = vmax.f32 %v260, 0.0
  %v263 = vmax.f32 %v261, 0.0
  %264 = vst.msk [vmem:[%s11] sm:$0xff] %vm143, %v262
  %265 = vst.msk [vmem:[%s11 + $0x8] sm:$0xff] %vm143, %v263
  // Predicated region
  $region46: #{model_forward.12} parent=0 // pred_check
    _
  $region47: #{model_forward.12} parent=0 // pred_check_branch
    %267 = sbr.rel (0) target = $region49
  $region48: #{model_forward.12} parent=0 // pred_region
    _
  $region49: #{model_forward.12} parent=0 // pred_fallthru
    _
  // Predicated region
  $region50: #{model_forward.12} parent=0 // pred_check
    _
  $region51: #{model_forward.12} parent=0 // pred_check_branch
    %269 = sbr.rel (0) target = $region53
  $region52: #{model_forward.12} parent=0 // pred_region
    _
  $region53: #{model_forward.12} parent=0 // pred_fallthru
    _

// kernel: model_forward.13
$region0: #{model_forward.13}
  #allocation0 [shape = 'u32[]', space=smem, size = 0x4, offset = 0x4, fixed_abs, tag = 'smem constant byte address 0x4 - core index']
  #allocation1 [shape = 'u32[72,128]{1,0:T(1,128)}', space=vmem, size = 0x9000, scoped, tag = 'internal scratch']
  %s0 = inlined_call_operand.vmem [shape: s32[32,3], index: 0, kind: input, shape index: {}]
  %s1 = inlined_call_operand.vmem [shape: f32[32,3], index: 1, kind: input, shape index: {}]
  %s2 = inlined_call_operand.vmem [shape: f32[16,16], index: 2, kind: input, shape index: {}]
  %s3 = inlined_call_operand.vmem [shape: f32[32,16], index: 3, kind: input, shape index: {}]
  %s4 = inlined_call_operand.vmem [shape: f32[16,32], index: 4, kind: input, shape index: {}]
  %s5 = inlined_call_operand.vmem [shape: f32[16,32], index: 5, kind: input, shape index: {}]
  %s6 = inlined_call_operand.vmem [shape: f32[1,32], index: 6, kind: input, shape index: {}]
  %s7 = inlined_call_operand.vmem [shape: f32[1,32], index: 7, kind: input, shape index: {}]
  %s8 = inlined_call_operand.vmem [shape: f32[32,16], index: 8, kind: input, shape index: {}]
  %s9 = inlined_call_operand.vmem [shape: f32[1,16], index: 9, kind: input, shape index: {}]
  %s10 = inlined_call_operand.vmem [shape: f32[1,16], index: 10, kind: input, shape index: {}]
  %s11 = inlined_call_operand.vmem [shape: f32[32,16], index: 11, kind: output, shape index: {}]
  %s12 = sld [smem:[#allocation0]]
  $region54: #{model_forward.13} parent=0
    _
  %s14 = ssub.s32 1, %s12
  %s15 = scalar_select 0, %s14, %s12
  // Predicated region
  $region2: #{model_forward.13} parent=0 // pred_check
    _
  $region3: #{model_forward.13} parent=0 // pred_check_branch
    %17 = sbr.rel (0) target = $region5
  $region4: #{model_forward.13} parent=0 // pred_region
    _
  $region5: #{model_forward.13} parent=0 // pred_fallthru
    _
  // Predicated region
  $region6: #{model_forward.13} parent=0 // pred_check
    _
  $region7: #{model_forward.13} parent=0 // pred_check_branch
    %19 = sbr.rel (0) target = $region9
  $region8: #{model_forward.13} parent=0 // pred_region
    _
  $region9: #{model_forward.13} parent=0 // pred_fallthru
    _
  // Predicated region
  $region10: #{model_forward.13} parent=0 // pred_check
    _
  $region11: #{model_forward.13} parent=0 // pred_check_branch
    %21 = sbr.rel (0) target = $region13
  $region12: #{model_forward.13} parent=0 // pred_region
    _
  $region13: #{model_forward.13} parent=0 // pred_fallthru
    _
  // Predicated region
  $region14: #{model_forward.13} parent=0 // pred_check
    _
  $region15: #{model_forward.13} parent=0 // pred_check_branch
    %23 = sbr.rel (0) target = $region17
  $region16: #{model_forward.13} parent=0 // pred_region
    _
  $region17: #{model_forward.13} parent=0 // pred_fallthru
    _
  // Predicated region
  $region18: #{model_forward.13} parent=0 // pred_check
    _
  $region19: #{model_forward.13} parent=0 // pred_check_branch
    %25 = sbr.rel (0) target = $region21
  $region20: #{model_forward.13} parent=0 // pred_region
    _
  $region21: #{model_forward.13} parent=0 // pred_fallthru
    _
  // Predicated region
  $region22: #{model_forward.13} parent=0 // pred_check
    _
  $region23: #{model_forward.13} parent=0 // pred_check_branch
    %27 = sbr.rel (0) target = $region25
  $region24: #{model_forward.13} parent=0 // pred_region
    _
  $region25: #{model_forward.13} parent=0 // pred_fallthru
    _
  // Predicated region
  $region26: #{model_forward.13} parent=0 // pred_check
    _
  $region27: #{model_forward.13} parent=0 // pred_check_branch
    %29 = sbr.rel (0) target = $region29
  $region28: #{model_forward.13} parent=0 // pred_region
    _
  $region29: #{model_forward.13} parent=0 // pred_fallthru
    _
  // Predicated region
  $region30: #{model_forward.13} parent=0 // pred_check
    _
  $region31: #{model_forward.13} parent=0 // pred_check_branch
    %31 = sbr.rel (0) target = $region33
  $region32: #{model_forward.13} parent=0 // pred_region
    _
  $region33: #{model_forward.13} parent=0 // pred_fallthru
    _
  // Predicated region
  $region34: #{model_forward.13} parent=0 // pred_check
    _
  $region35: #{model_forward.13} parent=0 // pred_check_branch
    %33 = sbr.rel (0) target = $region37
  $region36: #{model_forward.13} parent=0 // pred_region
    _
  $region37: #{model_forward.13} parent=0 // pred_fallthru
    _
  // Predicated region
  $region38: #{model_forward.13} parent=0 // pred_check
    _
  $region39: #{model_forward.13} parent=0 // pred_check_branch
    %35 = sbr.rel (0) target = $region41
  $region40: #{model_forward.13} parent=0 // pred_region
    _
  $region41: #{model_forward.13} parent=0 // pred_fallthru
    _
  // Predicated region
  $region42: #{model_forward.13} parent=0 // pred_check
    _
  $region43: #{model_forward.13} parent=0 // pred_check_branch
    %37 = sbr.rel (0) target = $region45
  $region44: #{model_forward.13} parent=0 // pred_region
    _
  $region45: #{model_forward.13} parent=0 // pred_fallthru
    _
  %v38 = vlaneseq
  %v39 = vand.u32 %v38, 127
  %v40 = vld [vmem:[%s0] sm:$0xff]
  %v41 = vld [vmem:[%s0 + $0x8] sm:$0xff]
  %v42 = vld [vmem:[%s0 + $0x10] sm:$0xff]
  %v43 = vld [vmem:[%s0 + $0x18] sm:$0xff]
  %v44 = vld [vmem:[%s1] sm:$0xff]
  %v45 = vld [vmem:[%s1 + $0x8] sm:$0xff]
  %v46 = vld [vmem:[%s1 + $0x10] sm:$0xff]
  %v47 = vld [vmem:[%s1 + $0x18] sm:$0xff]
  %48 = vset.pattern.permute.xlu0 0
  %49 = vperm.xlu0 %48, %v40
  %v50 = vpop.permute.xlu0 %49
  %51 = vset.pattern.permute.xlu0 0
  %52 = vperm.xlu0 %51, %v41
  %v53 = vpop.permute.xlu0 %52
  %54 = vset.pattern.permute.xlu0 0
  %55 = vperm.xlu0 %54, %v42
  %v56 = vpop.permute.xlu0 %55
  %57 = vset.pattern.permute.xlu0 0
  %58 = vperm.xlu0 %57, %v43
  %v59 = vpop.permute.xlu0 %58
  %vm60 = vcmp.eq.s32.totalorder %v39, %v50
  %vm61 = vcmp.eq.s32.totalorder %v39, %v53
  %vm62 = vcmp.eq.s32.totalorder %v39, %v56
  %vm63 = vcmp.eq.s32.totalorder %v39, %v59
  %65 = vset.pattern.permute.xlu0 0
  %66 = vperm.xlu0 %65, %v44
  %v67 = vpop.permute.xlu0 %66
  %70 = vset.pattern.permute.xlu0 0
  %71 = vperm.xlu0 %70, %v45
  %v72 = vpop.permute.xlu0 %71
  %75 = vset.pattern.permute.xlu0 0
  %76 = vperm.xlu0 %75, %v46
  %v77 = vpop.permute.xlu0 %76
  %80 = vset.pattern.permute.xlu0 0
  %81 = vperm.xlu0 %80, %v47
  %v82 = vpop.permute.xlu0 %81
  %v84 = vsel %vm60, %v67, 0.0
  %v85 = vsel %vm61, %v72, 0.0
  %v86 = vsel %vm62, %v77, 0.0
  %v87 = vsel %vm63, %v82, 0.0
  %v88 = vadd.f32 %v84, 0.0
  %v89 = vadd.f32 %v85, 0.0
  %v90 = vadd.f32 %v86, 0.0
  %v91 = vadd.f32 %v87, 0.0
  %92 = vset.pattern.permute.xlu0 1
  %93 = vperm.xlu0 %92, %v40
  %v94 = vpop.permute.xlu0 %93
  %95 = vset.pattern.permute.xlu0 1
  %96 = vperm.xlu0 %95, %v41
  %v97 = vpop.permute.xlu0 %96
  %98 = vset.pattern.permute.xlu0 1
  %99 = vperm.xlu0 %98, %v42
  %v100 = vpop.permute.xlu0 %99
  %101 = vset.pattern.permute.xlu0 1
  %102 = vperm.xlu0 %101, %v43
  %v103 = vpop.permute.xlu0 %102
  %vm104 = vcmp.eq.s32.totalorder %v39, %v94
  %vm105 = vcmp.eq.s32.totalorder %v39, %v97
  %vm106 = vcmp.eq.s32.totalorder %v39, %v100
  %vm107 = vcmp.eq.s32.totalorder %v39, %v103
  %108 = vset.pattern.permute.xlu0 1
  %109 = vperm.xlu0 %108, %v44
  %v110 = vpop.permute.xlu0 %109
  %112 = vset.pattern.permute.xlu0 1
  %113 = vperm.xlu0 %112, %v45
  %v114 = vpop.permute.xlu0 %113
  %116 = vset.pattern.permute.xlu0 1
  %117 = vperm.xlu0 %116, %v46
  %v118 = vpop.permute.xlu0 %117
  %120 = vset.pattern.permute.xlu0 1
  %121 = vperm.xlu0 %120, %v47
  %v122 = vpop.permute.xlu0 %121
  %v124 = vsel %vm104, %v110, 0.0
  %v125 = vsel %vm105, %v114, 0.0
  %v126 = vsel %vm106, %v118, 0.0
  %v127 = vsel %vm107, %v122, 0.0
  %v128 = vadd.f32 %v88, %v124
  %v129 = vadd.f32 %v89, %v125
  %v130 = vadd.f32 %v90, %v126
  %v131 = vadd.f32 %v91, %v127
  %132 = vset.pattern.permute.xlu0 2
  %133 = vperm.xlu0 %132, %v40
  %v134 = vpop.permute.xlu0 %133
  %135 = vset.pattern.permute.xlu0 2
  %136 = vperm.xlu0 %135, %v41
  %v137 = vpop.permute.xlu0 %136
  %138 = vset.pattern.permute.xlu0 2
  %139 = vperm.xlu0 %138, %v42
  %v140 = vpop.permute.xlu0 %139
  %141 = vset.pattern.permute.xlu0 2
  %142 = vperm.xlu0 %141, %v43
  %v143 = vpop.permute.xlu0 %142
  %vm144 = vcmp.eq.s32.totalorder %v39, %v134
  %vm145 = vcmp.eq.s32.totalorder %v39, %v137
  %vm146 = vcmp.eq.s32.totalorder %v39, %v140
  %vm147 = vcmp.eq.s32.totalorder %v39, %v143
  %148 = vset.pattern.permute.xlu0 2
  %149 = vperm.xlu0 %148, %v44
  %v150 = vpop.permute.xlu0 %149
  %152 = vset.pattern.permute.xlu0 2
  %153 = vperm.xlu0 %152, %v45
  %v154 = vpop.permute.xlu0 %153
  %156 = vset.pattern.permute.xlu0 2
  %157 = vperm.xlu0 %156, %v46
  %v158 = vpop.permute.xlu0 %157
  %160 = vset.pattern.permute.xlu0 2
  %161 = vperm.xlu0 %160, %v47
  %v162 = vpop.permute.xlu0 %161
  %v164 = vsel %vm144, %v150, 0.0
  %v165 = vsel %vm145, %v154, 0.0
  %v166 = vsel %vm146, %v158, 0.0
  %v167 = vsel %vm147, %v162, 0.0
  %v168 = vadd.f32 %v128, %v164
  %v169 = vadd.f32 %v129, %v165
  %v170 = vadd.f32 %v130, %v166
  %v171 = vadd.f32 %v131, %v167
  %v172 = vld [vmem:[%s2] sm:$0xff]
  %v173 = vld [vmem:[%s2 + $0x8] sm:$0xff]
  %vm174 = vcmask 130048
  %v176 = vsel %vm174, %v168, 0
  %v179 = vsel %vm174, %v169, 0
  %v182 = vsel %vm174, %v170, 0
  %v185 = vsel %vm174, %v171, 0
  %187 = vmatpush.msra.mxu0 0.0
  %188 = vmatpush.msra.mxu0 0.0
  %189 = vmatpush.msra.mxu0 0.0
  %190 = vmatpush.msra.mxu0 0.0
  %191 = vmatpush.msra.mxu0 0.0
  %192 = vmatpush.msra.mxu0 0.0
  %193 = vmatpush.msra.mxu0 0.0
  %194 = vmatpush.msra.mxu0 0.0
  %195 = vmatpush.msra.mxu0 0.0
  %196 = vmatpush.msra.mxu0 0.0
  %197 = vmatpush.msra.mxu0 0.0
  %198 = vmatpush.msra.mxu0 0.0
  %199 = vmatpush.msra.mxu0 0.0
  %200 = vmatpush.msra.mxu0 0.0
  %201 = vmatpush.msra.mxu0 %v173
  %202 = vmatpush.msra.mxu0 %v172
  %203 = vmatmul.f32.gmra.mxu0 %v176
  %v204 = vpop.f32.mrf.mxu0
  %v205 = vadd.f32 0.0, %v204
  %206 = vmatmul.f32.gmra.mxu0 %v179
  %v207 = vpop.f32.mrf.mxu0
  %v208 = vadd.f32 0.0, %v207
  %209 = vmatmul.f32.gmra.mxu0 %v182
  %v210 = vpop.f32.mrf.mxu0
  %v211 = vadd.f32 0.0, %v210
  %212 = vmatmul.f32.gmra.mxu0 %v185
  %v213 = vpop.f32.mrf.mxu0
  %v214 = vadd.f32 0.0, %v213
  %215 = vdwg.mxu0
  %v216 = vld [vmem:[%s4] sm:$0xff]
  %v217 = vld [vmem:[%s4 + $0x8] sm:$0xff]
  %v218 = vld [vmem:[%s3] sm:$0xff]
  %v219 = vld [vmem:[%s3 + $0x8] sm:$0xff]
  %v220 = vld [vmem:[%s3 + $0x10] sm:$0xff]
  %v221 = vld [vmem:[%s3 + $0x18] sm:$0xff]
  %v222 = vld [vmem:[%s5] sm:$0xff]
  %v223 = vld [vmem:[%s5 + $0x8] sm:$0xff]
  %v225 = vsel %vm174, %v218, 0
  %v228 = vsel %vm174, %v219, 0
  %v231 = vsel %vm174, %v220, 0
  %v234 = vsel %vm174, %v221, 0
  %236 = vmatpush.msra.mxu0 0.0
  %237 = vmatpush.msra.mxu0 0.0
  %238 = vmatpush.msra.mxu0 0.0
  %239 = vmatpush.msra.mxu0 0.0
  %240 = vmatpush.msra.mxu0 0.0
  %241 = vmatpush.msra.mxu0 0.0
  %242 = vmatpush.msra.mxu0 0.0
  %243 = vmatpush.msra.mxu0 0.0
  %244 = vmatpush.msra.mxu0 0.0
  %245 = vmatpush.msra.mxu0 0.0
  %246 = vmatpush.msra.mxu0 0.0
  %247 = vmatpush.msra.mxu0 0.0
  %248 = vmatpush.msra.mxu0 0.0
  %249 = vmatpush.msra.mxu0 0.0
  %250 = vmatpush.msra.mxu0 %v223
  %251 = vmatpush.msra.mxu0 %v222
  %252 = vmatmul.f32.gmra.mxu0 %v225
  %v253 = vpop.f32.mrf.mxu0
  %v254 = vadd.f32 0.0, %v253
  %255 = vmatmul.f32.gmra.mxu0 %v228
  %v256 = vpop.f32.mrf.mxu0
  %v257 = vadd.f32 0.0, %v256
  %258 = vmatmul.f32.gmra.mxu0 %v231
  %v259 = vpop.f32.mrf.mxu0
  %v260 = vadd.f32 0.0, %v259
  %261 = vmatmul.f32.gmra.mxu0 %v234
  %v262 = vpop.f32.mrf.mxu0
  %v263 = vadd.f32 0.0, %v262
  %264 = vdwg.mxu0
  %v266 = vsel %vm174, %v205, 0
  %v269 = vsel %vm174, %v208, 0
  %v272 = vsel %vm174, %v211, 0
  %v275 = vsel %vm174, %v214, 0
  %277 = vmatpush.msra.mxu0 0.0
  %278 = vmatpush.msra.mxu0 0.0
  %279 = vmatpush.msra.mxu0 0.0
  %280 = vmatpush.msra.mxu0 0.0
  %281 = vmatpush.msra.mxu0 0.0
  %282 = vmatpush.msra.mxu0 0.0
  %283 = vmatpush.msra.mxu0 0.0
  %284 = vmatpush.msra.mxu0 0.0
  %285 = vmatpush.msra.mxu0 0.0
  %286 = vmatpush.msra.mxu0 0.0
  %287 = vmatpush.msra.mxu0 0.0
  %288 = vmatpush.msra.mxu0 0.0
  %289 = vmatpush.msra.mxu0 0.0
  %290 = vmatpush.msra.mxu0 0.0
  %291 = vmatpush.msra.mxu0 %v217
  %292 = vmatpush.msra.mxu0 %v216
  %293 = vmatmul.f32.gmra.mxu0 %v266
  %v294 = vpop.f32.mrf.mxu0
  %v295 = vadd.f32 %v254, %v294
  %296 = vmatmul.f32.gmra.mxu0 %v269
  %v297 = vpop.f32.mrf.mxu0
  %v298 = vadd.f32 %v257, %v297
  %299 = vmatmul.f32.gmra.mxu0 %v272
  %v300 = vpop.f32.mrf.mxu0
  %v301 = vadd.f32 %v260, %v300
  %302 = vmatmul.f32.gmra.mxu0 %v275
  %v303 = vpop.f32.mrf.mxu0
  %v304 = vadd.f32 %v263, %v303
  %305 = vdwg.mxu0
  %v306 = vld [vmem:[%s6] sm:$0x1]
  %v308 = vperm.slane %v306, 0
  %v310 = vmul.f32 %v295, %v308
  %v311 = vmul.f32 %v298, %v308
  %v312 = vmul.f32 %v301, %v308
  %v313 = vmul.f32 %v304, %v308
  %v314 = vld [vmem:[%s7] sm:$0x1]
  %v316 = vperm.slane %v314, 0
  %v318 = vadd.f32 %v310, %v316
  %v319 = vadd.f32 %v311, %v316
  %v320 = vadd.f32 %v312, %v316
  %v321 = vadd.f32 %v313, %v316
  %v322 = vmax.f32 %v318, 0.0
  %v323 = vmax.f32 %v319, 0.0
  %v324 = vmax.f32 %v320, 0.0
  %v325 = vmax.f32 %v321, 0.0
  %v326 = vld [vmem:[%s8] sm:$0xff]
  %v327 = vld [vmem:[%s8 + $0x8] sm:$0xff]
  %v328 = vld [vmem:[%s8 + $0x10] sm:$0xff]
  %v329 = vld [vmem:[%s8 + $0x18] sm:$0xff]
  %vm330 = vcmask 261120
  %v332 = vsel %vm330, %v322, 0
  %v335 = vsel %vm330, %v323, 0
  %v338 = vsel %vm330, %v324, 0
  %v341 = vsel %vm330, %v325, 0
  %343 = vmatpush.msra.mxu0 0.0
  %344 = vmatpush.msra.mxu0 0.0
  %345 = vmatpush.msra.mxu0 0.0
  %346 = vmatpush.msra.mxu0 0.0
  %347 = vmatpush.msra.mxu0 0.0
  %348 = vmatpush.msra.mxu0 0.0
  %349 = vmatpush.msra.mxu0 0.0
  %350 = vmatpush.msra.mxu0 0.0
  %351 = vmatpush.msra.mxu0 0.0
  %352 = vmatpush.msra.mxu0 0.0
  %353 = vmatpush.msra.mxu0 0.0
  %354 = vmatpush.msra.mxu0 0.0
  %355 = vmatpush.msra.mxu0 %v329
  %356 = vmatpush.msra.mxu0 %v328
  %357 = vmatpush.msra.mxu0 %v327
  %358 = vmatpush.msra.mxu0 %v326
  %359 = vmatmul.f32.gmra.mxu0 %v332
  %v360 = vpop.f32.mrf.mxu0
  %v361 = vadd.f32 0.0, %v360
  %362 = vmatmul.f32.gmra.mxu0 %v335
  %v363 = vpop.f32.mrf.mxu0
  %v364 = vadd.f32 0.0, %v363
  %365 = vmatmul.f32.gmra.mxu0 %v338
  %v366 = vpop.f32.mrf.mxu0
  %v367 = vadd.f32 0.0, %v366
  %368 = vmatmul.f32.gmra.mxu0 %v341
  %v369 = vpop.f32.mrf.mxu0
  %v370 = vadd.f32 0.0, %v369
  %371 = vdwg.mxu0
  %v372 = vld [vmem:[%s9] sm:$0x1]
  %v374 = vperm.slane %v372, 0
  %v376 = vmul.f32 %v361, %v374
  %v377 = vmul.f32 %v364, %v374
  %v378 = vmul.f32 %v367, %v374
  %v379 = vmul.f32 %v370, %v374
  %v380 = vld [vmem:[%s10] sm:$0x1]
  %v382 = vperm.slane %v380, 0
  %v384 = vadd.f32 %v376, %v382
  %v385 = vadd.f32 %v377, %v382
  %v386 = vadd.f32 %v378, %v382
  %v387 = vadd.f32 %v379, %v382
  %v388 = vmax.f32 %v384, 0.0
  %v389 = vmax.f32 %v385, 0.0
  %v390 = vmax.f32 %v386, 0.0
  %v391 = vmax.f32 %v387, 0.0
  %392 = vst.msk [vmem:[%s11] sm:$0xff] %vm174, %v388
  %393 = vst.msk [vmem:[%s11 + $0x8] sm:$0xff] %vm174, %v389
  %394 = vst.msk [vmem:[%s11 + $0x10] sm:$0xff] %vm174, %v390
  %395 = vst.msk [vmem:[%s11 + $0x18] sm:$0xff] %vm174, %v391
  // Predicated region
  $region46: #{model_forward.13} parent=0 // pred_check
    _
  $region47: #{model_forward.13} parent=0 // pred_check_branch
    %397 = sbr.rel (0) target = $region49
  $region48: #{model_forward.13} parent=0 // pred_region
    _
  $region49: #{model_forward.13} parent=0 // pred_fallthru
    _
  // Predicated region
  $region50: #{model_forward.13} parent=0 // pred_check
    _
  $region51: #{model_forward.13} parent=0 // pred_check_branch
    %399 = sbr.rel (0) target = $region53
  $region52: #{model_forward.13} parent=0 // pred_region
    _
  $region53: #{model_forward.13} parent=0 // pred_fallthru
    _

// kernel: model_forward.15
$region0: #{model_forward.15}
  #allocation0 [shape = 'u32[]', space=smem, size = 0x4, offset = 0x4, fixed_abs, tag = 'smem constant byte address 0x4 - core index']
  #allocation1 [shape = 'u32[72,128]{1,0:T(1,128)}', space=vmem, size = 0x9000, scoped, tag = 'internal scratch']
  %s0 = inlined_call_operand.vmem [shape: f32[64,16], index: 0, kind: input, shape index: {}]
  %s1 = inlined_call_operand.vmem [shape: f32[16,16], index: 1, kind: input, shape index: {}]
  %s2 = inlined_call_operand.vmem [shape: f32[1,16], index: 2, kind: input, shape index: {}]
  %s3 = inlined_call_operand.vmem [shape: f32[1,16], index: 3, kind: input, shape index: {}]
  %s4 = inlined_call_operand.vmem [shape: f32[16,2], index: 4, kind: input, shape index: {}]
  %s5 = inlined_call_operand.vmem [shape: f32[1,2], index: 5, kind: input, shape index: {}]
  %s6 = inlined_call_operand.vmem [shape: f32[1,2], index: 6, kind: input, shape index: {}]
  %s7 = inlined_call_operand.vmem [shape: f32[64,2], index: 7, kind: output, shape index: {}]
  %s8 = sld [smem:[#allocation0]]
  $region38: #{model_forward.15} parent=0
    _
  %s10 = ssub.s32 1, %s8
  %s11 = scalar_select 0, %s10, %s8
  // Predicated region
  $region2: #{model_forward.15} parent=0 // pred_check
    _
  $region3: #{model_forward.15} parent=0 // pred_check_branch
    %13 = sbr.rel (0) target = $region5
  $region4: #{model_forward.15} parent=0 // pred_region
    _
  $region5: #{model_forward.15} parent=0 // pred_fallthru
    _
  // Predicated region
  $region6: #{model_forward.15} parent=0 // pred_check
    _
  $region7: #{model_forward.15} parent=0 // pred_check_branch
    %15 = sbr.rel (0) target = $region9
  $region8: #{model_forward.15} parent=0 // pred_region
    _
  $region9: #{model_forward.15} parent=0 // pred_fallthru
    _
  // Predicated region
  $region10: #{model_forward.15} parent=0 // pred_check
    _
  $region11: #{model_forward.15} parent=0 // pred_check_branch
    %17 = sbr.rel (0) target = $region13
  $region12: #{model_forward.15} parent=0 // pred_region
    _
  $region13: #{model_forward.15} parent=0 // pred_fallthru
    _
  // Predicated region
  $region14: #{model_forward.15} parent=0 // pred_check
    _
  $region15: #{model_forward.15} parent=0 // pred_check_branch
    %19 = sbr.rel (0) target = $region17
  $region16: #{model_forward.15} parent=0 // pred_region
    _
  $region17: #{model_forward.15} parent=0 // pred_fallthru
    _
  // Predicated region
  $region18: #{model_forward.15} parent=0 // pred_check
    _
  $region19: #{model_forward.15} parent=0 // pred_check_branch
    %21 = sbr.rel (0) target = $region21
  $region20: #{model_forward.15} parent=0 // pred_region
    _
  $region21: #{model_forward.15} parent=0 // pred_fallthru
    _
  // Predicated region
  $region22: #{model_forward.15} parent=0 // pred_check
    _
  $region23: #{model_forward.15} parent=0 // pred_check_branch
    %23 = sbr.rel (0) target = $region25
  $region24: #{model_forward.15} parent=0 // pred_region
    _
  $region25: #{model_forward.15} parent=0 // pred_fallthru
    _
  // Predicated region
  $region26: #{model_forward.15} parent=0 // pred_check
    _
  $region27: #{model_forward.15} parent=0 // pred_check_branch
    %25 = sbr.rel (0) target = $region29
  $region28: #{model_forward.15} parent=0 // pred_region
    _
  $region29: #{model_forward.15} parent=0 // pred_fallthru
    _
  %v26 = vld [vmem:[%s0] sm:$0xff]
  %v27 = vld [vmem:[%s0 + $0x8] sm:$0xff]
  %v28 = vld [vmem:[%s0 + $0x10] sm:$0xff]
  %v29 = vld [vmem:[%s0 + $0x18] sm:$0xff]
  %v30 = vld [vmem:[%s0 + $0x20] sm:$0xff]
  %v31 = vld [vmem:[%s0 + $0x28] sm:$0xff]
  %v32 = vld [vmem:[%s0 + $0x30] sm:$0xff]
  %v33 = vld [vmem:[%s0 + $0x38] sm:$0xff]
  %v34 = vld [vmem:[%s1] sm:$0xff]
  %v35 = vld [vmem:[%s1 + $0x8] sm:$0xff]
  %vm36 = vcmask 130048
  %v38 = vsel %vm36, %v26, 0
  %v41 = vsel %vm36, %v27, 0
  %v44 = vsel %vm36, %v28, 0
  %v47 = vsel %vm36, %v29, 0
  %v50 = vsel %vm36, %v30, 0
  %v53 = vsel %vm36, %v31, 0
  %v56 = vsel %vm36, %v32, 0
  %v59 = vsel %vm36, %v33, 0
  %61 = vmatpush.msra.mxu0 0.0
  %62 = vmatpush.msra.mxu0 0.0
  %63 = vmatpush.msra.mxu0 0.0
  %64 = vmatpush.msra.mxu0 0.0
  %65 = vmatpush.msra.mxu0 0.0
  %66 = vmatpush.msra.mxu0 0.0
  %67 = vmatpush.msra.mxu0 0.0
  %68 = vmatpush.msra.mxu0 0.0
  %69 = vmatpush.msra.mxu0 0.0
  %70 = vmatpush.msra.mxu0 0.0
  %71 = vmatpush.msra.mxu0 0.0
  %72 = vmatpush.msra.mxu0 0.0
  %73 = vmatpush.msra.mxu0 0.0
  %74 = vmatpush.msra.mxu0 0.0
  %75 = vmatpush.msra.mxu0 %v35
  %76 = vmatpush.msra.mxu0 %v34
  %77 = vmatmul.f32.gmra.mxu0 %v38
  %v78 = vpop.f32.mrf.mxu0
  %v79 = vadd.f32 0.0, %v78
  %80 = vmatmul.f32.gmra.mxu0 %v41
  %v81 = vpop.f32.mrf.mxu0
  %v82 = vadd.f32 0.0, %v81
  %83 = vmatmul.f32.gmra.mxu0 %v44
  %v84 = vpop.f32.mrf.mxu0
  %v85 = vadd.f32 0.0, %v84
  %86 = vmatmul.f32.gmra.mxu0 %v47
  %v87 = vpop.f32.mrf.mxu0
  %v88 = vadd.f32 0.0, %v87
  %89 = vmatmul.f32.gmra.mxu0 %v50
  %v90 = vpop.f32.mrf.mxu0
  %v91 = vadd.f32 0.0, %v90
  %92 = vmatmul.f32.gmra.mxu0 %v53
  %v93 = vpop.f32.mrf.mxu0
  %v94 = vadd.f32 0.0, %v93
  %95 = vmatmul.f32.gmra.mxu0 %v56
  %v96 = vpop.f32.mrf.mxu0
  %v97 = vadd.f32 0.0, %v96
  %98 = vmatmul.f32.gmra.mxu0 %v59
  %v99 = vpop.f32.mrf.mxu0
  %v100 = vadd.f32 0.0, %v99
  %101 = vdwg.mxu0
  %v102 = vld [vmem:[%s2] sm:$0x1]
  %v104 = vperm.slane %v102, 0
  %v106 = vmul.f32 %v79, %v104
  %v107 = vmul.f32 %v82, %v104
  %v108 = vmul.f32 %v85, %v104
  %v109 = vmul.f32 %v88, %v104
  %v110 = vmul.f32 %v91, %v104
  %v111 = vmul.f32 %v94, %v104
  %v112 = vmul.f32 %v97, %v104
  %v113 = vmul.f32 %v100, %v104
  %v114 = vld [vmem:[%s3] sm:$0x1]
  %v116 = vperm.slane %v114, 0
  %v118 = vadd.f32 %v106, %v116
  %v119 = vadd.f32 %v107, %v116
  %v120 = vadd.f32 %v108, %v116
  %v121 = vadd.f32 %v109, %v116
  %v122 = vadd.f32 %v110, %v116
  %v123 = vadd.f32 %v111, %v116
  %v124 = vadd.f32 %v112, %v116
  %v125 = vadd.f32 %v113, %v116
  %v126 = vmax.f32 %v118, 0.0
  %v127 = vmax.f32 %v119, 0.0
  %v128 = vmax.f32 %v120, 0.0
  %v129 = vmax.f32 %v121, 0.0
  %v130 = vmax.f32 %v122, 0.0
  %v131 = vmax.f32 %v123, 0.0
  %v132 = vmax.f32 %v124, 0.0
  %v133 = vmax.f32 %v125, 0.0
  %v134 = vld [vmem:[%s4] sm:$0xff]
  %v135 = vld [vmem:[%s4 + $0x8] sm:$0xff]
  %v137 = vsel %vm36, %v126, 0
  %v140 = vsel %vm36, %v127, 0
  %v143 = vsel %vm36, %v128, 0
  %v146 = vsel %vm36, %v129, 0
  %v149 = vsel %vm36, %v130, 0
  %v152 = vsel %vm36, %v131, 0
  %v155 = vsel %vm36, %v132, 0
  %v158 = vsel %vm36, %v133, 0
  %160 = vmatpush.msra.mxu0 0.0
  %161 = vmatpush.msra.mxu0 0.0
  %162 = vmatpush.msra.mxu0 0.0
  %163 = vmatpush.msra.mxu0 0.0
  %164 = vmatpush.msra.mxu0 0.0
  %165 = vmatpush.msra.mxu0 0.0
  %166 = vmatpush.msra.mxu0 0.0
  %167 = vmatpush.msra.mxu0 0.0
  %168 = vmatpush.msra.mxu0 0.0
  %169 = vmatpush.msra.mxu0 0.0
  %170 = vmatpush.msra.mxu0 0.0
  %171 = vmatpush.msra.mxu0 0.0
  %172 = vmatpush.msra.mxu0 0.0
  %173 = vmatpush.msra.mxu0 0.0
  %174 = vmatpush.msra.mxu0 %v135
  %175 = vmatpush.msra.mxu0 %v134
  %176 = vmatmul.f32.gmra.mxu0 %v137
  %v177 = vpop.f32.mrf.mxu0
  %v178 = vadd.f32 0.0, %v177
  %179 = vmatmul.f32.gmra.mxu0 %v140
  %v180 = vpop.f32.mrf.mxu0
  %v181 = vadd.f32 0.0, %v180
  %182 = vmatmul.f32.gmra.mxu0 %v143
  %v183 = vpop.f32.mrf.mxu0
  %v184 = vadd.f32 0.0, %v183
  %185 = vmatmul.f32.gmra.mxu0 %v146
  %v186 = vpop.f32.mrf.mxu0
  %v187 = vadd.f32 0.0, %v186
  %188 = vmatmul.f32.gmra.mxu0 %v149
  %v189 = vpop.f32.mrf.mxu0
  %v190 = vadd.f32 0.0, %v189
  %191 = vmatmul.f32.gmra.mxu0 %v152
  %v192 = vpop.f32.mrf.mxu0
  %v193 = vadd.f32 0.0, %v192
  %194 = vmatmul.f32.gmra.mxu0 %v155
  %v195 = vpop.f32.mrf.mxu0
  %v196 = vadd.f32 0.0, %v195
  %197 = vmatmul.f32.gmra.mxu0 %v158
  %v198 = vpop.f32.mrf.mxu0
  %v199 = vadd.f32 0.0, %v198
  %200 = vdwg.mxu0
  %v201 = vld [vmem:[%s5] sm:$0x1]
  %v203 = vperm.slane %v201, 0
  %v205 = vmul.f32 %v178, %v203
  %v206 = vmul.f32 %v181, %v203
  %v207 = vmul.f32 %v184, %v203
  %v208 = vmul.f32 %v187, %v203
  %v209 = vmul.f32 %v190, %v203
  %v210 = vmul.f32 %v193, %v203
  %v211 = vmul.f32 %v196, %v203
  %v212 = vmul.f32 %v199, %v203
  %v213 = vld [vmem:[%s6] sm:$0x1]
  %v215 = vperm.slane %v213, 0
  %v217 = vadd.f32 %v205, %v215
  %v218 = vadd.f32 %v206, %v215
  %v219 = vadd.f32 %v207, %v215
  %v220 = vadd.f32 %v208, %v215
  %v221 = vadd.f32 %v209, %v215
  %v222 = vadd.f32 %v210, %v215
  %v223 = vadd.f32 %v211, %v215
  %v224 = vadd.f32 %v212, %v215
  %vm225 = vcmask 15360
  %226 = vst.msk [vmem:[%s7] sm:$0xff] %vm225, %v217
  %227 = vst.msk [vmem:[%s7 + $0x8] sm:$0xff] %vm225, %v218
  %228 = vst.msk [vmem:[%s7 + $0x10] sm:$0xff] %vm225, %v219
  %229 = vst.msk [vmem:[%s7 + $0x18] sm:$0xff] %vm225, %v220
  %230 = vst.msk [vmem:[%s7 + $0x20] sm:$0xff] %vm225, %v221
  %231 = vst.msk [vmem:[%s7 + $0x28] sm:$0xff] %vm225, %v222
  %232 = vst.msk [vmem:[%s7 + $0x30] sm:$0xff] %vm225, %v223
  %233 = vst.msk [vmem:[%s7 + $0x38] sm:$0xff] %vm225, %v224
  // Predicated region
  $region30: #{model_forward.15} parent=0 // pred_check
    _
  $region31: #{model_forward.15} parent=0 // pred_check_branch
    %235 = sbr.rel (0) target = $region33
  $region32: #{model_forward.15} parent=0 // pred_region
    _
  $region33: #{model_forward.15} parent=0 // pred_fallthru
    _
  // Predicated region
  $region34: #{model_forward.15} parent=0 // pred_check
    _
  $region35: #{model_forward.15} parent=0 // pred_check_branch
    %237 = sbr.rel (0) target = $region37
  $region36: #{model_forward.15} parent=0 // pred_region
    _
  $region37: #{model_forward.15} parent=0 // pred_fallthru
    _

// kernel: model_forward.14
$region0: #{model_forward.14}
  #allocation0 [shape = 'u32[]', space=smem, size = 0x4, offset = 0x4, fixed_abs, tag = 'smem constant byte address 0x4 - core index']
  #allocation1 [shape = 'u32[72,128]{1,0:T(1,128)}', space=vmem, size = 0x9000, scoped, tag = 'internal scratch']
  %s0 = inlined_call_operand.vmem [shape: s32[64,3], index: 0, kind: input, shape index: {}]
  %s1 = inlined_call_operand.vmem [shape: f32[64,3], index: 1, kind: input, shape index: {}]
  %s2 = inlined_call_operand.vmem [shape: f32[32,16], index: 2, kind: input, shape index: {}]
  %s3 = inlined_call_operand.vmem [shape: f32[64,16], index: 3, kind: input, shape index: {}]
  %s4 = inlined_call_operand.vmem [shape: f32[16,32], index: 4, kind: input, shape index: {}]
  %s5 = inlined_call_operand.vmem [shape: f32[16,32], index: 5, kind: input, shape index: {}]
  %s6 = inlined_call_operand.vmem [shape: f32[1,32], index: 6, kind: input, shape index: {}]
  %s7 = inlined_call_operand.vmem [shape: f32[1,32], index: 7, kind: input, shape index: {}]
  %s8 = inlined_call_operand.vmem [shape: f32[32,16], index: 8, kind: input, shape index: {}]
  %s9 = inlined_call_operand.vmem [shape: f32[1,16], index: 9, kind: input, shape index: {}]
  %s10 = inlined_call_operand.vmem [shape: f32[1,16], index: 10, kind: input, shape index: {}]
  %s11 = inlined_call_operand.vmem [shape: f32[64,16], index: 11, kind: output, shape index: {}]
  %s12 = sld [smem:[#allocation0]]
  $region54: #{model_forward.14} parent=0
    _
  %s14 = ssub.s32 1, %s12
  %s15 = scalar_select 0, %s14, %s12
  // Predicated region
  $region2: #{model_forward.14} parent=0 // pred_check
    _
  $region3: #{model_forward.14} parent=0 // pred_check_branch
    %17 = sbr.rel (0) target = $region5
  $region4: #{model_forward.14} parent=0 // pred_region
    _
  $region5: #{model_forward.14} parent=0 // pred_fallthru
    _
  // Predicated region
  $region6: #{model_forward.14} parent=0 // pred_check
    _
  $region7: #{model_forward.14} parent=0 // pred_check_branch
    %19 = sbr.rel (0) target = $region9
  $region8: #{model_forward.14} parent=0 // pred_region
    _
  $region9: #{model_forward.14} parent=0 // pred_fallthru
    _
  // Predicated region
  $region10: #{model_forward.14} parent=0 // pred_check
    _
  $region11: #{model_forward.14} parent=0 // pred_check_branch
    %21 = sbr.rel (0) target = $region13
  $region12: #{model_forward.14} parent=0 // pred_region
    _
  $region13: #{model_forward.14} parent=0 // pred_fallthru
    _
  // Predicated region
  $region14: #{model_forward.14} parent=0 // pred_check
    _
  $region15: #{model_forward.14} parent=0 // pred_check_branch
    %23 = sbr.rel (0) target = $region17
  $region16: #{model_forward.14} parent=0 // pred_region
    _
  $region17: #{model_forward.14} parent=0 // pred_fallthru
    _
  // Predicated region
  $region18: #{model_forward.14} parent=0 // pred_check
    _
  $region19: #{model_forward.14} parent=0 // pred_check_branch
    %25 = sbr.rel (0) target = $region21
  $region20: #{model_forward.14} parent=0 // pred_region
    _
  $region21: #{model_forward.14} parent=0 // pred_fallthru
    _
  // Predicated region
  $region22: #{model_forward.14} parent=0 // pred_check
    _
  $region23: #{model_forward.14} parent=0 // pred_check_branch
    %27 = sbr.rel (0) target = $region25
  $region24: #{model_forward.14} parent=0 // pred_region
    _
  $region25: #{model_forward.14} parent=0 // pred_fallthru
    _
  // Predicated region
  $region26: #{model_forward.14} parent=0 // pred_check
    _
  $region27: #{model_forward.14} parent=0 // pred_check_branch
    %29 = sbr.rel (0) target = $region29
  $region28: #{model_forward.14} parent=0 // pred_region
    _
  $region29: #{model_forward.14} parent=0 // pred_fallthru
    _
  // Predicated region
  $region30: #{model_forward.14} parent=0 // pred_check
    _
  $region31: #{model_forward.14} parent=0 // pred_check_branch
    %31 = sbr.rel (0) target = $region33
  $region32: #{model_forward.14} parent=0 // pred_region
    _
  $region33: #{model_forward.14} parent=0 // pred_fallthru
    _
  // Predicated region
  $region34: #{model_forward.14} parent=0 // pred_check
    _
  $region35: #{model_forward.14} parent=0 // pred_check_branch
    %33 = sbr.rel (0) target = $region37
  $region36: #{model_forward.14} parent=0 // pred_region
    _
  $region37: #{model_forward.14} parent=0 // pred_fallthru
    _
  // Predicated region
  $region38: #{model_forward.14} parent=0 // pred_check
    _
  $region39: #{model_forward.14} parent=0 // pred_check_branch
    %35 = sbr.rel (0) target = $region41
  $region40: #{model_forward.14} parent=0 // pred_region
    _
  $region41: #{model_forward.14} parent=0 // pred_fallthru
    _
  // Predicated region
  $region42: #{model_forward.14} parent=0 // pred_check
    _
  $region43: #{model_forward.14} parent=0 // pred_check_branch
    %37 = sbr.rel (0) target = $region45
  $region44: #{model_forward.14} parent=0 // pred_region
    _
  $region45: #{model_forward.14} parent=0 // pred_fallthru
    _
  %v38 = vlaneseq
  %v39 = vand.u32 %v38, 127
  %v40 = vld [vmem:[%s0] sm:$0xff]
  %v41 = vld [vmem:[%s0 + $0x8] sm:$0xff]
  %v42 = vld [vmem:[%s0 + $0x10] sm:$0xff]
  %v43 = vld [vmem:[%s0 + $0x18] sm:$0xff]
  %v44 = vld [vmem:[%s0 + $0x20] sm:$0xff]
  %v45 = vld [vmem:[%s0 + $0x28] sm:$0xff]
  %v46 = vld [vmem:[%s0 + $0x30] sm:$0xff]
  %v47 = vld [vmem:[%s0 + $0x38] sm:$0xff]
  %v48 = vld [vmem:[%s1] sm:$0xff]
  %v49 = vld [vmem:[%s1 + $0x8] sm:$0xff]
  %v50 = vld [vmem:[%s1 + $0x10] sm:$0xff]
  %v51 = vld [vmem:[%s1 + $0x18] sm:$0xff]
  %v52 = vld [vmem:[%s1 + $0x20] sm:$0xff]
  %v53 = vld [vmem:[%s1 + $0x28] sm:$0xff]
  %v54 = vld [vmem:[%s1 + $0x30] sm:$0xff]
  %v55 = vld [vmem:[%s1 + $0x38] sm:$0xff]
  %56 = vset.pattern.permute.xlu0 0
  %57 = vperm.xlu0 %56, %v40
  %v58 = vpop.permute.xlu0 %57
  %59 = vset.pattern.permute.xlu0 0
  %60 = vperm.xlu0 %59, %v41
  %v61 = vpop.permute.xlu0 %60
  %62 = vset.pattern.permute.xlu0 0
  %63 = vperm.xlu0 %62, %v42
  %v64 = vpop.permute.xlu0 %63
  %65 = vset.pattern.permute.xlu0 0
  %66 = vperm.xlu0 %65, %v43
  %v67 = vpop.permute.xlu0 %66
  %68 = vset.pattern.permute.xlu0 0
  %69 = vperm.xlu0 %68, %v44
  %v70 = vpop.permute.xlu0 %69
  %71 = vset.pattern.permute.xlu0 0
  %72 = vperm.xlu0 %71, %v45
  %v73 = vpop.permute.xlu0 %72
  %74 = vset.pattern.permute.xlu0 0
  %75 = vperm.xlu0 %74, %v46
  %v76 = vpop.permute.xlu0 %75
  %77 = vset.pattern.permute.xlu0 0
  %78 = vperm.xlu0 %77, %v47
  %v79 = vpop.permute.xlu0 %78
  %vm80 = vcmp.eq.s32.totalorder %v39, %v58
  %vm81 = vcmp.eq.s32.totalorder %v39, %v61
  %vm82 = vcmp.eq.s32.totalorder %v39, %v64
  %vm83 = vcmp.eq.s32.totalorder %v39, %v67
  %vm84 = vcmp.eq.s32.totalorder %v39, %v70
  %vm85 = vcmp.eq.s32.totalorder %v39, %v73
  %vm86 = vcmp.eq.s32.totalorder %v39, %v76
  %vm87 = vcmp.eq.s32.totalorder %v39, %v79
  %89 = vset.pattern.permute.xlu0 0
  %90 = vperm.xlu0 %89, %v48
  %v91 = vpop.permute.xlu0 %90
  %94 = vset.pattern.permute.xlu0 0
  %95 = vperm.xlu0 %94, %v49
  %v96 = vpop.permute.xlu0 %95
  %99 = vset.pattern.permute.xlu0 0
  %100 = vperm.xlu0 %99, %v50
  %v101 = vpop.permute.xlu0 %100
  %104 = vset.pattern.permute.xlu0 0
  %105 = vperm.xlu0 %104, %v51
  %v106 = vpop.permute.xlu0 %105
  %109 = vset.pattern.permute.xlu0 0
  %110 = vperm.xlu0 %109, %v52
  %v111 = vpop.permute.xlu0 %110
  %114 = vset.pattern.permute.xlu0 0
  %115 = vperm.xlu0 %114, %v53
  %v116 = vpop.permute.xlu0 %115
  %119 = vset.pattern.permute.xlu0 0
  %120 = vperm.xlu0 %119, %v54
  %v121 = vpop.permute.xlu0 %120
  %124 = vset.pattern.permute.xlu0 0
  %125 = vperm.xlu0 %124, %v55
  %v126 = vpop.permute.xlu0 %125
  %v128 = vsel %vm80, %v91, 0.0
  %v129 = vsel %vm81, %v96, 0.0
  %v130 = vsel %vm82, %v101, 0.0
  %v131 = vsel %vm83, %v106, 0.0
  %v132 = vsel %vm84, %v111, 0.0
  %v133 = vsel %vm85, %v116, 0.0
  %v134 = vsel %vm86, %v121, 0.0
  %v135 = vsel %vm87, %v126, 0.0
  %v136 = vadd.f32 %v128, 0.0
  %v137 = vadd.f32 %v129, 0.0
  %v138 = vadd.f32 %v130, 0.0
  %v139 = vadd.f32 %v131, 0.0
  %v140 = vadd.f32 %v132, 0.0
  %v141 = vadd.f32 %v133, 0.0
  %v142 = vadd.f32 %v134, 0.0
  %v143 = vadd.f32 %v135, 0.0
  %144 = vset.pattern.permute.xlu0 1
  %145 = vperm.xlu0 %144, %v40
  %v146 = vpop.permute.xlu0 %145
  %147 = vset.pattern.permute.xlu0 1
  %148 = vperm.xlu0 %147, %v41
  %v149 = vpop.permute.xlu0 %148
  %150 = vset.pattern.permute.xlu0 1
  %151 = vperm.xlu0 %150, %v42
  %v152 = vpop.permute.xlu0 %151
  %153 = vset.pattern.permute.xlu0 1
  %154 = vperm.xlu0 %153, %v43
  %v155 = vpop.permute.xlu0 %154
  %156 = vset.pattern.permute.xlu0 1
  %157 = vperm.xlu0 %156, %v44
  %v158 = vpop.permute.xlu0 %157
  %159 = vset.pattern.permute.xlu0 1
  %160 = vperm.xlu0 %159, %v45
  %v161 = vpop.permute.xlu0 %160
  %162 = vset.pattern.permute.xlu0 1
  %163 = vperm.xlu0 %162, %v46
  %v164 = vpop.permute.xlu0 %163
  %165 = vset.pattern.permute.xlu0 1
  %166 = vperm.xlu0 %165, %v47
  %v167 = vpop.permute.xlu0 %166
  %vm168 = vcmp.eq.s32.totalorder %v39, %v146
  %vm169 = vcmp.eq.s32.totalorder %v39, %v149
  %vm170 = vcmp.eq.s32.totalorder %v39, %v152
  %vm171 = vcmp.eq.s32.totalorder %v39, %v155
  %vm172 = vcmp.eq.s32.totalorder %v39, %v158
  %vm173 = vcmp.eq.s32.totalorder %v39, %v161
  %vm174 = vcmp.eq.s32.totalorder %v39, %v164
  %vm175 = vcmp.eq.s32.totalorder %v39, %v167
  %176 = vset.pattern.permute.xlu0 1
  %177 = vperm.xlu0 %176, %v48
  %v178 = vpop.permute.xlu0 %177
  %180 = vset.pattern.permute.xlu0 1
  %181 = vperm.xlu0 %180, %v49
  %v182 = vpop.permute.xlu0 %181
  %184 = vset.pattern.permute.xlu0 1
  %185 = vperm.xlu0 %184, %v50
  %v186 = vpop.permute.xlu0 %185
  %188 = vset.pattern.permute.xlu0 1
  %189 = vperm.xlu0 %188, %v51
  %v190 = vpop.permute.xlu0 %189
  %192 = vset.pattern.permute.xlu0 1
  %193 = vperm.xlu0 %192, %v52
  %v194 = vpop.permute.xlu0 %193
  %196 = vset.pattern.permute.xlu0 1
  %197 = vperm.xlu0 %196, %v53
  %v198 = vpop.permute.xlu0 %197
  %200 = vset.pattern.permute.xlu0 1
  %201 = vperm.xlu0 %200, %v54
  %v202 = vpop.permute.xlu0 %201
  %204 = vset.pattern.permute.xlu0 1
  %205 = vperm.xlu0 %204, %v55
  %v206 = vpop.permute.xlu0 %205
  %v208 = vsel %vm168, %v178, 0.0
  %v209 = vsel %vm169, %v182, 0.0
  %v210 = vsel %vm170, %v186, 0.0
  %v211 = vsel %vm171, %v190, 0.0
  %v212 = vsel %vm172, %v194, 0.0
  %v213 = vsel %vm173, %v198, 0.0
  %v214 = vsel %vm174, %v202, 0.0
  %v215 = vsel %vm175, %v206, 0.0
  %v216 = vadd.f32 %v136, %v208
  %v217 = vadd.f32 %v137, %v209
  %v218 = vadd.f32 %v138, %v210
  %v219 = vadd.f32 %v139, %v211
  %v220 = vadd.f32 %v140, %v212
  %v221 = vadd.f32 %v141, %v213
  %v222 = vadd.f32 %v142, %v214
  %v223 = vadd.f32 %v143, %v215
  %224 = vset.pattern.permute.xlu0 2
  %225 = vperm.xlu0 %224, %v40
  %v226 = vpop.permute.xlu0 %225
  %227 = vset.pattern.permute.xlu0 2
  %228 = vperm.xlu0 %227, %v41
  %v229 = vpop.permute.xlu0 %228
  %230 = vset.pattern.permute.xlu0 2
  %231 = vperm.xlu0 %230, %v42
  %v232 = vpop.permute.xlu0 %231
  %233 = vset.pattern.permute.xlu0 2
  %234 = vperm.xlu0 %233, %v43
  %v235 = vpop.permute.xlu0 %234
  %236 = vset.pattern.permute.xlu0 2
  %237 = vperm.xlu0 %236, %v44
  %v238 = vpop.permute.xlu0 %237
  %239 = vset.pattern.permute.xlu0 2
  %240 = vperm.xlu0 %239, %v45
  %v241 = vpop.permute.xlu0 %240
  %242 = vset.pattern.permute.xlu0 2
  %243 = vperm.xlu0 %242, %v46
  %v244 = vpop.permute.xlu0 %243
  %245 = vset.pattern.permute.xlu0 2
  %246 = vperm.xlu0 %245, %v47
  %v247 = vpop.permute.xlu0 %246
  %vm248 = vcmp.eq.s32.totalorder %v39, %v226
  %vm249 = vcmp.eq.s32.totalorder %v39, %v229
  %vm250 = vcmp.eq.s32.totalorder %v39, %v232
  %vm251 = vcmp.eq.s32.totalorder %v39, %v235
  %vm252 = vcmp.eq.s32.totalorder %v39, %v238
  %vm253 = vcmp.eq.s32.totalorder %v39, %v241
  %vm254 = vcmp.eq.s32.totalorder %v39, %v244
  %vm255 = vcmp.eq.s32.totalorder %v39, %v247
  %256 = vset.pattern.permute.xlu0 2
  %257 = vperm.xlu0 %256, %v48
  %v258 = vpop.permute.xlu0 %257
  %260 = vset.pattern.permute.xlu0 2
  %261 = vperm.xlu0 %260, %v49
  %v262 = vpop.permute.xlu0 %261
  %264 = vset.pattern.permute.xlu0 2
  %265 = vperm.xlu0 %264, %v50
  %v266 = vpop.permute.xlu0 %265
  %268 = vset.pattern.permute.xlu0 2
  %269 = vperm.xlu0 %268, %v51
  %v270 = vpop.permute.xlu0 %269
  %272 = vset.pattern.permute.xlu0 2
  %273 = vperm.xlu0 %272, %v52
  %v274 = vpop.permute.xlu0 %273
  %276 = vset.pattern.permute.xlu0 2
  %277 = vperm.xlu0 %276, %v53
  %v278 = vpop.permute.xlu0 %277
  %280 = vset.pattern.permute.xlu0 2
  %281 = vperm.xlu0 %280, %v54
  %v282 = vpop.permute.xlu0 %281
  %284 = vset.pattern.permute.xlu0 2
  %285 = vperm.xlu0 %284, %v55
  %v286 = vpop.permute.xlu0 %285
  %v288 = vsel %vm248, %v258, 0.0
  %v289 = vsel %vm249, %v262, 0.0
  %v290 = vsel %vm250, %v266, 0.0
  %v291 = vsel %vm251, %v270, 0.0
  %v292 = vsel %vm252, %v274, 0.0
  %v293 = vsel %vm253, %v278, 0.0
  %v294 = vsel %vm254, %v282, 0.0
  %v295 = vsel %vm255, %v286, 0.0
  %v296 = vadd.f32 %v216, %v288
  %v297 = vadd.f32 %v217, %v289
  %v298 = vadd.f32 %v218, %v290
  %v299 = vadd.f32 %v219, %v291
  %v300 = vadd.f32 %v220, %v292
  %v301 = vadd.f32 %v221, %v293
  %v302 = vadd.f32 %v222, %v294
  %v303 = vadd.f32 %v223, %v295
  %v304 = vld [vmem:[%s2] sm:$0xff]
  %v305 = vld [vmem:[%s2 + $0x8] sm:$0xff]
  %v306 = vld [vmem:[%s2 + $0x10] sm:$0xff]
  %v307 = vld [vmem:[%s2 + $0x18] sm:$0xff]
  %vm308 = vcmask 261120
  %v310 = vsel %vm308, %v296, 0
  %v313 = vsel %vm308, %v297, 0
  %v316 = vsel %vm308, %v298, 0
  %v319 = vsel %vm308, %v299, 0
  %v322 = vsel %vm308, %v300, 0
  %v325 = vsel %vm308, %v301, 0
  %v328 = vsel %vm308, %v302, 0
  %v331 = vsel %vm308, %v303, 0
  %333 = vmatpush.msra.mxu0 0.0
  %334 = vmatpush.msra.mxu0 0.0
  %335 = vmatpush.msra.mxu0 0.0
  %336 = vmatpush.msra.mxu0 0.0
  %337 = vmatpush.msra.mxu0 0.0
  %338 = vmatpush.msra.mxu0 0.0
  %339 = vmatpush.msra.mxu0 0.0
  %340 = vmatpush.msra.mxu0 0.0
  %341 = vmatpush.msra.mxu0 0.0
  %342 = vmatpush.msra.mxu0 0.0
  %343 = vmatpush.msra.mxu0 0.0
  %344 = vmatpush.msra.mxu0 0.0
  %345 = vmatpush.msra.mxu0 %v307
  %346 = vmatpush.msra.mxu0 %v306
  %347 = vmatpush.msra.mxu0 %v305
  %348 = vmatpush.msra.mxu0 %v304
  %349 = vmatmul.f32.gmra.mxu0 %v310
  %v350 = vpop.f32.mrf.mxu0
  %v351 = vadd.f32 0.0, %v350
  %352 = vmatmul.f32.gmra.mxu0 %v313
  %v353 = vpop.f32.mrf.mxu0
  %v354 = vadd.f32 0.0, %v353
  %355 = vmatmul.f32.gmra.mxu0 %v316
  %v356 = vpop.f32.mrf.mxu0
  %v357 = vadd.f32 0.0, %v356
  %358 = vmatmul.f32.gmra.mxu0 %v319
  %v359 = vpop.f32.mrf.mxu0
  %v360 = vadd.f32 0.0, %v359
  %361 = vmatmul.f32.gmra.mxu0 %v322
  %v362 = vpop.f32.mrf.mxu0
  %v363 = vadd.f32 0.0, %v362
  %364 = vmatmul.f32.gmra.mxu0 %v325
  %v365 = vpop.f32.mrf.mxu0
  %v366 = vadd.f32 0.0, %v365
  %367 = vmatmul.f32.gmra.mxu0 %v328
  %v368 = vpop.f32.mrf.mxu0
  %v369 = vadd.f32 0.0, %v368
  %370 = vmatmul.f32.gmra.mxu0 %v331
  %v371 = vpop.f32.mrf.mxu0
  %v372 = vadd.f32 0.0, %v371
  %373 = vdwg.mxu0
  %v374 = vld [vmem:[%s4] sm:$0xff]
  %v375 = vld [vmem:[%s4 + $0x8] sm:$0xff]
  %v376 = vld [vmem:[%s3] sm:$0xff]
  %v377 = vld [vmem:[%s3 + $0x8] sm:$0xff]
  %v378 = vld [vmem:[%s3 + $0x10] sm:$0xff]
  %v379 = vld [vmem:[%s3 + $0x18] sm:$0xff]
  %v380 = vld [vmem:[%s3 + $0x20] sm:$0xff]
  %v381 = vld [vmem:[%s3 + $0x28] sm:$0xff]
  %v382 = vld [vmem:[%s3 + $0x30] sm:$0xff]
  %v383 = vld [vmem:[%s3 + $0x38] sm:$0xff]
  %v384 = vld [vmem:[%s5] sm:$0xff]
  %v385 = vld [vmem:[%s5 + $0x8] sm:$0xff]
  %vm386 = vcmask 130048
  %v388 = vsel %vm386, %v376, 0
  %v391 = vsel %vm386, %v377, 0
  %v394 = vsel %vm386, %v378, 0
  %v397 = vsel %vm386, %v379, 0
  %v400 = vsel %vm386, %v380, 0
  %v403 = vsel %vm386, %v381, 0
  %v406 = vsel %vm386, %v382, 0
  %v409 = vsel %vm386, %v383, 0
  %411 = vmatpush.msra.mxu0 0.0
  %412 = vmatpush.msra.mxu0 0.0
  %413 = vmatpush.msra.mxu0 0.0
  %414 = vmatpush.msra.mxu0 0.0
  %415 = vmatpush.msra.mxu0 0.0
  %416 = vmatpush.msra.mxu0 0.0
  %417 = vmatpush.msra.mxu0 0.0
  %418 = vmatpush.msra.mxu0 0.0
  %419 = vmatpush.msra.mxu0 0.0
  %420 = vmatpush.msra.mxu0 0.0
  %421 = vmatpush.msra.mxu0 0.0
  %422 = vmatpush.msra.mxu0 0.0
  %423 = vmatpush.msra.mxu0 0.0
  %424 = vmatpush.msra.mxu0 0.0
  %425 = vmatpush.msra.mxu0 %v385
  %426 = vmatpush.msra.mxu0 %v384
  %427 = vmatmul.f32.gmra.mxu0 %v388
  %v428 = vpop.f32.mrf.mxu0
  %v429 = vadd.f32 0.0, %v428
  %430 = vmatmul.f32.gmra.mxu0 %v391
  %v431 = vpop.f32.mrf.mxu0
  %v432 = vadd.f32 0.0, %v431
  %433 = vmatmul.f32.gmra.mxu0 %v394
  %v434 = vpop.f32.mrf.mxu0
  %v435 = vadd.f32 0.0, %v434
  %436 = vmatmul.f32.gmra.mxu0 %v397
  %v437 = vpop.f32.mrf.mxu0
  %v438 = vadd.f32 0.0, %v437
  %439 = vmatmul.f32.gmra.mxu0 %v400
  %v440 = vpop.f32.mrf.mxu0
  %v441 = vadd.f32 0.0, %v440
  %442 = vmatmul.f32.gmra.mxu0 %v403
  %v443 = vpop.f32.mrf.mxu0
  %v444 = vadd.f32 0.0, %v443
  %445 = vmatmul.f32.gmra.mxu0 %v406
  %v446 = vpop.f32.mrf.mxu0
  %v447 = vadd.f32 0.0, %v446
  %448 = vmatmul.f32.gmra.mxu0 %v409
  %v449 = vpop.f32.mrf.mxu0
  %v450 = vadd.f32 0.0, %v449
  %451 = vdwg.mxu0
  %v453 = vsel %vm386, %v351, 0
  %v456 = vsel %vm386, %v354, 0
  %v459 = vsel %vm386, %v357, 0
  %v462 = vsel %vm386, %v360, 0
  %v465 = vsel %vm386, %v363, 0
  %v468 = vsel %vm386, %v366, 0
  %v471 = vsel %vm386, %v369, 0
  %v474 = vsel %vm386, %v372, 0
  %476 = vmatpush.msra.mxu0 0.0
  %477 = vmatpush.msra.mxu0 0.0
  %478 = vmatpush.msra.mxu0 0.0
  %479 = vmatpush.msra.mxu0 0.0
  %480 = vmatpush.msra.mxu0 0.0
  %481 = vmatpush.msra.mxu0 0.0
  %482 = vmatpush.msra.mxu0 0.0
  %483 = vmatpush.msra.mxu0 0.0
  %484 = vmatpush.msra.mxu0 0.0
  %485 = vmatpush.msra.mxu0 0.0
  %486 = vmatpush.msra.mxu0 0.0
  %487 = vmatpush.msra.mxu0 0.0
  %488 = vmatpush.msra.mxu0 0.0
  %489 = vmatpush.msra.mxu0 0.0
  %490 = vmatpush.msra.mxu0 %v375
  %491 = vmatpush.msra.mxu0 %v374
  %492 = vmatmul.f32.gmra.mxu0 %v453
  %v493 = vpop.f32.mrf.mxu0
  %v494 = vadd.f32 %v429, %v493
  %495 = vmatmul.f32.gmra.mxu0 %v456
  %v496 = vpop.f32.mrf.mxu0
  %v497 = vadd.f32 %v432, %v496
  %498 = vmatmul.f32.gmra.mxu0 %v459
  %v499 = vpop.f32.mrf.mxu0
  %v500 = vadd.f32 %v435, %v499
  %501 = vmatmul.f32.gmra.mxu0 %v462
  %v502 = vpop.f32.mrf.mxu0
  %v503 = vadd.f32 %v438, %v502
  %504 = vmatmul.f32.gmra.mxu0 %v465
  %v505 = vpop.f32.mrf.mxu0
  %v506 = vadd.f32 %v441, %v505
  %507 = vmatmul.f32.gmra.mxu0 %v468
  %v508 = vpop.f32.mrf.mxu0
  %v509 = vadd.f32 %v444, %v508
  %510 = vmatmul.f32.gmra.mxu0 %v471
  %v511 = vpop.f32.mrf.mxu0
  %v512 = vadd.f32 %v447, %v511
  %513 = vmatmul.f32.gmra.mxu0 %v474
  %v514 = vpop.f32.mrf.mxu0
  %v515 = vadd.f32 %v450, %v514
  %516 = vdwg.mxu0
  %v517 = vld [vmem:[%s6] sm:$0x1]
  %v519 = vperm.slane %v517, 0
  %v521 = vmul.f32 %v494, %v519
  %v522 = vmul.f32 %v497, %v519
  %v523 = vmul.f32 %v500, %v519
  %v524 = vmul.f32 %v503, %v519
  %v525 = vmul.f32 %v506, %v519
  %v526 = vmul.f32 %v509, %v519
  %v527 = vmul.f32 %v512, %v519
  %v528 = vmul.f32 %v515, %v519
  %v529 = vld [vmem:[%s7] sm:$0x1]
  %v531 = vperm.slane %v529, 0
  %v533 = vadd.f32 %v521, %v531
  %v534 = vadd.f32 %v522, %v531
  %v535 = vadd.f32 %v523, %v531
  %v536 = vadd.f32 %v524, %v531
  %v537 = vadd.f32 %v525, %v531
  %v538 = vadd.f32 %v526, %v531
  %v539 = vadd.f32 %v527, %v531
  %v540 = vadd.f32 %v528, %v531
  %v541 = vmax.f32 %v533, 0.0
  %v542 = vmax.f32 %v534, 0.0
  %v543 = vmax.f32 %v535, 0.0
  %v544 = vmax.f32 %v536, 0.0
  %v545 = vmax.f32 %v537, 0.0
  %v546 = vmax.f32 %v538, 0.0
  %v547 = vmax.f32 %v539, 0.0
  %v548 = vmax.f32 %v540, 0.0
  %v549 = vld [vmem:[%s8] sm:$0xff]
  %v550 = vld [vmem:[%s8 + $0x8] sm:$0xff]
  %v551 = vld [vmem:[%s8 + $0x10] sm:$0xff]
  %v552 = vld [vmem:[%s8 + $0x18] sm:$0xff]
  %v554 = vsel %vm308, %v541, 0
  %v557 = vsel %vm308, %v542, 0
  %v560 = vsel %vm308, %v543, 0
  %v563 = vsel %vm308, %v544, 0
  %v566 = vsel %vm308, %v545, 0
  %v569 = vsel %vm308, %v546, 0
  %v572 = vsel %vm308, %v547, 0
  %v575 = vsel %vm308, %v548, 0
  %577 = vmatpush.msra.mxu0 0.0
  %578 = vmatpush.msra.mxu0 0.0
  %579 = vmatpush.msra.mxu0 0.0
  %580 = vmatpush.msra.mxu0 0.0
  %581 = vmatpush.msra.mxu0 0.0
  %582 = vmatpush.msra.mxu0 0.0
  %583 = vmatpush.msra.mxu0 0.0
  %584 = vmatpush.msra.mxu0 0.0
  %585 = vmatpush.msra.mxu0 0.0
  %586 = vmatpush.msra.mxu0 0.0
  %587 = vmatpush.msra.mxu0 0.0
  %588 = vmatpush.msra.mxu0 0.0
  %589 = vmatpush.msra.mxu0 %v552
  %590 = vmatpush.msra.mxu0 %v551
  %591 = vmatpush.msra.mxu0 %v550
  %592 = vmatpush.msra.mxu0 %v549
  %593 = vmatmul.f32.gmra.mxu0 %v554
  %v594 = vpop.f32.mrf.mxu0
  %v595 = vadd.f32 0.0, %v594
  %596 = vmatmul.f32.gmra.mxu0 %v557
  %v597 = vpop.f32.mrf.mxu0
  %v598 = vadd.f32 0.0, %v597
  %599 = vmatmul.f32.gmra.mxu0 %v560
  %v600 = vpop.f32.mrf.mxu0
  %v601 = vadd.f32 0.0, %v600
  %602 = vmatmul.f32.gmra.mxu0 %v563
  %v603 = vpop.f32.mrf.mxu0
  %v604 = vadd.f32 0.0, %v603
  %605 = vmatmul.f32.gmra.mxu0 %v566
  %v606 = vpop.f32.mrf.mxu0
  %v607 = vadd.f32 0.0, %v606
  %608 = vmatmul.f32.gmra.mxu0 %v569
  %v609 = vpop.f32.mrf.mxu0
  %v610 = vadd.f32 0.0, %v609
  %611 = vmatmul.f32.gmra.mxu0 %v572
  %v612 = vpop.f32.mrf.mxu0
  %v613 = vadd.f32 0.0, %v612
  %614 = vmatmul.f32.gmra.mxu0 %v575
  %v615 = vpop.f32.mrf.mxu0
  %v616 = vadd.f32 0.0, %v615
  %617 = vdwg.mxu0
  %v618 = vld [vmem:[%s9] sm:$0x1]
  %v620 = vperm.slane %v618, 0
  %v622 = vmul.f32 %v595, %v620
  %v623 = vmul.f32 %v598, %v620
  %v624 = vmul.f32 %v601, %v620
  %v625 = vmul.f32 %v604, %v620
  %v626 = vmul.f32 %v607, %v620
  %v627 = vmul.f32 %v610, %v620
  %v628 = vmul.f32 %v613, %v620
  %v629 = vmul.f32 %v616, %v620
  %v630 = vld [vmem:[%s10] sm:$0x1]
  %v632 = vperm.slane %v630, 0
  %v634 = vadd.f32 %v622, %v632
  %v635 = vadd.f32 %v623, %v632
  %v636 = vadd.f32 %v624, %v632
  %v637 = vadd.f32 %v625, %v632
  %v638 = vadd.f32 %v626, %v632
  %v639 = vadd.f32 %v627, %v632
  %v640 = vadd.f32 %v628, %v632
  %v641 = vadd.f32 %v629, %v632
  %v642 = vmax.f32 %v634, 0.0
  %v643 = vmax.f32 %v635, 0.0
  %v644 = vmax.f32 %v636, 0.0
  %v645 = vmax.f32 %v637, 0.0
  %v646 = vmax.f32 %v638, 0.0
  %v647 = vmax.f32 %v639, 0.0
  %v648 = vmax.f32 %v640, 0.0
  %v649 = vmax.f32 %v641, 0.0
  %650 = vst.msk [vmem:[%s11] sm:$0xff] %vm386, %v642
  %651 = vst.msk [vmem:[%s11 + $0x8] sm:$0xff] %vm386, %v643
  %652 = vst.msk [vmem:[%s11 + $0x10] sm:$0xff] %vm386, %v644
  %653 = vst.msk [vmem:[%s11 + $0x18] sm:$0xff] %vm386, %v645
  %654 = vst.msk [vmem:[%s11 + $0x20] sm:$0xff] %vm386, %v646
  %655 = vst.msk [vmem:[%s11 + $0x28] sm:$0xff] %vm386, %v647
  %656 = vst.msk [vmem:[%s11 + $0x30] sm:$0xff] %vm386, %v648
  %657 = vst.msk [vmem:[%s11 + $0x38] sm:$0xff] %vm386, %v649
  // Predicated region
  $region46: #{model_forward.14} parent=0 // pred_check
    _
  $region47: #{model_forward.14} parent=0 // pred_check_branch
    %659 = sbr.rel (0) target = $region49
  $region48: #{model_forward.14} parent=0 // pred_region
    _
  $region49: #{model_forward.14} parent=0 // pred_fallthru
    _
  // Predicated region
  $region50: #{model_forward.14} parent=0 // pred_check
    _
  $region51: #{model_forward.14} parent=0 // pred_check_branch
    %661 = sbr.rel (0) target = $region53
  $region52: #{model_forward.14} parent=0 // pred_region
    _
  $region53: #{model_forward.14} parent=0 // pred_fallthru
    _

</llo_original>
